<compile_context>
chip_gen: v7x
topology: tpu7x:2x2x1
jax: 0.10.0
libtpu: 0.0.40
codegen_flags: <defaults>
</compile_context>

<pallas_src>
import jax
import jax.numpy as jnp
from jax.experimental import pallas as pl
from jax.experimental.pallas import tpu as pltpu


def _round_up(n, m):
    return ((n + m - 1) // m) * m


# ----------------------------------------------------------------------------
# Fused kernel: backbone (F-chunked) + hoisted input projection + packed-gate
# GRU recurrence + folded classifier / Conv1d(S,1,1) head.
# ----------------------------------------------------------------------------
def _fused_kernel(x_ref, wbb_ref, bbb_ref, wih_ref, bih_ref, whh_ref, bhh_ref,
                  wcls_ref, bout_ref, wfc_ref, o_ref):
    # x_ref   : VMEM [B*C, S, P]   (row b*C + c == x[b, c], P = H*W on lanes)
    # wbb_ref : VMEM [C, F, 1]
    # bbb_ref : VMEM [F, 1]
    # wih_ref : VMEM [F, GP]       gates packed r|z|n on lanes 0:3H, zero pad
    # bih_ref : VMEM [1, GP]
    # whh_ref : VMEM [H, GP]
    # bhh_ref : VMEM [1, GP]
    # wcls_ref: VMEM [H, OP]       zero-padded classifier weight
    # bout_ref: VMEM [1, OP]       sum(w_fc)*b_cls + b_fc, zero-padded
    # wfc_ref : SMEM (S,)          Conv1d(S, 1, 1) weight
    # o_ref   : VMEM [B_PAD, OP]   (lane-dense, sublane-padded batch)
    C = wbb_ref.shape[0]
    F = wbb_ref.shape[1]
    BC, S, P = x_ref.shape
    B = BC // C
    H, GP = whh_ref.shape
    B_PAD = o_ref.shape[0]
    FC = 8 if F % 8 == 0 else F          # backbone F-chunk: ~16 live vregs/chunk

    # Tiny parameters: load once, slice as values (8-aligned sublane slices).
    wbb = wbb_ref[...]                   # [C, F, 1]
    bbb = bbb_ref[...]                   # [F, 1]
    wih = wih_ref[...]                   # [F, GP]
    bih = bih_ref[...]                   # [1, GP]

    # ---- backbone (1x1 conv C->F + ReLU + GAP), chunked over F, fused into ----
    # ---- the hoisted GRU input projection: gi_b = feats_b @ w_ih + b_ih     ----
    gi_list = []
    for b in range(B):
        xb = [x_ref[b * C + c] for c in range(C)]            # C x [S, P]
        gi_b = None
        for f0 in range(0, F, FC):
            # bias folded into the c == 0 FMA (no separate bias/ReLU pass)
            acc = (xb[0][:, None, :] * wbb[0, f0:f0 + FC, :][None, :, :]
                   + bbb[f0:f0 + FC, :][None, :, :])          # [S, FC, P]
            for c in range(1, C):
                acc = acc + xb[c][:, None, :] * wbb[c, f0:f0 + FC, :][None, :, :]
            fchunk = jnp.mean(jnp.maximum(acc, 0.0), axis=-1)  # [S, FC]
            part = jnp.dot(fchunk, wih[f0:f0 + FC, :],
                           preferred_element_type=jnp.float32)  # [S, GP]
            gi_b = part if gi_b is None else gi_b + part
        gi_list.append(gi_b + bih)                             # [S, GP]

    # One-time relayout (off the serial chain): gi3[t, b, :] = gi_list[b][t, :].
    # Padded batch rows stay zero (finite garbage through the recurrence).
    row = jax.lax.broadcasted_iota(jnp.int32, (S, B_PAD, GP), 1)
    gi3 = jnp.zeros((S, B_PAD, GP), jnp.float32)
    for b in range(B):
        gi3 = jnp.where(row == b, gi_list[b][:, None, :], gi3)

    # ---- GRU recurrence: unrolled, one packed MXU push per step, all f32 ------
    # TODO(synk): SpecialRNN dropout is an inference-time no-op here.
    whh = whh_ref[...]                   # [H, GP]
    bhh = bhh_ref[...]                   # [1, GP]
    h = jnp.zeros((B_PAD, H), jnp.float32)
    hacc = jnp.zeros((B_PAD, H), jnp.float32)
    for t in range(S):                   # S is small and static -> unroll
        gh = jnp.dot(h, whh, preferred_element_type=jnp.float32) + bhh  # [B_PAD, GP]
        gx = gi3[t]                                                     # [B_PAD, GP]
        r = jax.nn.sigmoid(gx[:, 0:H] + gh[:, 0:H])
        z = jax.nn.sigmoid(gx[:, H:2 * H] + gh[:, H:2 * H])
        n = jnp.tanh(gx[:, 2 * H:3 * H] + r * gh[:, 2 * H:3 * H])
        h = (1.0 - z) * n + z * h
        hacc = hacc + wfc_ref[t] * h     # linear head => fold Conv1d weight

    # out = (sum_t wfc[t] * h_t) @ w_cls + (sum_t wfc[t]) * b_cls + b_fc
    o_ref[...] = (jnp.dot(hacc, wcls_ref[...], preferred_element_type=jnp.float32)
                  + bout_ref[...])


# ----------------------------------------------------------------------------
# Full forward pass (parameter packing in plain JAX, hot path in one Pallas call).
# ----------------------------------------------------------------------------
@jax.jit
def net_special_rnn_forward(x, params):
    # x: [B, C, S, H, W]  (NCDHW, PyTorch convention; x[:, :, i] is one slice)
    B, C, S, Hh, Ww = x.shape
    P = Hh * Ww
    F = params["w_bb"].shape[1]
    H = params["w_hh"].shape[0]
    NC = params["w_cls"].shape[1]
    GP = _round_up(3 * H, 128)           # packed-gate lane width
    OP = _round_up(NC, 128)              # lane-dense classifier output width
    B_PAD = _round_up(B, 8)              # sublane-dense output batch

    # Native NCDHW order; collapsing contiguous dims is a bitcast (no transpose,
    # no extra HBM round trip before the kernel).
    x_k = x.reshape(B * C, S, P)

    # Parameter repacking (tiny, parameter-side only).
    # NOTE: w_ih/w_hh are [F, 3H]/[H, 3H] with gates r|z|n blocked on the last
    # axis; real PyTorch checkpoints (weight_ih_l0: [3H, F]) need a transpose.
    w_bb = params["w_bb"][:, :, None]                                   # [C, F, 1]
    b_bb = params["b_bb"].reshape(F, 1)                                 # [F, 1]
    w_ih = jnp.zeros((F, GP), jnp.float32).at[:, :3 * H].set(params["w_ih"])
    b_ih = jnp.zeros((1, GP), jnp.float32).at[:, :3 * H].set(params["b_ih"])
    w_hh = jnp.zeros((H, GP), jnp.float32).at[:, :3 * H].set(params["w_hh"])
    b_hh = jnp.zeros((1, GP), jnp.float32).at[:, :3 * H].set(params["b_hh"])
    w_cls = jnp.zeros((H, OP), jnp.float32).at[:, :NC].set(params["w_cls"])
    b_out = jnp.sum(params["w_fc"]) * params["b_cls"][0] + params["b_fc"][0]  # [NC]
    b_out_p = jnp.zeros((1, OP), jnp.float32).at[0, :NC].set(b_out)

    vmem = pl.BlockSpec(memory_space=pltpu.MemorySpace.VMEM)
    smem = pl.BlockSpec(memory_space=pltpu.MemorySpace.SMEM)
    # TODO(synk): if B grows beyond a few, add a grid over the batch
    # (dimension_semantics=("parallel",)) so v7x's two TensorCores both work and
    # per-step VMEM stays bounded; at B=2 a single no-grid call is optimal.
    out_pad = pl.pallas_call(
        _fused_kernel,
        out_shape=jax.ShapeDtypeStruct((B_PAD, OP), jnp.float32),
        in_specs=[vmem] * 9 + [smem],
        out_specs=vmem,
    )(x_k, w_bb, b_bb, w_ih, b_ih, w_hh, b_hh, w_cls, b_out_p, params["w_fc"])

    return out_pad[:B, :NC]                                             # [B, NC]


# ----------------------------------------------------------------------------
# Pure-JAX reference (numerical sanity check, independent of kernel layout).
# ----------------------------------------------------------------------------
def reference_forward(x, params):
    B, C, S, Hh, Ww = x.shape
    xs = jnp.transpose(x, (2, 0, 3, 4, 1)).reshape(S, B, Hh * Ww, C)
    y = jnp.einsum("sbpc,cf->sbpf", xs, params["w_bb"]) + params["b_bb"][0]
    feats = jnp.maximum(y, 0.0).mean(axis=2)                            # [S, B, F]
    H = params["w_hh"].shape[0]
    NC = params["w_cls"].shape[1]
    h = jnp.zeros((B, H), jnp.float32)
    acc = jnp.zeros((B, NC), jnp.float32)
    for t in range(S):
        gi = feats[t] @ params["w_ih"] + params["b_ih"][0]
        gh = h @ params["w_hh"] + params["b_hh"][0]
        r = jax.nn.sigmoid(gi[:, :H] + gh[:, :H])
        z = jax.nn.sigmoid(gi[:, H:2 * H] + gh[:, H:2 * H])
        n = jnp.tanh(gi[:, 2 * H:] + r * gh[:, 2 * H:])
        h = (1.0 - z) * n + z * h
        logits = h @ params["w_cls"] + params["b_cls"][0]
        acc = acc + params["w_fc"][t] * logits
    return acc + params["b_fc"][0]


if __name__ == "__main__":
    # Small shapes consistent with the module's forward:
    B, C, S, Hs, Ws = 2, 4, 8, 16, 16        # batch, img channels, seq_len, H, W
    F = 32                                   # dim_feats (backbone output)
    H = 32                                   # GRU hidden_size (defaults to dim_feats)
    NC = 3                                   # num_classes

    key = jax.random.PRNGKey(0)
    ks = jax.random.split(key, 11)
    sc = 0.1
    params = {
        "w_bb": sc * jax.random.normal(ks[0], (C, F), jnp.float32),
        "b_bb": sc * jax.random.normal(ks[1], (1, F), jnp.float32),
        "w_ih": sc * jax.random.normal(ks[2], (F, 3 * H), jnp.float32),
        "w_hh": sc * jax.random.normal(ks[3], (H, 3 * H), jnp.float32),
        "b_ih": sc * jax.random.normal(ks[4], (1, 3 * H), jnp.float32),
        "b_hh": sc * jax.random.normal(ks[5], (1, 3 * H), jnp.float32),
        "w_cls": sc * jax.random.normal(ks[6], (H, NC), jnp.float32),
        "b_cls": sc * jax.random.normal(ks[7], (1, NC), jnp.float32),
        "w_fc": sc * jax.random.normal(ks[8], (S,), jnp.float32),   # Conv1d(S,1,1).weight
        "b_fc": sc * jax.random.normal(ks[9], (1,), jnp.float32),   # Conv1d(S,1,1).bias
    }
    x = jax.random.normal(ks[10], (B, C, S, Hs, Ws), jnp.float32)

    out = net_special_rnn_forward(x, params)
    out = jax.block_until_ready(out)
    assert out.shape == (B, NC), out.shape

    ref = reference_forward(x, params)
    assert jnp.allclose(out, ref, atol=1e-4, rtol=1e-3), (out, ref)

    print("KERNEL_OK")
</pallas_src>

<mosaic_0001>
module attributes {stable_mosaic.version = 11 : i64} {
  func.func @_fused_kernel(%arg0: memref<8x8x256xf32, #tpu.memory_space<vmem>>, %arg1: memref<4x32x1xf32, #tpu.memory_space<vmem>>, %arg2: memref<32x1xf32, #tpu.memory_space<vmem>>, %arg3: memref<32x128xf32, #tpu.memory_space<vmem>>, %arg4: memref<1x128xf32, #tpu.memory_space<vmem>>, %arg5: memref<32x128xf32, #tpu.memory_space<vmem>>, %arg6: memref<1x128xf32, #tpu.memory_space<vmem>>, %arg7: memref<32x128xf32, #tpu.memory_space<vmem>>, %arg8: memref<1x128xf32, #tpu.memory_space<vmem>>, %arg9: memref<8xf32, #tpu.memory_space<smem>>, %arg10: memref<8x128xf32, #tpu.memory_space<vmem>>) attributes {dimension_semantics = [], scalar_prefetch = 0 : i64, scratch_operands = 0 : i64, tpu.core_type = #tpu.core_type<tc>} {
    %c0 = arith.constant 0 : index
    %c0_0 = arith.constant 0 : index
    %c0_1 = arith.constant 0 : index
    %0 = vector.load %arg1[%c0, %c0_0, %c0_1] : memref<4x32x1xf32, #tpu.memory_space<vmem>>, vector<4x32x1xf32>
    %c0_2 = arith.constant 0 : index
    %c0_3 = arith.constant 0 : index
    %1 = vector.load %arg2[%c0_2, %c0_3] : memref<32x1xf32, #tpu.memory_space<vmem>>, vector<32x1xf32>
    %c0_4 = arith.constant 0 : index
    %c0_5 = arith.constant 0 : index
    %2 = vector.load %arg3[%c0_4, %c0_5] : memref<32x128xf32, #tpu.memory_space<vmem>>, vector<32x128xf32>
    %c0_6 = arith.constant 0 : index
    %c0_7 = arith.constant 0 : index
    %3 = vector.load %arg4[%c0_6, %c0_7] : memref<1x128xf32, #tpu.memory_space<vmem>>, vector<1x128xf32>
    %c0_8 = arith.constant 0 : index
    %c0_9 = arith.constant 0 : index
    %c0_10 = arith.constant 0 : index
    %4 = vector.load %arg0[%c0_8, %c0_9, %c0_10] : memref<8x8x256xf32, #tpu.memory_space<vmem>>, vector<1x8x256xf32>
    %5 = vector.shape_cast %4 : vector<1x8x256xf32> to vector<8x256xf32>
    %c1 = arith.constant 1 : index
    %c0_11 = arith.constant 0 : index
    %c0_12 = arith.constant 0 : index
    %6 = vector.load %arg0[%c1, %c0_11, %c0_12] : memref<8x8x256xf32, #tpu.memory_space<vmem>>, vector<1x8x256xf32>
    %7 = vector.shape_cast %6 : vector<1x8x256xf32> to vector<8x256xf32>
    %c2 = arith.constant 2 : index
    %c0_13 = arith.constant 0 : index
    %c0_14 = arith.constant 0 : index
    %8 = vector.load %arg0[%c2, %c0_13, %c0_14] : memref<8x8x256xf32, #tpu.memory_space<vmem>>, vector<1x8x256xf32>
    %9 = vector.shape_cast %8 : vector<1x8x256xf32> to vector<8x256xf32>
    %c3 = arith.constant 3 : index
    %c0_15 = arith.constant 0 : index
    %c0_16 = arith.constant 0 : index
    %10 = vector.load %arg0[%c3, %c0_15, %c0_16] : memref<8x8x256xf32, #tpu.memory_space<vmem>>, vector<1x8x256xf32>
    %11 = vector.shape_cast %10 : vector<1x8x256xf32> to vector<8x256xf32>
    %12 = vector.shape_cast %5 : vector<8x256xf32> to vector<8x1x256xf32>
    %13 = vector.extract_strided_slice %0 {offsets = [0, 0, 0], sizes = [1, 8, 1], strides = [1, 1, 1]} : vector<4x32x1xf32> to vector<1x8x1xf32>
    %14 = vector.shape_cast %13 : vector<1x8x1xf32> to vector<8x1xf32>
    %15 = vector.shape_cast %14 : vector<8x1xf32> to vector<1x8x1xf32>
    %16 = vector.broadcast %12 : vector<8x1x256xf32> to vector<8x8x256xf32>
    %17 = vector.broadcast %15 : vector<1x8x1xf32> to vector<8x8x256xf32>
    %18 = arith.mulf %16, %17 : vector<8x8x256xf32>
    %19 = vector.extract_strided_slice %1 {offsets = [0, 0], sizes = [8, 1], strides = [1, 1]} : vector<32x1xf32> to vector<8x1xf32>
    %20 = vector.shape_cast %19 : vector<8x1xf32> to vector<1x8x1xf32>
    %21 = vector.broadcast %20 : vector<1x8x1xf32> to vector<8x8x256xf32>
    %22 = arith.addf %18, %21 : vector<8x8x256xf32>
    %23 = vector.shape_cast %7 : vector<8x256xf32> to vector<8x1x256xf32>
    %24 = vector.extract_strided_slice %0 {offsets = [1, 0, 0], sizes = [1, 8, 1], strides = [1, 1, 1]} : vector<4x32x1xf32> to vector<1x8x1xf32>
    %25 = vector.shape_cast %24 : vector<1x8x1xf32> to vector<8x1xf32>
    %26 = vector.shape_cast %25 : vector<8x1xf32> to vector<1x8x1xf32>
    %27 = vector.broadcast %23 : vector<8x1x256xf32> to vector<8x8x256xf32>
    %28 = vector.broadcast %26 : vector<1x8x1xf32> to vector<8x8x256xf32>
    %29 = arith.mulf %27, %28 : vector<8x8x256xf32>
    %30 = arith.addf %22, %29 : vector<8x8x256xf32>
    %31 = vector.shape_cast %9 : vector<8x256xf32> to vector<8x1x256xf32>
    %32 = vector.extract_strided_slice %0 {offsets = [2, 0, 0], sizes = [1, 8, 1], strides = [1, 1, 1]} : vector<4x32x1xf32> to vector<1x8x1xf32>
    %33 = vector.shape_cast %32 : vector<1x8x1xf32> to vector<8x1xf32>
    %34 = vector.shape_cast %33 : vector<8x1xf32> to vector<1x8x1xf32>
    %35 = vector.broadcast %31 : vector<8x1x256xf32> to vector<8x8x256xf32>
    %36 = vector.broadcast %34 : vector<1x8x1xf32> to vector<8x8x256xf32>
    %37 = arith.mulf %35, %36 : vector<8x8x256xf32>
    %38 = arith.addf %30, %37 : vector<8x8x256xf32>
    %39 = vector.shape_cast %11 : vector<8x256xf32> to vector<8x1x256xf32>
    %40 = vector.extract_strided_slice %0 {offsets = [3, 0, 0], sizes = [1, 8, 1], strides = [1, 1, 1]} : vector<4x32x1xf32> to vector<1x8x1xf32>
    %41 = vector.shape_cast %40 : vector<1x8x1xf32> to vector<8x1xf32>
    %42 = vector.shape_cast %41 : vector<8x1xf32> to vector<1x8x1xf32>
    %43 = vector.broadcast %39 : vector<8x1x256xf32> to vector<8x8x256xf32>
    %44 = vector.broadcast %42 : vector<1x8x1xf32> to vector<8x8x256xf32>
    %45 = arith.mulf %43, %44 : vector<8x8x256xf32>
    %46 = arith.addf %38, %45 : vector<8x8x256xf32>
    %cst = arith.constant 0.000000e+00 : f32
    %47 = vector.broadcast %cst : f32 to vector<8x8x256xf32>
    %48 = arith.maximumf %46, %47 : vector<8x8x256xf32>
    %cst_17 = arith.constant dense<0.000000e+00> : vector<8x8xf32>
    %49 = vector.multi_reduction <add>, %48, %cst_17 [2] : vector<8x8x256xf32> to vector<8x8xf32>
    %cst_18 = arith.constant 2.560000e+02 : f32
    %50 = vector.broadcast %cst_18 : f32 to vector<8x8xf32>
    %51 = arith.divf %49, %50 : vector<8x8xf32>
    %52 = vector.extract_strided_slice %2 {offsets = [0, 0], sizes = [8, 128], strides = [1, 1]} : vector<32x128xf32> to vector<8x128xf32>
    %cst_19 = arith.constant dense<0.000000e+00> : vector<8x128xf32>
    %53 = tpu.matmul %51, %52, %cst_19 {dimension_numbers = #tpu.dot_dimension_numbers<[1], [0], [0], [1], [0, 0, 1, 1], [], []>} : vector<8x8xf32>, vector<8x128xf32>, vector<8x128xf32> -> vector<8x128xf32>
    %54 = vector.shape_cast %5 : vector<8x256xf32> to vector<8x1x256xf32>
    %55 = vector.extract_strided_slice %0 {offsets = [0, 8, 0], sizes = [1, 8, 1], strides = [1, 1, 1]} : vector<4x32x1xf32> to vector<1x8x1xf32>
    %56 = vector.shape_cast %55 : vector<1x8x1xf32> to vector<8x1xf32>
    %57 = vector.shape_cast %56 : vector<8x1xf32> to vector<1x8x1xf32>
    %58 = vector.broadcast %54 : vector<8x1x256xf32> to vector<8x8x256xf32>
    %59 = vector.broadcast %57 : vector<1x8x1xf32> to vector<8x8x256xf32>
    %60 = arith.mulf %58, %59 : vector<8x8x256xf32>
    %61 = vector.extract_strided_slice %1 {offsets = [8, 0], sizes = [8, 1], strides = [1, 1]} : vector<32x1xf32> to vector<8x1xf32>
    %62 = vector.shape_cast %61 : vector<8x1xf32> to vector<1x8x1xf32>
    %63 = vector.broadcast %62 : vector<1x8x1xf32> to vector<8x8x256xf32>
    %64 = arith.addf %60, %63 : vector<8x8x256xf32>
    %65 = vector.shape_cast %7 : vector<8x256xf32> to vector<8x1x256xf32>
    %66 = vector.extract_strided_slice %0 {offsets = [1, 8, 0], sizes = [1, 8, 1], strides = [1, 1, 1]} : vector<4x32x1xf32> to vector<1x8x1xf32>
    %67 = vector.shape_cast %66 : vector<1x8x1xf32> to vector<8x1xf32>
    %68 = vector.shape_cast %67 : vector<8x1xf32> to vector<1x8x1xf32>
    %69 = vector.broadcast %65 : vector<8x1x256xf32> to vector<8x8x256xf32>
    %70 = vector.broadcast %68 : vector<1x8x1xf32> to vector<8x8x256xf32>
    %71 = arith.mulf %69, %70 : vector<8x8x256xf32>
    %72 = arith.addf %64, %71 : vector<8x8x256xf32>
    %73 = vector.shape_cast %9 : vector<8x256xf32> to vector<8x1x256xf32>
    %74 = vector.extract_strided_slice %0 {offsets = [2, 8, 0], sizes = [1, 8, 1], strides = [1, 1, 1]} : vector<4x32x1xf32> to vector<1x8x1xf32>
    %75 = vector.shape_cast %74 : vector<1x8x1xf32> to vector<8x1xf32>
    %76 = vector.shape_cast %75 : vector<8x1xf32> to vector<1x8x1xf32>
    %77 = vector.broadcast %73 : vector<8x1x256xf32> to vector<8x8x256xf32>
    %78 = vector.broadcast %76 : vector<1x8x1xf32> to vector<8x8x256xf32>
    %79 = arith.mulf %77, %78 : vector<8x8x256xf32>
    %80 = arith.addf %72, %79 : vector<8x8x256xf32>
    %81 = vector.shape_cast %11 : vector<8x256xf32> to vector<8x1x256xf32>
    %82 = vector.extract_strided_slice %0 {offsets = [3, 8, 0], sizes = [1, 8, 1], strides = [1, 1, 1]} : vector<4x32x1xf32> to vector<1x8x1xf32>
    %83 = vector.shape_cast %82 : vector<1x8x1xf32> to vector<8x1xf32>
    %84 = vector.shape_cast %83 : vector<8x1xf32> to vector<1x8x1xf32>
    %85 = vector.broadcast %81 : vector<8x1x256xf32> to vector<8x8x256xf32>
    %86 = vector.broadcast %84 : vector<1x8x1xf32> to vector<8x8x256xf32>
    %87 = arith.mulf %85, %86 : vector<8x8x256xf32>
    %88 = arith.addf %80, %87 : vector<8x8x256xf32>
    %cst_20 = arith.constant 0.000000e+00 : f32
    %89 = vector.broadcast %cst_20 : f32 to vector<8x8x256xf32>
    %90 = arith.maximumf %88, %89 : vector<8x8x256xf32>
    %cst_21 = arith.constant dense<0.000000e+00> : vector<8x8xf32>
    %91 = vector.multi_reduction <add>, %90, %cst_21 [2] : vector<8x8x256xf32> to vector<8x8xf32>
    %cst_22 = arith.constant 2.560000e+02 : f32
    %92 = vector.broadcast %cst_22 : f32 to vector<8x8xf32>
    %93 = arith.divf %91, %92 : vector<8x8xf32>
    %94 = vector.extract_strided_slice %2 {offsets = [8, 0], sizes = [8, 128], strides = [1, 1]} : vector<32x128xf32> to vector<8x128xf32>
    %cst_23 = arith.constant dense<0.000000e+00> : vector<8x128xf32>
    %95 = tpu.matmul %93, %94, %cst_23 {dimension_numbers = #tpu.dot_dimension_numbers<[1], [0], [0], [1], [0, 0, 1, 1], [], []>} : vector<8x8xf32>, vector<8x128xf32>, vector<8x128xf32> -> vector<8x128xf32>
    %96 = arith.addf %53, %95 : vector<8x128xf32>
    %97 = vector.shape_cast %5 : vector<8x256xf32> to vector<8x1x256xf32>
    %98 = vector.extract_strided_slice %0 {offsets = [0, 16, 0], sizes = [1, 8, 1], strides = [1, 1, 1]} : vector<4x32x1xf32> to vector<1x8x1xf32>
    %99 = vector.shape_cast %98 : vector<1x8x1xf32> to vector<8x1xf32>
    %100 = vector.shape_cast %99 : vector<8x1xf32> to vector<1x8x1xf32>
    %101 = vector.broadcast %97 : vector<8x1x256xf32> to vector<8x8x256xf32>
    %102 = vector.broadcast %100 : vector<1x8x1xf32> to vector<8x8x256xf32>
    %103 = arith.mulf %101, %102 : vector<8x8x256xf32>
    %104 = vector.extract_strided_slice %1 {offsets = [16, 0], sizes = [8, 1], strides = [1, 1]} : vector<32x1xf32> to vector<8x1xf32>
    %105 = vector.shape_cast %104 : vector<8x1xf32> to vector<1x8x1xf32>
    %106 = vector.broadcast %105 : vector<1x8x1xf32> to vector<8x8x256xf32>
    %107 = arith.addf %103, %106 : vector<8x8x256xf32>
    %108 = vector.shape_cast %7 : vector<8x256xf32> to vector<8x1x256xf32>
    %109 = vector.extract_strided_slice %0 {offsets = [1, 16, 0], sizes = [1, 8, 1], strides = [1, 1, 1]} : vector<4x32x1xf32> to vector<1x8x1xf32>
    %110 = vector.shape_cast %109 : vector<1x8x1xf32> to vector<8x1xf32>
    %111 = vector.shape_cast %110 : vector<8x1xf32> to vector<1x8x1xf32>
    %112 = vector.broadcast %108 : vector<8x1x256xf32> to vector<8x8x256xf32>
    %113 = vector.broadcast %111 : vector<1x8x1xf32> to vector<8x8x256xf32>
    %114 = arith.mulf %112, %113 : vector<8x8x256xf32>
    %115 = arith.addf %107, %114 : vector<8x8x256xf32>
    %116 = vector.shape_cast %9 : vector<8x256xf32> to vector<8x1x256xf32>
    %117 = vector.extract_strided_slice %0 {offsets = [2, 16, 0], sizes = [1, 8, 1], strides = [1, 1, 1]} : vector<4x32x1xf32> to vector<1x8x1xf32>
    %118 = vector.shape_cast %117 : vector<1x8x1xf32> to vector<8x1xf32>
    %119 = vector.shape_cast %118 : vector<8x1xf32> to vector<1x8x1xf32>
    %120 = vector.broadcast %116 : vector<8x1x256xf32> to vector<8x8x256xf32>
    %121 = vector.broadcast %119 : vector<1x8x1xf32> to vector<8x8x256xf32>
    %122 = arith.mulf %120, %121 : vector<8x8x256xf32>
    %123 = arith.addf %115, %122 : vector<8x8x256xf32>
    %124 = vector.shape_cast %11 : vector<8x256xf32> to vector<8x1x256xf32>
    %125 = vector.extract_strided_slice %0 {offsets = [3, 16, 0], sizes = [1, 8, 1], strides = [1, 1, 1]} : vector<4x32x1xf32> to vector<1x8x1xf32>
    %126 = vector.shape_cast %125 : vector<1x8x1xf32> to vector<8x1xf32>
    %127 = vector.shape_cast %126 : vector<8x1xf32> to vector<1x8x1xf32>
    %128 = vector.broadcast %124 : vector<8x1x256xf32> to vector<8x8x256xf32>
    %129 = vector.broadcast %127 : vector<1x8x1xf32> to vector<8x8x256xf32>
    %130 = arith.mulf %128, %129 : vector<8x8x256xf32>
    %131 = arith.addf %123, %130 : vector<8x8x256xf32>
    %cst_24 = arith.constant 0.000000e+00 : f32
    %132 = vector.broadcast %cst_24 : f32 to vector<8x8x256xf32>
    %133 = arith.maximumf %131, %132 : vector<8x8x256xf32>
    %cst_25 = arith.constant dense<0.000000e+00> : vector<8x8xf32>
    %134 = vector.multi_reduction <add>, %133, %cst_25 [2] : vector<8x8x256xf32> to vector<8x8xf32>
    %cst_26 = arith.constant 2.560000e+02 : f32
    %135 = vector.broadcast %cst_26 : f32 to vector<8x8xf32>
    %136 = arith.divf %134, %135 : vector<8x8xf32>
    %137 = vector.extract_strided_slice %2 {offsets = [16, 0], sizes = [8, 128], strides = [1, 1]} : vector<32x128xf32> to vector<8x128xf32>
    %cst_27 = arith.constant dense<0.000000e+00> : vector<8x128xf32>
    %138 = tpu.matmul %136, %137, %cst_27 {dimension_numbers = #tpu.dot_dimension_numbers<[1], [0], [0], [1], [0, 0, 1, 1], [], []>} : vector<8x8xf32>, vector<8x128xf32>, vector<8x128xf32> -> vector<8x128xf32>
    %139 = arith.addf %96, %138 : vector<8x128xf32>
    %140 = vector.shape_cast %5 : vector<8x256xf32> to vector<8x1x256xf32>
    %141 = vector.extract_strided_slice %0 {offsets = [0, 24, 0], sizes = [1, 8, 1], strides = [1, 1, 1]} : vector<4x32x1xf32> to vector<1x8x1xf32>
    %142 = vector.shape_cast %141 : vector<1x8x1xf32> to vector<8x1xf32>
    %143 = vector.shape_cast %142 : vector<8x1xf32> to vector<1x8x1xf32>
    %144 = vector.broadcast %140 : vector<8x1x256xf32> to vector<8x8x256xf32>
    %145 = vector.broadcast %143 : vector<1x8x1xf32> to vector<8x8x256xf32>
    %146 = arith.mulf %144, %145 : vector<8x8x256xf32>
    %147 = vector.extract_strided_slice %1 {offsets = [24, 0], sizes = [8, 1], strides = [1, 1]} : vector<32x1xf32> to vector<8x1xf32>
    %148 = vector.shape_cast %147 : vector<8x1xf32> to vector<1x8x1xf32>
    %149 = vector.broadcast %148 : vector<1x8x1xf32> to vector<8x8x256xf32>
    %150 = arith.addf %146, %149 : vector<8x8x256xf32>
    %151 = vector.shape_cast %7 : vector<8x256xf32> to vector<8x1x256xf32>
    %152 = vector.extract_strided_slice %0 {offsets = [1, 24, 0], sizes = [1, 8, 1], strides = [1, 1, 1]} : vector<4x32x1xf32> to vector<1x8x1xf32>
    %153 = vector.shape_cast %152 : vector<1x8x1xf32> to vector<8x1xf32>
    %154 = vector.shape_cast %153 : vector<8x1xf32> to vector<1x8x1xf32>
    %155 = vector.broadcast %151 : vector<8x1x256xf32> to vector<8x8x256xf32>
    %156 = vector.broadcast %154 : vector<1x8x1xf32> to vector<8x8x256xf32>
    %157 = arith.mulf %155, %156 : vector<8x8x256xf32>
    %158 = arith.addf %150, %157 : vector<8x8x256xf32>
    %159 = vector.shape_cast %9 : vector<8x256xf32> to vector<8x1x256xf32>
    %160 = vector.extract_strided_slice %0 {offsets = [2, 24, 0], sizes = [1, 8, 1], strides = [1, 1, 1]} : vector<4x32x1xf32> to vector<1x8x1xf32>
    %161 = vector.shape_cast %160 : vector<1x8x1xf32> to vector<8x1xf32>
    %162 = vector.shape_cast %161 : vector<8x1xf32> to vector<1x8x1xf32>
    %163 = vector.broadcast %159 : vector<8x1x256xf32> to vector<8x8x256xf32>
    %164 = vector.broadcast %162 : vector<1x8x1xf32> to vector<8x8x256xf32>
    %165 = arith.mulf %163, %164 : vector<8x8x256xf32>
    %166 = arith.addf %158, %165 : vector<8x8x256xf32>
    %167 = vector.shape_cast %11 : vector<8x256xf32> to vector<8x1x256xf32>
    %168 = vector.extract_strided_slice %0 {offsets = [3, 24, 0], sizes = [1, 8, 1], strides = [1, 1, 1]} : vector<4x32x1xf32> to vector<1x8x1xf32>
    %169 = vector.shape_cast %168 : vector<1x8x1xf32> to vector<8x1xf32>
    %170 = vector.shape_cast %169 : vector<8x1xf32> to vector<1x8x1xf32>
    %171 = vector.broadcast %167 : vector<8x1x256xf32> to vector<8x8x256xf32>
    %172 = vector.broadcast %170 : vector<1x8x1xf32> to vector<8x8x256xf32>
    %173 = arith.mulf %171, %172 : vector<8x8x256xf32>
    %174 = arith.addf %166, %173 : vector<8x8x256xf32>
    %cst_28 = arith.constant 0.000000e+00 : f32
    %175 = vector.broadcast %cst_28 : f32 to vector<8x8x256xf32>
    %176 = arith.maximumf %174, %175 : vector<8x8x256xf32>
    %cst_29 = arith.constant dense<0.000000e+00> : vector<8x8xf32>
    %177 = vector.multi_reduction <add>, %176, %cst_29 [2] : vector<8x8x256xf32> to vector<8x8xf32>
    %cst_30 = arith.constant 2.560000e+02 : f32
    %178 = vector.broadcast %cst_30 : f32 to vector<8x8xf32>
    %179 = arith.divf %177, %178 : vector<8x8xf32>
    %180 = vector.extract_strided_slice %2 {offsets = [24, 0], sizes = [8, 128], strides = [1, 1]} : vector<32x128xf32> to vector<8x128xf32>
    %cst_31 = arith.constant dense<0.000000e+00> : vector<8x128xf32>
    %181 = tpu.matmul %179, %180, %cst_31 {dimension_numbers = #tpu.dot_dimension_numbers<[1], [0], [0], [1], [0, 0, 1, 1], [], []>} : vector<8x8xf32>, vector<8x128xf32>, vector<8x128xf32> -> vector<8x128xf32>
    %182 = arith.addf %139, %181 : vector<8x128xf32>
    %183 = vector.broadcast %3 : vector<1x128xf32> to vector<8x128xf32>
    %184 = arith.addf %182, %183 : vector<8x128xf32>
    %c4 = arith.constant 4 : index
    %c0_32 = arith.constant 0 : index
    %c0_33 = arith.constant 0 : index
    %185 = vector.load %arg0[%c4, %c0_32, %c0_33] : memref<8x8x256xf32, #tpu.memory_space<vmem>>, vector<1x8x256xf32>
    %186 = vector.shape_cast %185 : vector<1x8x256xf32> to vector<8x256xf32>
    %c5 = arith.constant 5 : index
    %c0_34 = arith.constant 0 : index
    %c0_35 = arith.constant 0 : index
    %187 = vector.load %arg0[%c5, %c0_34, %c0_35] : memref<8x8x256xf32, #tpu.memory_space<vmem>>, vector<1x8x256xf32>
    %188 = vector.shape_cast %187 : vector<1x8x256xf32> to vector<8x256xf32>
    %c6 = arith.constant 6 : index
    %c0_36 = arith.constant 0 : index
    %c0_37 = arith.constant 0 : index
    %189 = vector.load %arg0[%c6, %c0_36, %c0_37] : memref<8x8x256xf32, #tpu.memory_space<vmem>>, vector<1x8x256xf32>
    %190 = vector.shape_cast %189 : vector<1x8x256xf32> to vector<8x256xf32>
    %c7 = arith.constant 7 : index
    %c0_38 = arith.constant 0 : index
    %c0_39 = arith.constant 0 : index
    %191 = vector.load %arg0[%c7, %c0_38, %c0_39] : memref<8x8x256xf32, #tpu.memory_space<vmem>>, vector<1x8x256xf32>
    %192 = vector.shape_cast %191 : vector<1x8x256xf32> to vector<8x256xf32>
    %193 = vector.shape_cast %186 : vector<8x256xf32> to vector<8x1x256xf32>
    %194 = vector.extract_strided_slice %0 {offsets = [0, 0, 0], sizes = [1, 8, 1], strides = [1, 1, 1]} : vector<4x32x1xf32> to vector<1x8x1xf32>
    %195 = vector.shape_cast %194 : vector<1x8x1xf32> to vector<8x1xf32>
    %196 = vector.shape_cast %195 : vector<8x1xf32> to vector<1x8x1xf32>
    %197 = vector.broadcast %193 : vector<8x1x256xf32> to vector<8x8x256xf32>
    %198 = vector.broadcast %196 : vector<1x8x1xf32> to vector<8x8x256xf32>
    %199 = arith.mulf %197, %198 : vector<8x8x256xf32>
    %200 = vector.extract_strided_slice %1 {offsets = [0, 0], sizes = [8, 1], strides = [1, 1]} : vector<32x1xf32> to vector<8x1xf32>
    %201 = vector.shape_cast %200 : vector<8x1xf32> to vector<1x8x1xf32>
    %202 = vector.broadcast %201 : vector<1x8x1xf32> to vector<8x8x256xf32>
    %203 = arith.addf %199, %202 : vector<8x8x256xf32>
    %204 = vector.shape_cast %188 : vector<8x256xf32> to vector<8x1x256xf32>
    %205 = vector.extract_strided_slice %0 {offsets = [1, 0, 0], sizes = [1, 8, 1], strides = [1, 1, 1]} : vector<4x32x1xf32> to vector<1x8x1xf32>
    %206 = vector.shape_cast %205 : vector<1x8x1xf32> to vector<8x1xf32>
    %207 = vector.shape_cast %206 : vector<8x1xf32> to vector<1x8x1xf32>
    %208 = vector.broadcast %204 : vector<8x1x256xf32> to vector<8x8x256xf32>
    %209 = vector.broadcast %207 : vector<1x8x1xf32> to vector<8x8x256xf32>
    %210 = arith.mulf %208, %209 : vector<8x8x256xf32>
    %211 = arith.addf %203, %210 : vector<8x8x256xf32>
    %212 = vector.shape_cast %190 : vector<8x256xf32> to vector<8x1x256xf32>
    %213 = vector.extract_strided_slice %0 {offsets = [2, 0, 0], sizes = [1, 8, 1], strides = [1, 1, 1]} : vector<4x32x1xf32> to vector<1x8x1xf32>
    %214 = vector.shape_cast %213 : vector<1x8x1xf32> to vector<8x1xf32>
    %215 = vector.shape_cast %214 : vector<8x1xf32> to vector<1x8x1xf32>
    %216 = vector.broadcast %212 : vector<8x1x256xf32> to vector<8x8x256xf32>
    %217 = vector.broadcast %215 : vector<1x8x1xf32> to vector<8x8x256xf32>
    %218 = arith.mulf %216, %217 : vector<8x8x256xf32>
    %219 = arith.addf %211, %218 : vector<8x8x256xf32>
    %220 = vector.shape_cast %192 : vector<8x256xf32> to vector<8x1x256xf32>
    %221 = vector.extract_strided_slice %0 {offsets = [3, 0, 0], sizes = [1, 8, 1], strides = [1, 1, 1]} : vector<4x32x1xf32> to vector<1x8x1xf32>
    %222 = vector.shape_cast %221 : vector<1x8x1xf32> to vector<8x1xf32>
    %223 = vector.shape_cast %222 : vector<8x1xf32> to vector<1x8x1xf32>
    %224 = vector.broadcast %220 : vector<8x1x256xf32> to vector<8x8x256xf32>
    %225 = vector.broadcast %223 : vector<1x8x1xf32> to vector<8x8x256xf32>
    %226 = arith.mulf %224, %225 : vector<8x8x256xf32>
    %227 = arith.addf %219, %226 : vector<8x8x256xf32>
    %cst_40 = arith.constant 0.000000e+00 : f32
    %228 = vector.broadcast %cst_40 : f32 to vector<8x8x256xf32>
    %229 = arith.maximumf %227, %228 : vector<8x8x256xf32>
    %cst_41 = arith.constant dense<0.000000e+00> : vector<8x8xf32>
    %230 = vector.multi_reduction <add>, %229, %cst_41 [2] : vector<8x8x256xf32> to vector<8x8xf32>
    %cst_42 = arith.constant 2.560000e+02 : f32
    %231 = vector.broadcast %cst_42 : f32 to vector<8x8xf32>
    %232 = arith.divf %230, %231 : vector<8x8xf32>
    %233 = vector.extract_strided_slice %2 {offsets = [0, 0], sizes = [8, 128], strides = [1, 1]} : vector<32x128xf32> to vector<8x128xf32>
    %cst_43 = arith.constant dense<0.000000e+00> : vector<8x128xf32>
    %234 = tpu.matmul %232, %233, %cst_43 {dimension_numbers = #tpu.dot_dimension_numbers<[1], [0], [0], [1], [0, 0, 1, 1], [], []>} : vector<8x8xf32>, vector<8x128xf32>, vector<8x128xf32> -> vector<8x128xf32>
    %235 = vector.shape_cast %186 : vector<8x256xf32> to vector<8x1x256xf32>
    %236 = vector.extract_strided_slice %0 {offsets = [0, 8, 0], sizes = [1, 8, 1], strides = [1, 1, 1]} : vector<4x32x1xf32> to vector<1x8x1xf32>
    %237 = vector.shape_cast %236 : vector<1x8x1xf32> to vector<8x1xf32>
    %238 = vector.shape_cast %237 : vector<8x1xf32> to vector<1x8x1xf32>
    %239 = vector.broadcast %235 : vector<8x1x256xf32> to vector<8x8x256xf32>
    %240 = vector.broadcast %238 : vector<1x8x1xf32> to vector<8x8x256xf32>
    %241 = arith.mulf %239, %240 : vector<8x8x256xf32>
    %242 = vector.extract_strided_slice %1 {offsets = [8, 0], sizes = [8, 1], strides = [1, 1]} : vector<32x1xf32> to vector<8x1xf32>
    %243 = vector.shape_cast %242 : vector<8x1xf32> to vector<1x8x1xf32>
    %244 = vector.broadcast %243 : vector<1x8x1xf32> to vector<8x8x256xf32>
    %245 = arith.addf %241, %244 : vector<8x8x256xf32>
    %246 = vector.shape_cast %188 : vector<8x256xf32> to vector<8x1x256xf32>
    %247 = vector.extract_strided_slice %0 {offsets = [1, 8, 0], sizes = [1, 8, 1], strides = [1, 1, 1]} : vector<4x32x1xf32> to vector<1x8x1xf32>
    %248 = vector.shape_cast %247 : vector<1x8x1xf32> to vector<8x1xf32>
    %249 = vector.shape_cast %248 : vector<8x1xf32> to vector<1x8x1xf32>
    %250 = vector.broadcast %246 : vector<8x1x256xf32> to vector<8x8x256xf32>
    %251 = vector.broadcast %249 : vector<1x8x1xf32> to vector<8x8x256xf32>
    %252 = arith.mulf %250, %251 : vector<8x8x256xf32>
    %253 = arith.addf %245, %252 : vector<8x8x256xf32>
    %254 = vector.shape_cast %190 : vector<8x256xf32> to vector<8x1x256xf32>
    %255 = vector.extract_strided_slice %0 {offsets = [2, 8, 0], sizes = [1, 8, 1], strides = [1, 1, 1]} : vector<4x32x1xf32> to vector<1x8x1xf32>
    %256 = vector.shape_cast %255 : vector<1x8x1xf32> to vector<8x1xf32>
    %257 = vector.shape_cast %256 : vector<8x1xf32> to vector<1x8x1xf32>
    %258 = vector.broadcast %254 : vector<8x1x256xf32> to vector<8x8x256xf32>
    %259 = vector.broadcast %257 : vector<1x8x1xf32> to vector<8x8x256xf32>
    %260 = arith.mulf %258, %259 : vector<8x8x256xf32>
    %261 = arith.addf %253, %260 : vector<8x8x256xf32>
    %262 = vector.shape_cast %192 : vector<8x256xf32> to vector<8x1x256xf32>
    %263 = vector.extract_strided_slice %0 {offsets = [3, 8, 0], sizes = [1, 8, 1], strides = [1, 1, 1]} : vector<4x32x1xf32> to vector<1x8x1xf32>
    %264 = vector.shape_cast %263 : vector<1x8x1xf32> to vector<8x1xf32>
    %265 = vector.shape_cast %264 : vector<8x1xf32> to vector<1x8x1xf32>
    %266 = vector.broadcast %262 : vector<8x1x256xf32> to vector<8x8x256xf32>
    %267 = vector.broadcast %265 : vector<1x8x1xf32> to vector<8x8x256xf32>
    %268 = arith.mulf %266, %267 : vector<8x8x256xf32>
    %269 = arith.addf %261, %268 : vector<8x8x256xf32>
    %cst_44 = arith.constant 0.000000e+00 : f32
    %270 = vector.broadcast %cst_44 : f32 to vector<8x8x256xf32>
    %271 = arith.maximumf %269, %270 : vector<8x8x256xf32>
    %cst_45 = arith.constant dense<0.000000e+00> : vector<8x8xf32>
    %272 = vector.multi_reduction <add>, %271, %cst_45 [2] : vector<8x8x256xf32> to vector<8x8xf32>
    %cst_46 = arith.constant 2.560000e+02 : f32
    %273 = vector.broadcast %cst_46 : f32 to vector<8x8xf32>
    %274 = arith.divf %272, %273 : vector<8x8xf32>
    %275 = vector.extract_strided_slice %2 {offsets = [8, 0], sizes = [8, 128], strides = [1, 1]} : vector<32x128xf32> to vector<8x128xf32>
    %cst_47 = arith.constant dense<0.000000e+00> : vector<8x128xf32>
    %276 = tpu.matmul %274, %275, %cst_47 {dimension_numbers = #tpu.dot_dimension_numbers<[1], [0], [0], [1], [0, 0, 1, 1], [], []>} : vector<8x8xf32>, vector<8x128xf32>, vector<8x128xf32> -> vector<8x128xf32>
    %277 = arith.addf %234, %276 : vector<8x128xf32>
    %278 = vector.shape_cast %186 : vector<8x256xf32> to vector<8x1x256xf32>
    %279 = vector.extract_strided_slice %0 {offsets = [0, 16, 0], sizes = [1, 8, 1], strides = [1, 1, 1]} : vector<4x32x1xf32> to vector<1x8x1xf32>
    %280 = vector.shape_cast %279 : vector<1x8x1xf32> to vector<8x1xf32>
    %281 = vector.shape_cast %280 : vector<8x1xf32> to vector<1x8x1xf32>
    %282 = vector.broadcast %278 : vector<8x1x256xf32> to vector<8x8x256xf32>
    %283 = vector.broadcast %281 : vector<1x8x1xf32> to vector<8x8x256xf32>
    %284 = arith.mulf %282, %283 : vector<8x8x256xf32>
    %285 = vector.extract_strided_slice %1 {offsets = [16, 0], sizes = [8, 1], strides = [1, 1]} : vector<32x1xf32> to vector<8x1xf32>
    %286 = vector.shape_cast %285 : vector<8x1xf32> to vector<1x8x1xf32>
    %287 = vector.broadcast %286 : vector<1x8x1xf32> to vector<8x8x256xf32>
    %288 = arith.addf %284, %287 : vector<8x8x256xf32>
    %289 = vector.shape_cast %188 : vector<8x256xf32> to vector<8x1x256xf32>
    %290 = vector.extract_strided_slice %0 {offsets = [1, 16, 0], sizes = [1, 8, 1], strides = [1, 1, 1]} : vector<4x32x1xf32> to vector<1x8x1xf32>
    %291 = vector.shape_cast %290 : vector<1x8x1xf32> to vector<8x1xf32>
    %292 = vector.shape_cast %291 : vector<8x1xf32> to vector<1x8x1xf32>
    %293 = vector.broadcast %289 : vector<8x1x256xf32> to vector<8x8x256xf32>
    %294 = vector.broadcast %292 : vector<1x8x1xf32> to vector<8x8x256xf32>
    %295 = arith.mulf %293, %294 : vector<8x8x256xf32>
    %296 = arith.addf %288, %295 : vector<8x8x256xf32>
    %297 = vector.shape_cast %190 : vector<8x256xf32> to vector<8x1x256xf32>
    %298 = vector.extract_strided_slice %0 {offsets = [2, 16, 0], sizes = [1, 8, 1], strides = [1, 1, 1]} : vector<4x32x1xf32> to vector<1x8x1xf32>
    %299 = vector.shape_cast %298 : vector<1x8x1xf32> to vector<8x1xf32>
    %300 = vector.shape_cast %299 : vector<8x1xf32> to vector<1x8x1xf32>
    %301 = vector.broadcast %297 : vector<8x1x256xf32> to vector<8x8x256xf32>
    %302 = vector.broadcast %300 : vector<1x8x1xf32> to vector<8x8x256xf32>
    %303 = arith.mulf %301, %302 : vector<8x8x256xf32>
    %304 = arith.addf %296, %303 : vector<8x8x256xf32>
    %305 = vector.shape_cast %192 : vector<8x256xf32> to vector<8x1x256xf32>
    %306 = vector.extract_strided_slice %0 {offsets = [3, 16, 0], sizes = [1, 8, 1], strides = [1, 1, 1]} : vector<4x32x1xf32> to vector<1x8x1xf32>
    %307 = vector.shape_cast %306 : vector<1x8x1xf32> to vector<8x1xf32>
    %308 = vector.shape_cast %307 : vector<8x1xf32> to vector<1x8x1xf32>
    %309 = vector.broadcast %305 : vector<8x1x256xf32> to vector<8x8x256xf32>
    %310 = vector.broadcast %308 : vector<1x8x1xf32> to vector<8x8x256xf32>
    %311 = arith.mulf %309, %310 : vector<8x8x256xf32>
    %312 = arith.addf %304, %311 : vector<8x8x256xf32>
    %cst_48 = arith.constant 0.000000e+00 : f32
    %313 = vector.broadcast %cst_48 : f32 to vector<8x8x256xf32>
    %314 = arith.maximumf %312, %313 : vector<8x8x256xf32>
    %cst_49 = arith.constant dense<0.000000e+00> : vector<8x8xf32>
    %315 = vector.multi_reduction <add>, %314, %cst_49 [2] : vector<8x8x256xf32> to vector<8x8xf32>
    %cst_50 = arith.constant 2.560000e+02 : f32
    %316 = vector.broadcast %cst_50 : f32 to vector<8x8xf32>
    %317 = arith.divf %315, %316 : vector<8x8xf32>
    %318 = vector.extract_strided_slice %2 {offsets = [16, 0], sizes = [8, 128], strides = [1, 1]} : vector<32x128xf32> to vector<8x128xf32>
    %cst_51 = arith.constant dense<0.000000e+00> : vector<8x128xf32>
    %319 = tpu.matmul %317, %318, %cst_51 {dimension_numbers = #tpu.dot_dimension_numbers<[1], [0], [0], [1], [0, 0, 1, 1], [], []>} : vector<8x8xf32>, vector<8x128xf32>, vector<8x128xf32> -> vector<8x128xf32>
    %320 = arith.addf %277, %319 : vector<8x128xf32>
    %321 = vector.shape_cast %186 : vector<8x256xf32> to vector<8x1x256xf32>
    %322 = vector.extract_strided_slice %0 {offsets = [0, 24, 0], sizes = [1, 8, 1], strides = [1, 1, 1]} : vector<4x32x1xf32> to vector<1x8x1xf32>
    %323 = vector.shape_cast %322 : vector<1x8x1xf32> to vector<8x1xf32>
    %324 = vector.shape_cast %323 : vector<8x1xf32> to vector<1x8x1xf32>
    %325 = vector.broadcast %321 : vector<8x1x256xf32> to vector<8x8x256xf32>
    %326 = vector.broadcast %324 : vector<1x8x1xf32> to vector<8x8x256xf32>
    %327 = arith.mulf %325, %326 : vector<8x8x256xf32>
    %328 = vector.extract_strided_slice %1 {offsets = [24, 0], sizes = [8, 1], strides = [1, 1]} : vector<32x1xf32> to vector<8x1xf32>
    %329 = vector.shape_cast %328 : vector<8x1xf32> to vector<1x8x1xf32>
    %330 = vector.broadcast %329 : vector<1x8x1xf32> to vector<8x8x256xf32>
    %331 = arith.addf %327, %330 : vector<8x8x256xf32>
    %332 = vector.shape_cast %188 : vector<8x256xf32> to vector<8x1x256xf32>
    %333 = vector.extract_strided_slice %0 {offsets = [1, 24, 0], sizes = [1, 8, 1], strides = [1, 1, 1]} : vector<4x32x1xf32> to vector<1x8x1xf32>
    %334 = vector.shape_cast %333 : vector<1x8x1xf32> to vector<8x1xf32>
    %335 = vector.shape_cast %334 : vector<8x1xf32> to vector<1x8x1xf32>
    %336 = vector.broadcast %332 : vector<8x1x256xf32> to vector<8x8x256xf32>
    %337 = vector.broadcast %335 : vector<1x8x1xf32> to vector<8x8x256xf32>
    %338 = arith.mulf %336, %337 : vector<8x8x256xf32>
    %339 = arith.addf %331, %338 : vector<8x8x256xf32>
    %340 = vector.shape_cast %190 : vector<8x256xf32> to vector<8x1x256xf32>
    %341 = vector.extract_strided_slice %0 {offsets = [2, 24, 0], sizes = [1, 8, 1], strides = [1, 1, 1]} : vector<4x32x1xf32> to vector<1x8x1xf32>
    %342 = vector.shape_cast %341 : vector<1x8x1xf32> to vector<8x1xf32>
    %343 = vector.shape_cast %342 : vector<8x1xf32> to vector<1x8x1xf32>
    %344 = vector.broadcast %340 : vector<8x1x256xf32> to vector<8x8x256xf32>
    %345 = vector.broadcast %343 : vector<1x8x1xf32> to vector<8x8x256xf32>
    %346 = arith.mulf %344, %345 : vector<8x8x256xf32>
    %347 = arith.addf %339, %346 : vector<8x8x256xf32>
    %348 = vector.shape_cast %192 : vector<8x256xf32> to vector<8x1x256xf32>
    %349 = vector.extract_strided_slice %0 {offsets = [3, 24, 0], sizes = [1, 8, 1], strides = [1, 1, 1]} : vector<4x32x1xf32> to vector<1x8x1xf32>
    %350 = vector.shape_cast %349 : vector<1x8x1xf32> to vector<8x1xf32>
    %351 = vector.shape_cast %350 : vector<8x1xf32> to vector<1x8x1xf32>
    %352 = vector.broadcast %348 : vector<8x1x256xf32> to vector<8x8x256xf32>
    %353 = vector.broadcast %351 : vector<1x8x1xf32> to vector<8x8x256xf32>
    %354 = arith.mulf %352, %353 : vector<8x8x256xf32>
    %355 = arith.addf %347, %354 : vector<8x8x256xf32>
    %cst_52 = arith.constant 0.000000e+00 : f32
    %356 = vector.broadcast %cst_52 : f32 to vector<8x8x256xf32>
    %357 = arith.maximumf %355, %356 : vector<8x8x256xf32>
    %cst_53 = arith.constant dense<0.000000e+00> : vector<8x8xf32>
    %358 = vector.multi_reduction <add>, %357, %cst_53 [2] : vector<8x8x256xf32> to vector<8x8xf32>
    %cst_54 = arith.constant 2.560000e+02 : f32
    %359 = vector.broadcast %cst_54 : f32 to vector<8x8xf32>
    %360 = arith.divf %358, %359 : vector<8x8xf32>
    %361 = vector.extract_strided_slice %2 {offsets = [24, 0], sizes = [8, 128], strides = [1, 1]} : vector<32x128xf32> to vector<8x128xf32>
    %cst_55 = arith.constant dense<0.000000e+00> : vector<8x128xf32>
    %362 = tpu.matmul %360, %361, %cst_55 {dimension_numbers = #tpu.dot_dimension_numbers<[1], [0], [0], [1], [0, 0, 1, 1], [], []>} : vector<8x8xf32>, vector<8x128xf32>, vector<8x128xf32> -> vector<8x128xf32>
    %363 = arith.addf %320, %362 : vector<8x128xf32>
    %364 = vector.broadcast %3 : vector<1x128xf32> to vector<8x128xf32>
    %365 = arith.addf %363, %364 : vector<8x128xf32>
    %366 = tpu.iota {dimensions = array<i32: 1>} : vector<8x8x128xi32>
    %cst_56 = arith.constant 0.000000e+00 : f32
    %367 = vector.broadcast %cst_56 : f32 to vector<8x8x128xf32>
    %c0_i32 = arith.constant 0 : i32
    %368 = vector.broadcast %c0_i32 : i32 to vector<8x8x128xi32>
    %369 = arith.cmpi eq, %366, %368 : vector<8x8x128xi32>
    %370 = vector.shape_cast %184 : vector<8x128xf32> to vector<8x1x128xf32>
    %371 = vector.shape_cast %370 : vector<8x1x128xf32> to vector<8x1x128xf32>
    %372 = vector.broadcast %371 : vector<8x1x128xf32> to vector<8x8x128xf32>
    %373 = arith.select %369, %372, %367 : vector<8x8x128xi1>, vector<8x8x128xf32>
    %c1_i32 = arith.constant 1 : i32
    %374 = vector.broadcast %c1_i32 : i32 to vector<8x8x128xi32>
    %375 = arith.cmpi eq, %366, %374 : vector<8x8x128xi32>
    %376 = vector.shape_cast %365 : vector<8x128xf32> to vector<8x1x128xf32>
    %377 = vector.shape_cast %376 : vector<8x1x128xf32> to vector<8x1x128xf32>
    %378 = vector.broadcast %377 : vector<8x1x128xf32> to vector<8x8x128xf32>
    %379 = arith.select %375, %378, %373 : vector<8x8x128xi1>, vector<8x8x128xf32>
    %c0_57 = arith.constant 0 : index
    %c0_58 = arith.constant 0 : index
    %380 = vector.load %arg5[%c0_57, %c0_58] : memref<32x128xf32, #tpu.memory_space<vmem>>, vector<32x128xf32>
    %c0_59 = arith.constant 0 : index
    %c0_60 = arith.constant 0 : index
    %381 = vector.load %arg6[%c0_59, %c0_60] : memref<1x128xf32, #tpu.memory_space<vmem>>, vector<1x128xf32>
    %cst_61 = arith.constant 0.000000e+00 : f32
    %382 = vector.broadcast %cst_61 : f32 to vector<8x32xf32>
    %cst_62 = arith.constant 0.000000e+00 : f32
    %383 = vector.broadcast %cst_62 : f32 to vector<8x32xf32>
    %cst_63 = arith.constant dense<0.000000e+00> : vector<8x128xf32>
    %384 = tpu.matmul %382, %380, %cst_63 {dimension_numbers = #tpu.dot_dimension_numbers<[1], [0], [0], [1], [0, 0, 1, 1], [], []>} : vector<8x32xf32>, vector<32x128xf32>, vector<8x128xf32> -> vector<8x128xf32>
    %385 = vector.broadcast %381 : vector<1x128xf32> to vector<8x128xf32>
    %386 = arith.addf %384, %385 : vector<8x128xf32>
    %387 = vector.extract_strided_slice %379 {offsets = [0, 0, 0], sizes = [1, 8, 128], strides = [1, 1, 1]} : vector<8x8x128xf32> to vector<1x8x128xf32>
    %388 = vector.shape_cast %387 : vector<1x8x128xf32> to vector<8x128xf32>
    %389 = vector.extract_strided_slice %388 {offsets = [0, 0], sizes = [8, 32], strides = [1, 1]} : vector<8x128xf32> to vector<8x32xf32>
    %390 = vector.extract_strided_slice %386 {offsets = [0, 0], sizes = [8, 32], strides = [1, 1]} : vector<8x128xf32> to vector<8x32xf32>
    %391 = arith.addf %389, %390 : vector<8x32xf32>
    %392 = arith.negf %391 : vector<8x32xf32>
    %393 = math.exp %392 : vector<8x32xf32>
    %cst_64 = arith.constant 1.000000e+00 : f32
    %394 = vector.broadcast %cst_64 : f32 to vector<8x32xf32>
    %395 = arith.addf %394, %393 : vector<8x32xf32>
    %396 = arith.divf %394, %395 : vector<8x32xf32>
    %397 = vector.extract_strided_slice %388 {offsets = [0, 32], sizes = [8, 32], strides = [1, 1]} : vector<8x128xf32> to vector<8x32xf32>
    %398 = vector.extract_strided_slice %386 {offsets = [0, 32], sizes = [8, 32], strides = [1, 1]} : vector<8x128xf32> to vector<8x32xf32>
    %399 = arith.addf %397, %398 : vector<8x32xf32>
    %400 = arith.negf %399 : vector<8x32xf32>
    %401 = math.exp %400 : vector<8x32xf32>
    %cst_65 = arith.constant 1.000000e+00 : f32
    %402 = vector.broadcast %cst_65 : f32 to vector<8x32xf32>
    %403 = arith.addf %402, %401 : vector<8x32xf32>
    %404 = arith.divf %402, %403 : vector<8x32xf32>
    %405 = vector.extract_strided_slice %388 {offsets = [0, 64], sizes = [8, 32], strides = [1, 1]} : vector<8x128xf32> to vector<8x32xf32>
    %406 = vector.extract_strided_slice %386 {offsets = [0, 64], sizes = [8, 32], strides = [1, 1]} : vector<8x128xf32> to vector<8x32xf32>
    %407 = arith.mulf %396, %406 : vector<8x32xf32>
    %408 = arith.addf %405, %407 : vector<8x32xf32>
    %409 = math.tanh %408 : vector<8x32xf32>
    %cst_66 = arith.constant 1.000000e+00 : f32
    %410 = vector.broadcast %cst_66 : f32 to vector<8x32xf32>
    %411 = arith.subf %410, %404 : vector<8x32xf32>
    %412 = arith.mulf %411, %409 : vector<8x32xf32>
    %413 = arith.mulf %404, %382 : vector<8x32xf32>
    %414 = arith.addf %412, %413 : vector<8x32xf32>
    %c0_67 = arith.constant 0 : index
    %415 = memref.load %arg9[%c0_67] : memref<8xf32, #tpu.memory_space<smem>>
    %416 = vector.broadcast %415 : f32 to vector<8x32xf32>
    %417 = arith.mulf %416, %414 : vector<8x32xf32>
    %418 = arith.addf %383, %417 : vector<8x32xf32>
    %cst_68 = arith.constant dense<0.000000e+00> : vector<8x128xf32>
    %419 = tpu.matmul %414, %380, %cst_68 {dimension_numbers = #tpu.dot_dimension_numbers<[1], [0], [0], [1], [0, 0, 1, 1], [], []>} : vector<8x32xf32>, vector<32x128xf32>, vector<8x128xf32> -> vector<8x128xf32>
    %420 = vector.broadcast %381 : vector<1x128xf32> to vector<8x128xf32>
    %421 = arith.addf %419, %420 : vector<8x128xf32>
    %422 = vector.extract_strided_slice %379 {offsets = [1, 0, 0], sizes = [1, 8, 128], strides = [1, 1, 1]} : vector<8x8x128xf32> to vector<1x8x128xf32>
    %423 = vector.shape_cast %422 : vector<1x8x128xf32> to vector<8x128xf32>
    %424 = vector.extract_strided_slice %423 {offsets = [0, 0], sizes = [8, 32], strides = [1, 1]} : vector<8x128xf32> to vector<8x32xf32>
    %425 = vector.extract_strided_slice %421 {offsets = [0, 0], sizes = [8, 32], strides = [1, 1]} : vector<8x128xf32> to vector<8x32xf32>
    %426 = arith.addf %424, %425 : vector<8x32xf32>
    %427 = arith.negf %426 : vector<8x32xf32>
    %428 = math.exp %427 : vector<8x32xf32>
    %cst_69 = arith.constant 1.000000e+00 : f32
    %429 = vector.broadcast %cst_69 : f32 to vector<8x32xf32>
    %430 = arith.addf %429, %428 : vector<8x32xf32>
    %431 = arith.divf %429, %430 : vector<8x32xf32>
    %432 = vector.extract_strided_slice %423 {offsets = [0, 32], sizes = [8, 32], strides = [1, 1]} : vector<8x128xf32> to vector<8x32xf32>
    %433 = vector.extract_strided_slice %421 {offsets = [0, 32], sizes = [8, 32], strides = [1, 1]} : vector<8x128xf32> to vector<8x32xf32>
    %434 = arith.addf %432, %433 : vector<8x32xf32>
    %435 = arith.negf %434 : vector<8x32xf32>
    %436 = math.exp %435 : vector<8x32xf32>
    %cst_70 = arith.constant 1.000000e+00 : f32
    %437 = vector.broadcast %cst_70 : f32 to vector<8x32xf32>
    %438 = arith.addf %437, %436 : vector<8x32xf32>
    %439 = arith.divf %437, %438 : vector<8x32xf32>
    %440 = vector.extract_strided_slice %423 {offsets = [0, 64], sizes = [8, 32], strides = [1, 1]} : vector<8x128xf32> to vector<8x32xf32>
    %441 = vector.extract_strided_slice %421 {offsets = [0, 64], sizes = [8, 32], strides = [1, 1]} : vector<8x128xf32> to vector<8x32xf32>
    %442 = arith.mulf %431, %441 : vector<8x32xf32>
    %443 = arith.addf %440, %442 : vector<8x32xf32>
    %444 = math.tanh %443 : vector<8x32xf32>
    %cst_71 = arith.constant 1.000000e+00 : f32
    %445 = vector.broadcast %cst_71 : f32 to vector<8x32xf32>
    %446 = arith.subf %445, %439 : vector<8x32xf32>
    %447 = arith.mulf %446, %444 : vector<8x32xf32>
    %448 = arith.mulf %439, %414 : vector<8x32xf32>
    %449 = arith.addf %447, %448 : vector<8x32xf32>
    %c1_72 = arith.constant 1 : index
    %450 = memref.load %arg9[%c1_72] : memref<8xf32, #tpu.memory_space<smem>>
    %451 = vector.broadcast %450 : f32 to vector<8x32xf32>
    %452 = arith.mulf %451, %449 : vector<8x32xf32>
    %453 = arith.addf %418, %452 : vector<8x32xf32>
    %cst_73 = arith.constant dense<0.000000e+00> : vector<8x128xf32>
    %454 = tpu.matmul %449, %380, %cst_73 {dimension_numbers = #tpu.dot_dimension_numbers<[1], [0], [0], [1], [0, 0, 1, 1], [], []>} : vector<8x32xf32>, vector<32x128xf32>, vector<8x128xf32> -> vector<8x128xf32>
    %455 = vector.broadcast %381 : vector<1x128xf32> to vector<8x128xf32>
    %456 = arith.addf %454, %455 : vector<8x128xf32>
    %457 = vector.extract_strided_slice %379 {offsets = [2, 0, 0], sizes = [1, 8, 128], strides = [1, 1, 1]} : vector<8x8x128xf32> to vector<1x8x128xf32>
    %458 = vector.shape_cast %457 : vector<1x8x128xf32> to vector<8x128xf32>
    %459 = vector.extract_strided_slice %458 {offsets = [0, 0], sizes = [8, 32], strides = [1, 1]} : vector<8x128xf32> to vector<8x32xf32>
    %460 = vector.extract_strided_slice %456 {offsets = [0, 0], sizes = [8, 32], strides = [1, 1]} : vector<8x128xf32> to vector<8x32xf32>
    %461 = arith.addf %459, %460 : vector<8x32xf32>
    %462 = arith.negf %461 : vector<8x32xf32>
    %463 = math.exp %462 : vector<8x32xf32>
    %cst_74 = arith.constant 1.000000e+00 : f32
    %464 = vector.broadcast %cst_74 : f32 to vector<8x32xf32>
    %465 = arith.addf %464, %463 : vector<8x32xf32>
    %466 = arith.divf %464, %465 : vector<8x32xf32>
    %467 = vector.extract_strided_slice %458 {offsets = [0, 32], sizes = [8, 32], strides = [1, 1]} : vector<8x128xf32> to vector<8x32xf32>
    %468 = vector.extract_strided_slice %456 {offsets = [0, 32], sizes = [8, 32], strides = [1, 1]} : vector<8x128xf32> to vector<8x32xf32>
    %469 = arith.addf %467, %468 : vector<8x32xf32>
    %470 = arith.negf %469 : vector<8x32xf32>
    %471 = math.exp %470 : vector<8x32xf32>
    %cst_75 = arith.constant 1.000000e+00 : f32
    %472 = vector.broadcast %cst_75 : f32 to vector<8x32xf32>
    %473 = arith.addf %472, %471 : vector<8x32xf32>
    %474 = arith.divf %472, %473 : vector<8x32xf32>
    %475 = vector.extract_strided_slice %458 {offsets = [0, 64], sizes = [8, 32], strides = [1, 1]} : vector<8x128xf32> to vector<8x32xf32>
    %476 = vector.extract_strided_slice %456 {offsets = [0, 64], sizes = [8, 32], strides = [1, 1]} : vector<8x128xf32> to vector<8x32xf32>
    %477 = arith.mulf %466, %476 : vector<8x32xf32>
    %478 = arith.addf %475, %477 : vector<8x32xf32>
    %479 = math.tanh %478 : vector<8x32xf32>
    %cst_76 = arith.constant 1.000000e+00 : f32
    %480 = vector.broadcast %cst_76 : f32 to vector<8x32xf32>
    %481 = arith.subf %480, %474 : vector<8x32xf32>
    %482 = arith.mulf %481, %479 : vector<8x32xf32>
    %483 = arith.mulf %474, %449 : vector<8x32xf32>
    %484 = arith.addf %482, %483 : vector<8x32xf32>
    %c2_77 = arith.constant 2 : index
    %485 = memref.load %arg9[%c2_77] : memref<8xf32, #tpu.memory_space<smem>>
    %486 = vector.broadcast %485 : f32 to vector<8x32xf32>
    %487 = arith.mulf %486, %484 : vector<8x32xf32>
    %488 = arith.addf %453, %487 : vector<8x32xf32>
    %cst_78 = arith.constant dense<0.000000e+00> : vector<8x128xf32>
    %489 = tpu.matmul %484, %380, %cst_78 {dimension_numbers = #tpu.dot_dimension_numbers<[1], [0], [0], [1], [0, 0, 1, 1], [], []>} : vector<8x32xf32>, vector<32x128xf32>, vector<8x128xf32> -> vector<8x128xf32>
    %490 = vector.broadcast %381 : vector<1x128xf32> to vector<8x128xf32>
    %491 = arith.addf %489, %490 : vector<8x128xf32>
    %492 = vector.extract_strided_slice %379 {offsets = [3, 0, 0], sizes = [1, 8, 128], strides = [1, 1, 1]} : vector<8x8x128xf32> to vector<1x8x128xf32>
    %493 = vector.shape_cast %492 : vector<1x8x128xf32> to vector<8x128xf32>
    %494 = vector.extract_strided_slice %493 {offsets = [0, 0], sizes = [8, 32], strides = [1, 1]} : vector<8x128xf32> to vector<8x32xf32>
    %495 = vector.extract_strided_slice %491 {offsets = [0, 0], sizes = [8, 32], strides = [1, 1]} : vector<8x128xf32> to vector<8x32xf32>
    %496 = arith.addf %494, %495 : vector<8x32xf32>
    %497 = arith.negf %496 : vector<8x32xf32>
    %498 = math.exp %497 : vector<8x32xf32>
    %cst_79 = arith.constant 1.000000e+00 : f32
    %499 = vector.broadcast %cst_79 : f32 to vector<8x32xf32>
    %500 = arith.addf %499, %498 : vector<8x32xf32>
    %501 = arith.divf %499, %500 : vector<8x32xf32>
    %502 = vector.extract_strided_slice %493 {offsets = [0, 32], sizes = [8, 32], strides = [1, 1]} : vector<8x128xf32> to vector<8x32xf32>
    %503 = vector.extract_strided_slice %491 {offsets = [0, 32], sizes = [8, 32], strides = [1, 1]} : vector<8x128xf32> to vector<8x32xf32>
    %504 = arith.addf %502, %503 : vector<8x32xf32>
    %505 = arith.negf %504 : vector<8x32xf32>
    %506 = math.exp %505 : vector<8x32xf32>
    %cst_80 = arith.constant 1.000000e+00 : f32
    %507 = vector.broadcast %cst_80 : f32 to vector<8x32xf32>
    %508 = arith.addf %507, %506 : vector<8x32xf32>
    %509 = arith.divf %507, %508 : vector<8x32xf32>
    %510 = vector.extract_strided_slice %493 {offsets = [0, 64], sizes = [8, 32], strides = [1, 1]} : vector<8x128xf32> to vector<8x32xf32>
    %511 = vector.extract_strided_slice %491 {offsets = [0, 64], sizes = [8, 32], strides = [1, 1]} : vector<8x128xf32> to vector<8x32xf32>
    %512 = arith.mulf %501, %511 : vector<8x32xf32>
    %513 = arith.addf %510, %512 : vector<8x32xf32>
    %514 = math.tanh %513 : vector<8x32xf32>
    %cst_81 = arith.constant 1.000000e+00 : f32
    %515 = vector.broadcast %cst_81 : f32 to vector<8x32xf32>
    %516 = arith.subf %515, %509 : vector<8x32xf32>
    %517 = arith.mulf %516, %514 : vector<8x32xf32>
    %518 = arith.mulf %509, %484 : vector<8x32xf32>
    %519 = arith.addf %517, %518 : vector<8x32xf32>
    %c3_82 = arith.constant 3 : index
    %520 = memref.load %arg9[%c3_82] : memref<8xf32, #tpu.memory_space<smem>>
    %521 = vector.broadcast %520 : f32 to vector<8x32xf32>
    %522 = arith.mulf %521, %519 : vector<8x32xf32>
    %523 = arith.addf %488, %522 : vector<8x32xf32>
    %cst_83 = arith.constant dense<0.000000e+00> : vector<8x128xf32>
    %524 = tpu.matmul %519, %380, %cst_83 {dimension_numbers = #tpu.dot_dimension_numbers<[1], [0], [0], [1], [0, 0, 1, 1], [], []>} : vector<8x32xf32>, vector<32x128xf32>, vector<8x128xf32> -> vector<8x128xf32>
    %525 = vector.broadcast %381 : vector<1x128xf32> to vector<8x128xf32>
    %526 = arith.addf %524, %525 : vector<8x128xf32>
    %527 = vector.extract_strided_slice %379 {offsets = [4, 0, 0], sizes = [1, 8, 128], strides = [1, 1, 1]} : vector<8x8x128xf32> to vector<1x8x128xf32>
    %528 = vector.shape_cast %527 : vector<1x8x128xf32> to vector<8x128xf32>
    %529 = vector.extract_strided_slice %528 {offsets = [0, 0], sizes = [8, 32], strides = [1, 1]} : vector<8x128xf32> to vector<8x32xf32>
    %530 = vector.extract_strided_slice %526 {offsets = [0, 0], sizes = [8, 32], strides = [1, 1]} : vector<8x128xf32> to vector<8x32xf32>
    %531 = arith.addf %529, %530 : vector<8x32xf32>
    %532 = arith.negf %531 : vector<8x32xf32>
    %533 = math.exp %532 : vector<8x32xf32>
    %cst_84 = arith.constant 1.000000e+00 : f32
    %534 = vector.broadcast %cst_84 : f32 to vector<8x32xf32>
    %535 = arith.addf %534, %533 : vector<8x32xf32>
    %536 = arith.divf %534, %535 : vector<8x32xf32>
    %537 = vector.extract_strided_slice %528 {offsets = [0, 32], sizes = [8, 32], strides = [1, 1]} : vector<8x128xf32> to vector<8x32xf32>
    %538 = vector.extract_strided_slice %526 {offsets = [0, 32], sizes = [8, 32], strides = [1, 1]} : vector<8x128xf32> to vector<8x32xf32>
    %539 = arith.addf %537, %538 : vector<8x32xf32>
    %540 = arith.negf %539 : vector<8x32xf32>
    %541 = math.exp %540 : vector<8x32xf32>
    %cst_85 = arith.constant 1.000000e+00 : f32
    %542 = vector.broadcast %cst_85 : f32 to vector<8x32xf32>
    %543 = arith.addf %542, %541 : vector<8x32xf32>
    %544 = arith.divf %542, %543 : vector<8x32xf32>
    %545 = vector.extract_strided_slice %528 {offsets = [0, 64], sizes = [8, 32], strides = [1, 1]} : vector<8x128xf32> to vector<8x32xf32>
    %546 = vector.extract_strided_slice %526 {offsets = [0, 64], sizes = [8, 32], strides = [1, 1]} : vector<8x128xf32> to vector<8x32xf32>
    %547 = arith.mulf %536, %546 : vector<8x32xf32>
    %548 = arith.addf %545, %547 : vector<8x32xf32>
    %549 = math.tanh %548 : vector<8x32xf32>
    %cst_86 = arith.constant 1.000000e+00 : f32
    %550 = vector.broadcast %cst_86 : f32 to vector<8x32xf32>
    %551 = arith.subf %550, %544 : vector<8x32xf32>
    %552 = arith.mulf %551, %549 : vector<8x32xf32>
    %553 = arith.mulf %544, %519 : vector<8x32xf32>
    %554 = arith.addf %552, %553 : vector<8x32xf32>
    %c4_87 = arith.constant 4 : index
    %555 = memref.load %arg9[%c4_87] : memref<8xf32, #tpu.memory_space<smem>>
    %556 = vector.broadcast %555 : f32 to vector<8x32xf32>
    %557 = arith.mulf %556, %554 : vector<8x32xf32>
    %558 = arith.addf %523, %557 : vector<8x32xf32>
    %cst_88 = arith.constant dense<0.000000e+00> : vector<8x128xf32>
    %559 = tpu.matmul %554, %380, %cst_88 {dimension_numbers = #tpu.dot_dimension_numbers<[1], [0], [0], [1], [0, 0, 1, 1], [], []>} : vector<8x32xf32>, vector<32x128xf32>, vector<8x128xf32> -> vector<8x128xf32>
    %560 = vector.broadcast %381 : vector<1x128xf32> to vector<8x128xf32>
    %561 = arith.addf %559, %560 : vector<8x128xf32>
    %562 = vector.extract_strided_slice %379 {offsets = [5, 0, 0], sizes = [1, 8, 128], strides = [1, 1, 1]} : vector<8x8x128xf32> to vector<1x8x128xf32>
    %563 = vector.shape_cast %562 : vector<1x8x128xf32> to vector<8x128xf32>
    %564 = vector.extract_strided_slice %563 {offsets = [0, 0], sizes = [8, 32], strides = [1, 1]} : vector<8x128xf32> to vector<8x32xf32>
    %565 = vector.extract_strided_slice %561 {offsets = [0, 0], sizes = [8, 32], strides = [1, 1]} : vector<8x128xf32> to vector<8x32xf32>
    %566 = arith.addf %564, %565 : vector<8x32xf32>
    %567 = arith.negf %566 : vector<8x32xf32>
    %568 = math.exp %567 : vector<8x32xf32>
    %cst_89 = arith.constant 1.000000e+00 : f32
    %569 = vector.broadcast %cst_89 : f32 to vector<8x32xf32>
    %570 = arith.addf %569, %568 : vector<8x32xf32>
    %571 = arith.divf %569, %570 : vector<8x32xf32>
    %572 = vector.extract_strided_slice %563 {offsets = [0, 32], sizes = [8, 32], strides = [1, 1]} : vector<8x128xf32> to vector<8x32xf32>
    %573 = vector.extract_strided_slice %561 {offsets = [0, 32], sizes = [8, 32], strides = [1, 1]} : vector<8x128xf32> to vector<8x32xf32>
    %574 = arith.addf %572, %573 : vector<8x32xf32>
    %575 = arith.negf %574 : vector<8x32xf32>
    %576 = math.exp %575 : vector<8x32xf32>
    %cst_90 = arith.constant 1.000000e+00 : f32
    %577 = vector.broadcast %cst_90 : f32 to vector<8x32xf32>
    %578 = arith.addf %577, %576 : vector<8x32xf32>
    %579 = arith.divf %577, %578 : vector<8x32xf32>
    %580 = vector.extract_strided_slice %563 {offsets = [0, 64], sizes = [8, 32], strides = [1, 1]} : vector<8x128xf32> to vector<8x32xf32>
    %581 = vector.extract_strided_slice %561 {offsets = [0, 64], sizes = [8, 32], strides = [1, 1]} : vector<8x128xf32> to vector<8x32xf32>
    %582 = arith.mulf %571, %581 : vector<8x32xf32>
    %583 = arith.addf %580, %582 : vector<8x32xf32>
    %584 = math.tanh %583 : vector<8x32xf32>
    %cst_91 = arith.constant 1.000000e+00 : f32
    %585 = vector.broadcast %cst_91 : f32 to vector<8x32xf32>
    %586 = arith.subf %585, %579 : vector<8x32xf32>
    %587 = arith.mulf %586, %584 : vector<8x32xf32>
    %588 = arith.mulf %579, %554 : vector<8x32xf32>
    %589 = arith.addf %587, %588 : vector<8x32xf32>
    %c5_92 = arith.constant 5 : index
    %590 = memref.load %arg9[%c5_92] : memref<8xf32, #tpu.memory_space<smem>>
    %591 = vector.broadcast %590 : f32 to vector<8x32xf32>
    %592 = arith.mulf %591, %589 : vector<8x32xf32>
    %593 = arith.addf %558, %592 : vector<8x32xf32>
    %cst_93 = arith.constant dense<0.000000e+00> : vector<8x128xf32>
    %594 = tpu.matmul %589, %380, %cst_93 {dimension_numbers = #tpu.dot_dimension_numbers<[1], [0], [0], [1], [0, 0, 1, 1], [], []>} : vector<8x32xf32>, vector<32x128xf32>, vector<8x128xf32> -> vector<8x128xf32>
    %595 = vector.broadcast %381 : vector<1x128xf32> to vector<8x128xf32>
    %596 = arith.addf %594, %595 : vector<8x128xf32>
    %597 = vector.extract_strided_slice %379 {offsets = [6, 0, 0], sizes = [1, 8, 128], strides = [1, 1, 1]} : vector<8x8x128xf32> to vector<1x8x128xf32>
    %598 = vector.shape_cast %597 : vector<1x8x128xf32> to vector<8x128xf32>
    %599 = vector.extract_strided_slice %598 {offsets = [0, 0], sizes = [8, 32], strides = [1, 1]} : vector<8x128xf32> to vector<8x32xf32>
    %600 = vector.extract_strided_slice %596 {offsets = [0, 0], sizes = [8, 32], strides = [1, 1]} : vector<8x128xf32> to vector<8x32xf32>
    %601 = arith.addf %599, %600 : vector<8x32xf32>
    %602 = arith.negf %601 : vector<8x32xf32>
    %603 = math.exp %602 : vector<8x32xf32>
    %cst_94 = arith.constant 1.000000e+00 : f32
    %604 = vector.broadcast %cst_94 : f32 to vector<8x32xf32>
    %605 = arith.addf %604, %603 : vector<8x32xf32>
    %606 = arith.divf %604, %605 : vector<8x32xf32>
    %607 = vector.extract_strided_slice %598 {offsets = [0, 32], sizes = [8, 32], strides = [1, 1]} : vector<8x128xf32> to vector<8x32xf32>
    %608 = vector.extract_strided_slice %596 {offsets = [0, 32], sizes = [8, 32], strides = [1, 1]} : vector<8x128xf32> to vector<8x32xf32>
    %609 = arith.addf %607, %608 : vector<8x32xf32>
    %610 = arith.negf %609 : vector<8x32xf32>
    %611 = math.exp %610 : vector<8x32xf32>
    %cst_95 = arith.constant 1.000000e+00 : f32
    %612 = vector.broadcast %cst_95 : f32 to vector<8x32xf32>
    %613 = arith.addf %612, %611 : vector<8x32xf32>
    %614 = arith.divf %612, %613 : vector<8x32xf32>
    %615 = vector.extract_strided_slice %598 {offsets = [0, 64], sizes = [8, 32], strides = [1, 1]} : vector<8x128xf32> to vector<8x32xf32>
    %616 = vector.extract_strided_slice %596 {offsets = [0, 64], sizes = [8, 32], strides = [1, 1]} : vector<8x128xf32> to vector<8x32xf32>
    %617 = arith.mulf %606, %616 : vector<8x32xf32>
    %618 = arith.addf %615, %617 : vector<8x32xf32>
    %619 = math.tanh %618 : vector<8x32xf32>
    %cst_96 = arith.constant 1.000000e+00 : f32
    %620 = vector.broadcast %cst_96 : f32 to vector<8x32xf32>
    %621 = arith.subf %620, %614 : vector<8x32xf32>
    %622 = arith.mulf %621, %619 : vector<8x32xf32>
    %623 = arith.mulf %614, %589 : vector<8x32xf32>
    %624 = arith.addf %622, %623 : vector<8x32xf32>
    %c6_97 = arith.constant 6 : index
    %625 = memref.load %arg9[%c6_97] : memref<8xf32, #tpu.memory_space<smem>>
    %626 = vector.broadcast %625 : f32 to vector<8x32xf32>
    %627 = arith.mulf %626, %624 : vector<8x32xf32>
    %628 = arith.addf %593, %627 : vector<8x32xf32>
    %cst_98 = arith.constant dense<0.000000e+00> : vector<8x128xf32>
    %629 = tpu.matmul %624, %380, %cst_98 {dimension_numbers = #tpu.dot_dimension_numbers<[1], [0], [0], [1], [0, 0, 1, 1], [], []>} : vector<8x32xf32>, vector<32x128xf32>, vector<8x128xf32> -> vector<8x128xf32>
    %630 = vector.broadcast %381 : vector<1x128xf32> to vector<8x128xf32>
    %631 = arith.addf %629, %630 : vector<8x128xf32>
    %632 = vector.extract_strided_slice %379 {offsets = [7, 0, 0], sizes = [1, 8, 128], strides = [1, 1, 1]} : vector<8x8x128xf32> to vector<1x8x128xf32>
    %633 = vector.shape_cast %632 : vector<1x8x128xf32> to vector<8x128xf32>
    %634 = vector.extract_strided_slice %633 {offsets = [0, 0], sizes = [8, 32], strides = [1, 1]} : vector<8x128xf32> to vector<8x32xf32>
    %635 = vector.extract_strided_slice %631 {offsets = [0, 0], sizes = [8, 32], strides = [1, 1]} : vector<8x128xf32> to vector<8x32xf32>
    %636 = arith.addf %634, %635 : vector<8x32xf32>
    %637 = arith.negf %636 : vector<8x32xf32>
    %638 = math.exp %637 : vector<8x32xf32>
    %cst_99 = arith.constant 1.000000e+00 : f32
    %639 = vector.broadcast %cst_99 : f32 to vector<8x32xf32>
    %640 = arith.addf %639, %638 : vector<8x32xf32>
    %641 = arith.divf %639, %640 : vector<8x32xf32>
    %642 = vector.extract_strided_slice %633 {offsets = [0, 32], sizes = [8, 32], strides = [1, 1]} : vector<8x128xf32> to vector<8x32xf32>
    %643 = vector.extract_strided_slice %631 {offsets = [0, 32], sizes = [8, 32], strides = [1, 1]} : vector<8x128xf32> to vector<8x32xf32>
    %644 = arith.addf %642, %643 : vector<8x32xf32>
    %645 = arith.negf %644 : vector<8x32xf32>
    %646 = math.exp %645 : vector<8x32xf32>
    %cst_100 = arith.constant 1.000000e+00 : f32
    %647 = vector.broadcast %cst_100 : f32 to vector<8x32xf32>
    %648 = arith.addf %647, %646 : vector<8x32xf32>
    %649 = arith.divf %647, %648 : vector<8x32xf32>
    %650 = vector.extract_strided_slice %633 {offsets = [0, 64], sizes = [8, 32], strides = [1, 1]} : vector<8x128xf32> to vector<8x32xf32>
    %651 = vector.extract_strided_slice %631 {offsets = [0, 64], sizes = [8, 32], strides = [1, 1]} : vector<8x128xf32> to vector<8x32xf32>
    %652 = arith.mulf %641, %651 : vector<8x32xf32>
    %653 = arith.addf %650, %652 : vector<8x32xf32>
    %654 = math.tanh %653 : vector<8x32xf32>
    %cst_101 = arith.constant 1.000000e+00 : f32
    %655 = vector.broadcast %cst_101 : f32 to vector<8x32xf32>
    %656 = arith.subf %655, %649 : vector<8x32xf32>
    %657 = arith.mulf %656, %654 : vector<8x32xf32>
    %658 = arith.mulf %649, %624 : vector<8x32xf32>
    %659 = arith.addf %657, %658 : vector<8x32xf32>
    %c7_102 = arith.constant 7 : index
    %660 = memref.load %arg9[%c7_102] : memref<8xf32, #tpu.memory_space<smem>>
    %661 = vector.broadcast %660 : f32 to vector<8x32xf32>
    %662 = arith.mulf %661, %659 : vector<8x32xf32>
    %663 = arith.addf %628, %662 : vector<8x32xf32>
    %c0_103 = arith.constant 0 : index
    %c0_104 = arith.constant 0 : index
    %664 = vector.load %arg7[%c0_103, %c0_104] : memref<32x128xf32, #tpu.memory_space<vmem>>, vector<32x128xf32>
    %cst_105 = arith.constant dense<0.000000e+00> : vector<8x128xf32>
    %665 = tpu.matmul %663, %664, %cst_105 {dimension_numbers = #tpu.dot_dimension_numbers<[1], [0], [0], [1], [0, 0, 1, 1], [], []>} : vector<8x32xf32>, vector<32x128xf32>, vector<8x128xf32> -> vector<8x128xf32>
    %c0_106 = arith.constant 0 : index
    %c0_107 = arith.constant 0 : index
    %666 = vector.load %arg8[%c0_106, %c0_107] : memref<1x128xf32, #tpu.memory_space<vmem>>, vector<1x128xf32>
    %667 = vector.broadcast %666 : vector<1x128xf32> to vector<8x128xf32>
    %668 = arith.addf %665, %667 : vector<8x128xf32>
    %c0_108 = arith.constant 0 : index
    %c0_109 = arith.constant 0 : index
    %669 = vector.load %arg10[%c0_108, %c0_109] : memref<8x128xf32, #tpu.memory_space<vmem>>, vector<8x128xf32>
    tpu.vector_store %arg10[%c0_108, %c0_109], %668 {strides = array<i32>} : memref<8x128xf32, #tpu.memory_space<vmem>>, vector<8x128xf32>,
    return
  }
}

</mosaic_0001>

<llo_original>
// kernel: net_special_rnn_forward.1
$region0: #{net_special_rnn_forward.1}
  #allocation0 [shape = 'u32[]', space=smem, size = 0x4, offset = 0x4, fixed_abs, tag = 'smem constant byte address 0x4 - core index']
  #allocation1 [shape = 'u32[144,128]{1,0:T(1,128)}', space=vmem, size = 0x12000, scoped, tag = 'internal scratch']
  %s0 = inlined_call_operand.vmem [shape: f32[8,8,256], index: 0, kind: input, shape index: {}]
  %s1 = inlined_call_operand.vmem [shape: f32[4,32,1], index: 1, kind: input, shape index: {}]
  %s2 = inlined_call_operand.vmem [shape: f32[32,1], index: 2, kind: input, shape index: {}]
  %s3 = inlined_call_operand.vmem [shape: f32[32,128], index: 3, kind: input, shape index: {}]
  %s4 = inlined_call_operand.vmem [shape: f32[1,128], index: 4, kind: input, shape index: {}]
  %s5 = inlined_call_operand.vmem [shape: f32[32,128], index: 5, kind: input, shape index: {}]
  %s6 = inlined_call_operand.vmem [shape: f32[1,128], index: 6, kind: input, shape index: {}]
  %s7 = inlined_call_operand.vmem [shape: f32[32,128], index: 7, kind: input, shape index: {}]
  %s8 = inlined_call_operand.vmem [shape: f32[1,128], index: 8, kind: input, shape index: {}]
  %s9 = inlined_call_operand.vmem [shape: f32[8], index: 9, kind: input, shape index: {}]
  %s10 = inlined_call_operand.vmem [shape: f32[8,128], index: 10, kind: output, shape index: {}]
  %s11 = sld [smem:[#allocation0]]
  $region54: #{net_special_rnn_forward.1} parent=0
    _
  %s13 = ssub.s32 1, %s11
  %s14 = scalar_select 0, %s13, %s11
  $region1: #{net_special_rnn_forward.1} parent=0
    #allocation2 [shape = 'u8[512]{0}', space=smem, size = 0x200, scoped, tag = 'input window, operand 9, single buffered']
    #allocation3 [shape = 's32[1]{0}', space=sflag, size = 0x4, scoped, tag = 'scoped memory for net_special_rnn_forward.1']
    %15 = vsyncpa [#allocation3], 0
    // Predicated region
    $region2: #{net_special_rnn_forward.1} parent=1 // pred_check
      _
    $region3: #{net_special_rnn_forward.1} parent=1 // pred_check_branch
      %17 = sbr.rel (0) target = $region5
    $region4: #{net_special_rnn_forward.1} parent=1 // pred_region
      _
    $region5: #{net_special_rnn_forward.1} parent=1 // pred_fallthru
      _
    // Predicated region
    $region6: #{net_special_rnn_forward.1} parent=1 // pred_check
      _
    $region7: #{net_special_rnn_forward.1} parent=1 // pred_check_branch
      %19 = sbr.rel (0) target = $region9
    $region8: #{net_special_rnn_forward.1} parent=1 // pred_region
      _
    $region9: #{net_special_rnn_forward.1} parent=1 // pred_fallthru
      _
    // Predicated region
    $region10: #{net_special_rnn_forward.1} parent=1 // pred_check
      _
    $region11: #{net_special_rnn_forward.1} parent=1 // pred_check_branch
      %21 = sbr.rel (0) target = $region13
    $region12: #{net_special_rnn_forward.1} parent=1 // pred_region
      _
    $region13: #{net_special_rnn_forward.1} parent=1 // pred_fallthru
      _
    // Predicated region
    $region14: #{net_special_rnn_forward.1} parent=1 // pred_check
      _
    $region15: #{net_special_rnn_forward.1} parent=1 // pred_check_branch
      %23 = sbr.rel (0) target = $region17
    $region16: #{net_special_rnn_forward.1} parent=1 // pred_region
      _
    $region17: #{net_special_rnn_forward.1} parent=1 // pred_fallthru
      _
    // Predicated region
    $region18: #{net_special_rnn_forward.1} parent=1 // pred_check
      _
    $region19: #{net_special_rnn_forward.1} parent=1 // pred_check_branch
      %25 = sbr.rel (0) target = $region21
    $region20: #{net_special_rnn_forward.1} parent=1 // pred_region
      _
    $region21: #{net_special_rnn_forward.1} parent=1 // pred_fallthru
      _
    // Predicated region
    $region22: #{net_special_rnn_forward.1} parent=1 // pred_check
      _
    $region23: #{net_special_rnn_forward.1} parent=1 // pred_check_branch
      %27 = sbr.rel (0) target = $region25
    $region24: #{net_special_rnn_forward.1} parent=1 // pred_region
      _
    $region25: #{net_special_rnn_forward.1} parent=1 // pred_fallthru
      _
    // Predicated region
    $region26: #{net_special_rnn_forward.1} parent=1 // pred_check
      _
    $region27: #{net_special_rnn_forward.1} parent=1 // pred_check_branch
      %29 = sbr.rel (0) target = $region29
    $region28: #{net_special_rnn_forward.1} parent=1 // pred_region
      _
    $region29: #{net_special_rnn_forward.1} parent=1 // pred_fallthru
      _
    // Predicated region
    $region30: #{net_special_rnn_forward.1} parent=1 // pred_check
      _
    $region31: #{net_special_rnn_forward.1} parent=1 // pred_check_branch
      %31 = sbr.rel (0) target = $region33
    $region32: #{net_special_rnn_forward.1} parent=1 // pred_region
      _
    $region33: #{net_special_rnn_forward.1} parent=1 // pred_fallthru
      _
    // Predicated region
    $region34: #{net_special_rnn_forward.1} parent=1 // pred_check
      _
    $region35: #{net_special_rnn_forward.1} parent=1 // pred_check_branch
      %33 = sbr.rel (0) target = $region37
    $region36: #{net_special_rnn_forward.1} parent=1 // pred_region
      _
    $region37: #{net_special_rnn_forward.1} parent=1 // pred_fallthru
      _
    // Predicated region
    $region38: #{net_special_rnn_forward.1} parent=1 // pred_check
      _
    $region39: #{net_special_rnn_forward.1} parent=1 // pred_check_branch
      %35 = sbr.rel (0) target = $region41
    $region40: #{net_special_rnn_forward.1} parent=1 // pred_region
      %s37 = ssub.s32 16, 16
      %38 = vsyncadd [#allocation3], %s37
      %s40 = sshll.u32 %s9, 4
      %s41 = int_to_ptr.vmem [resolvable:$true] %s40
      %43 = dma.vmem_to_smem %s41, 16, [#allocation2], [#allocation3]
    $region41: #{net_special_rnn_forward.1} parent=1 // pred_fallthru
      _
    // Predicated region
    $region42: #{net_special_rnn_forward.1} parent=1 // pred_check
      _
    $region43: #{net_special_rnn_forward.1} parent=1 // pred_check_branch
      %45 = sbr.rel (0) target = $region45
    $region44: #{net_special_rnn_forward.1} parent=1 // pred_region
      %46 = dma.done [#allocation3], 16
    $region45: #{net_special_rnn_forward.1} parent=1 // pred_fallthru
      _
    %47 = sfence
    %v48 = vld [vmem:[%s1] sm:$0xff]
    %v49 = vld [vmem:[%s1 + $0x8] sm:$0xff]
    %v50 = vld [vmem:[%s1 + $0x10] sm:$0xff]
    %v51 = vld [vmem:[%s1 + $0x18] sm:$0xff]
    %v52 = vld [vmem:[%s1 + $0x20] sm:$0xff]
    %v53 = vld [vmem:[%s1 + $0x28] sm:$0xff]
    %v54 = vld [vmem:[%s1 + $0x30] sm:$0xff]
    %v55 = vld [vmem:[%s1 + $0x38] sm:$0xff]
    %v56 = vld [vmem:[%s1 + $0x40] sm:$0xff]
    %v57 = vld [vmem:[%s1 + $0x48] sm:$0xff]
    %v58 = vld [vmem:[%s1 + $0x50] sm:$0xff]
    %v59 = vld [vmem:[%s1 + $0x58] sm:$0xff]
    %v60 = vld [vmem:[%s1 + $0x60] sm:$0xff]
    %v61 = vld [vmem:[%s1 + $0x68] sm:$0xff]
    %v62 = vld [vmem:[%s1 + $0x70] sm:$0xff]
    %v63 = vld [vmem:[%s1 + $0x78] sm:$0xff]
    %v64 = vld [vmem:[%s2] sm:$0xff]
    %v65 = vld [vmem:[%s2 + $0x8] sm:$0xff]
    %v66 = vld [vmem:[%s2 + $0x10] sm:$0xff]
    %v67 = vld [vmem:[%s2 + $0x18] sm:$0xff]
    %v68 = vld [vmem:[%s3] sm:$0xff]
    %v69 = vld [vmem:[%s3 + $0x8] sm:$0xff]
    %v70 = vld [vmem:[%s3 + $0x10] sm:$0xff]
    %v71 = vld [vmem:[%s3 + $0x18] sm:$0xff]
    %v72 = vld [vmem:[%s4] sm:$0x1]
    %v73 = vld [vmem:[%s0] sm:$0xff]
    %v74 = vld [vmem:[%s0 + $0x8] sm:$0xff]
    %s75 = scalar_lea.vmem %s0, 16
    %v76 = vld [vmem:[%s75] sm:$0xff]
    %v77 = vld [vmem:[%s75 + $0x8] sm:$0xff]
    %s78 = scalar_lea.vmem %s0, 32
    %v79 = vld [vmem:[%s78] sm:$0xff]
    %v80 = vld [vmem:[%s78 + $0x8] sm:$0xff]
    %s81 = scalar_lea.vmem %s0, 48
    %v82 = vld [vmem:[%s81] sm:$0xff]
    %v83 = vld [vmem:[%s81 + $0x8] sm:$0xff]
    %v86 = vcombine.low %v73, %v74
    %v87 = vcombine.high %v73, %v74
    %v89 = vunpack.c.l.s4 1966171168
    %v90 = vunpack.c.0.s8 %v89
    %v91 = vlaneseq
    %v92 = vshrl.u32 %v91, 7
    %v93 = vsub.s32 %v90, %v92
    %v94 = vrot.slane %v86, %v93
    %v96 = vunpack.c.l.s4 1966171168
    %v97 = vunpack.c.0.s8 %v96
    %v98 = vlaneseq
    %v99 = vshrl.u32 %v98, 7
    %v100 = vsub.s32 %v97, %v99
    %v101 = vrot.slane %v87, %v100
    %v102 = vcombine.high %v94, %v94
    %v103 = vcombine.high %v101, %v101
    %v105 = vunpack.c.l.s4 1966171168
    %v106 = vunpack.c.0.s8 %v105
    %v107 = vlaneseq
    %v108 = vshrl.u32 %v107, 7
    %v109 = vsub.s32 %v106, %v108
    %v110 = vrot.slane %v94, %v109
    %v112 = vunpack.c.l.s4 1966171168
    %v113 = vunpack.c.0.s8 %v112
    %v114 = vlaneseq
    %v115 = vshrl.u32 %v114, 7
    %v116 = vsub.s32 %v113, %v115
    %v117 = vrot.slane %v101, %v116
    %v119 = vunpack.c.l.s4 1966171168
    %v120 = vunpack.c.0.s8 %v119
    %v121 = vlaneseq
    %v122 = vshrl.u32 %v121, 7
    %v123 = vsub.s32 %v120, %v122
    %v124 = vrot.slane %v102, %v123
    %v126 = vunpack.c.l.s4 1966171168
    %v127 = vunpack.c.0.s8 %v126
    %v128 = vlaneseq
    %v129 = vshrl.u32 %v128, 7
    %v130 = vsub.s32 %v127, %v129
    %v131 = vrot.slane %v103, %v130
    %v132 = vcombine.high %v110, %v110
    %v133 = vcombine.high %v117, %v117
    %v134 = vcombine.high %v124, %v124
    %v135 = vcombine.high %v131, %v131
    %v136 = vlaneseq
    %v137 = vshrl.u32 %v136, 7
    %v138 = vsub.s32 0, %v137
    %v139 = vrot.slane %v110, %v138
    %v140 = vlaneseq
    %v141 = vshrl.u32 %v140, 7
    %v142 = vsub.s32 1, %v141
    %v143 = vrot.slane %v110, %v142
    %v144 = vlaneseq
    %v145 = vshrl.u32 %v144, 7
    %v146 = vsub.s32 0, %v145
    %v147 = vrot.slane %v124, %v146
    %v148 = vlaneseq
    %v149 = vshrl.u32 %v148, 7
    %v150 = vsub.s32 1, %v149
    %v151 = vrot.slane %v124, %v150
    %v152 = vlaneseq
    %v153 = vshrl.u32 %v152, 7
    %v154 = vsub.s32 0, %v153
    %v155 = vrot.slane %v132, %v154
    %v156 = vlaneseq
    %v157 = vshrl.u32 %v156, 7
    %v158 = vsub.s32 1, %v157
    %v159 = vrot.slane %v132, %v158
    %v160 = vlaneseq
    %v161 = vshrl.u32 %v160, 7
    %v162 = vsub.s32 0, %v161
    %v163 = vrot.slane %v134, %v162
    %v164 = vlaneseq
    %v165 = vshrl.u32 %v164, 7
    %v166 = vsub.s32 1, %v165
    %v167 = vrot.slane %v134, %v166
    %v168 = vlaneseq
    %v169 = vshrl.u32 %v168, 7
    %v170 = vsub.s32 0, %v169
    %v171 = vrot.slane %v117, %v170
    %v172 = vlaneseq
    %v173 = vshrl.u32 %v172, 7
    %v174 = vsub.s32 1, %v173
    %v175 = vrot.slane %v117, %v174
    %v176 = vlaneseq
    %v177 = vshrl.u32 %v176, 7
    %v178 = vsub.s32 0, %v177
    %v179 = vrot.slane %v131, %v178
    %v180 = vlaneseq
    %v181 = vshrl.u32 %v180, 7
    %v182 = vsub.s32 1, %v181
    %v183 = vrot.slane %v131, %v182
    %v184 = vlaneseq
    %v185 = vshrl.u32 %v184, 7
    %v186 = vsub.s32 0, %v185
    %v187 = vrot.slane %v133, %v186
    %v188 = vlaneseq
    %v189 = vshrl.u32 %v188, 7
    %v190 = vsub.s32 1, %v189
    %v191 = vrot.slane %v133, %v190
    %v192 = vlaneseq
    %v193 = vshrl.u32 %v192, 7
    %v194 = vsub.s32 0, %v193
    %v195 = vrot.slane %v135, %v194
    %v196 = vlaneseq
    %v197 = vshrl.u32 %v196, 7
    %v198 = vsub.s32 1, %v197
    %v199 = vrot.slane %v135, %v198
    %217 = vset.pattern.permute.xlu0 0
    %218 = vperm.xlu0 %217, %v48
    %v219 = vpop.permute.xlu0 %218
    %v221 = vmul.f32 %v139, %v219
    %v222 = vmul.f32 %v143, %v219
    %v223 = vmul.f32 %v147, %v219
    %v224 = vmul.f32 %v151, %v219
    %v225 = vmul.f32 %v155, %v219
    %v226 = vmul.f32 %v159, %v219
    %v227 = vmul.f32 %v163, %v219
    %v228 = vmul.f32 %v167, %v219
    %v229 = vmul.f32 %v171, %v219
    %v230 = vmul.f32 %v175, %v219
    %v231 = vmul.f32 %v179, %v219
    %v232 = vmul.f32 %v183, %v219
    %v233 = vmul.f32 %v187, %v219
    %v234 = vmul.f32 %v191, %v219
    %v235 = vmul.f32 %v195, %v219
    %v236 = vmul.f32 %v199, %v219
    %238 = vset.pattern.permute.xlu0 0
    %239 = vperm.xlu0 %238, %v64
    %v240 = vpop.permute.xlu0 %239
    %v242 = vadd.f32 %v221, %v240
    %v243 = vadd.f32 %v222, %v240
    %v244 = vadd.f32 %v223, %v240
    %v245 = vadd.f32 %v224, %v240
    %v246 = vadd.f32 %v225, %v240
    %v247 = vadd.f32 %v226, %v240
    %v248 = vadd.f32 %v227, %v240
    %v249 = vadd.f32 %v228, %v240
    %v250 = vadd.f32 %v229, %v240
    %v251 = vadd.f32 %v230, %v240
    %v252 = vadd.f32 %v231, %v240
    %v253 = vadd.f32 %v232, %v240
    %v254 = vadd.f32 %v233, %v240
    %v255 = vadd.f32 %v234, %v240
    %v256 = vadd.f32 %v235, %v240
    %v257 = vadd.f32 %v236, %v240
    %v260 = vcombine.low %v76, %v77
    %v261 = vcombine.high %v76, %v77
    %v263 = vunpack.c.l.s4 1966171168
    %v264 = vunpack.c.0.s8 %v263
    %v265 = vlaneseq
    %v266 = vshrl.u32 %v265, 7
    %v267 = vsub.s32 %v264, %v266
    %v268 = vrot.slane %v260, %v267
    %v270 = vunpack.c.l.s4 1966171168
    %v271 = vunpack.c.0.s8 %v270
    %v272 = vlaneseq
    %v273 = vshrl.u32 %v272, 7
    %v274 = vsub.s32 %v271, %v273
    %v275 = vrot.slane %v261, %v274
    %v276 = vcombine.high %v268, %v268
    %v277 = vcombine.high %v275, %v275
    %v279 = vunpack.c.l.s4 1966171168
    %v280 = vunpack.c.0.s8 %v279
    %v281 = vlaneseq
    %v282 = vshrl.u32 %v281, 7
    %v283 = vsub.s32 %v280, %v282
    %v284 = vrot.slane %v268, %v283
    %v286 = vunpack.c.l.s4 1966171168
    %v287 = vunpack.c.0.s8 %v286
    %v288 = vlaneseq
    %v289 = vshrl.u32 %v288, 7
    %v290 = vsub.s32 %v287, %v289
    %v291 = vrot.slane %v275, %v290
    %v293 = vunpack.c.l.s4 1966171168
    %v294 = vunpack.c.0.s8 %v293
    %v295 = vlaneseq
    %v296 = vshrl.u32 %v295, 7
    %v297 = vsub.s32 %v294, %v296
    %v298 = vrot.slane %v276, %v297
    %v300 = vunpack.c.l.s4 1966171168
    %v301 = vunpack.c.0.s8 %v300
    %v302 = vlaneseq
    %v303 = vshrl.u32 %v302, 7
    %v304 = vsub.s32 %v301, %v303
    %v305 = vrot.slane %v277, %v304
    %v306 = vcombine.high %v284, %v284
    %v307 = vcombine.high %v291, %v291
    %v308 = vcombine.high %v298, %v298
    %v309 = vcombine.high %v305, %v305
    %v310 = vlaneseq
    %v311 = vshrl.u32 %v310, 7
    %v312 = vsub.s32 0, %v311
    %v313 = vrot.slane %v284, %v312
    %v314 = vlaneseq
    %v315 = vshrl.u32 %v314, 7
    %v316 = vsub.s32 1, %v315
    %v317 = vrot.slane %v284, %v316
    %v318 = vlaneseq
    %v319 = vshrl.u32 %v318, 7
    %v320 = vsub.s32 0, %v319
    %v321 = vrot.slane %v298, %v320
    %v322 = vlaneseq
    %v323 = vshrl.u32 %v322, 7
    %v324 = vsub.s32 1, %v323
    %v325 = vrot.slane %v298, %v324
    %v326 = vlaneseq
    %v327 = vshrl.u32 %v326, 7
    %v328 = vsub.s32 0, %v327
    %v329 = vrot.slane %v306, %v328
    %v330 = vlaneseq
    %v331 = vshrl.u32 %v330, 7
    %v332 = vsub.s32 1, %v331
    %v333 = vrot.slane %v306, %v332
    %v334 = vlaneseq
    %v335 = vshrl.u32 %v334, 7
    %v336 = vsub.s32 0, %v335
    %v337 = vrot.slane %v308, %v336
    %v338 = vlaneseq
    %v339 = vshrl.u32 %v338, 7
    %v340 = vsub.s32 1, %v339
    %v341 = vrot.slane %v308, %v340
    %v342 = vlaneseq
    %v343 = vshrl.u32 %v342, 7
    %v344 = vsub.s32 0, %v343
    %v345 = vrot.slane %v291, %v344
    %v346 = vlaneseq
    %v347 = vshrl.u32 %v346, 7
    %v348 = vsub.s32 1, %v347
    %v349 = vrot.slane %v291, %v348
    %v350 = vlaneseq
    %v351 = vshrl.u32 %v350, 7
    %v352 = vsub.s32 0, %v351
    %v353 = vrot.slane %v305, %v352
    %v354 = vlaneseq
    %v355 = vshrl.u32 %v354, 7
    %v356 = vsub.s32 1, %v355
    %v357 = vrot.slane %v305, %v356
    %v358 = vlaneseq
    %v359 = vshrl.u32 %v358, 7
    %v360 = vsub.s32 0, %v359
    %v361 = vrot.slane %v307, %v360
    %v362 = vlaneseq
    %v363 = vshrl.u32 %v362, 7
    %v364 = vsub.s32 1, %v363
    %v365 = vrot.slane %v307, %v364
    %v366 = vlaneseq
    %v367 = vshrl.u32 %v366, 7
    %v368 = vsub.s32 0, %v367
    %v369 = vrot.slane %v309, %v368
    %v370 = vlaneseq
    %v371 = vshrl.u32 %v370, 7
    %v372 = vsub.s32 1, %v371
    %v373 = vrot.slane %v309, %v372
    %391 = vset.pattern.permute.xlu0 0
    %392 = vperm.xlu0 %391, %v52
    %v393 = vpop.permute.xlu0 %392
    %v395 = vmul.f32 %v313, %v393
    %v396 = vmul.f32 %v317, %v393
    %v397 = vmul.f32 %v321, %v393
    %v398 = vmul.f32 %v325, %v393
    %v399 = vmul.f32 %v329, %v393
    %v400 = vmul.f32 %v333, %v393
    %v401 = vmul.f32 %v337, %v393
    %v402 = vmul.f32 %v341, %v393
    %v403 = vmul.f32 %v345, %v393
    %v404 = vmul.f32 %v349, %v393
    %v405 = vmul.f32 %v353, %v393
    %v406 = vmul.f32 %v357, %v393
    %v407 = vmul.f32 %v361, %v393
    %v408 = vmul.f32 %v365, %v393
    %v409 = vmul.f32 %v369, %v393
    %v410 = vmul.f32 %v373, %v393
    %v411 = vadd.f32 %v242, %v395
    %v412 = vadd.f32 %v243, %v396
    %v413 = vadd.f32 %v244, %v397
    %v414 = vadd.f32 %v245, %v398
    %v415 = vadd.f32 %v246, %v399
    %v416 = vadd.f32 %v247, %v400
    %v417 = vadd.f32 %v248, %v401
    %v418 = vadd.f32 %v249, %v402
    %v419 = vadd.f32 %v250, %v403
    %v420 = vadd.f32 %v251, %v404
    %v421 = vadd.f32 %v252, %v405
    %v422 = vadd.f32 %v253, %v406
    %v423 = vadd.f32 %v254, %v407
    %v424 = vadd.f32 %v255, %v408
    %v425 = vadd.f32 %v256, %v409
    %v426 = vadd.f32 %v257, %v410
    %v429 = vcombine.low %v79, %v80
    %v430 = vcombine.high %v79, %v80
    %v432 = vunpack.c.l.s4 1966171168
    %v433 = vunpack.c.0.s8 %v432
    %v434 = vlaneseq
    %v435 = vshrl.u32 %v434, 7
    %v436 = vsub.s32 %v433, %v435
    %v437 = vrot.slane %v429, %v436
    %v439 = vunpack.c.l.s4 1966171168
    %v440 = vunpack.c.0.s8 %v439
    %v441 = vlaneseq
    %v442 = vshrl.u32 %v441, 7
    %v443 = vsub.s32 %v440, %v442
    %v444 = vrot.slane %v430, %v443
    %v445 = vcombine.high %v437, %v437
    %v446 = vcombine.high %v444, %v444
    %v448 = vunpack.c.l.s4 1966171168
    %v449 = vunpack.c.0.s8 %v448
    %v450 = vlaneseq
    %v451 = vshrl.u32 %v450, 7
    %v452 = vsub.s32 %v449, %v451
    %v453 = vrot.slane %v437, %v452
    %v455 = vunpack.c.l.s4 1966171168
    %v456 = vunpack.c.0.s8 %v455
    %v457 = vlaneseq
    %v458 = vshrl.u32 %v457, 7
    %v459 = vsub.s32 %v456, %v458
    %v460 = vrot.slane %v444, %v459
    %v462 = vunpack.c.l.s4 1966171168
    %v463 = vunpack.c.0.s8 %v462
    %v464 = vlaneseq
    %v465 = vshrl.u32 %v464, 7
    %v466 = vsub.s32 %v463, %v465
    %v467 = vrot.slane %v445, %v466
    %v469 = vunpack.c.l.s4 1966171168
    %v470 = vunpack.c.0.s8 %v469
    %v471 = vlaneseq
    %v472 = vshrl.u32 %v471, 7
    %v473 = vsub.s32 %v470, %v472
    %v474 = vrot.slane %v446, %v473
    %v475 = vcombine.high %v453, %v453
    %v476 = vcombine.high %v460, %v460
    %v477 = vcombine.high %v467, %v467
    %v478 = vcombine.high %v474, %v474
    %v479 = vlaneseq
    %v480 = vshrl.u32 %v479, 7
    %v481 = vsub.s32 0, %v480
    %v482 = vrot.slane %v453, %v481
    %v483 = vlaneseq
    %v484 = vshrl.u32 %v483, 7
    %v485 = vsub.s32 1, %v484
    %v486 = vrot.slane %v453, %v485
    %v487 = vlaneseq
    %v488 = vshrl.u32 %v487, 7
    %v489 = vsub.s32 0, %v488
    %v490 = vrot.slane %v467, %v489
    %v491 = vlaneseq
    %v492 = vshrl.u32 %v491, 7
    %v493 = vsub.s32 1, %v492
    %v494 = vrot.slane %v467, %v493
    %v495 = vlaneseq
    %v496 = vshrl.u32 %v495, 7
    %v497 = vsub.s32 0, %v496
    %v498 = vrot.slane %v475, %v497
    %v499 = vlaneseq
    %v500 = vshrl.u32 %v499, 7
    %v501 = vsub.s32 1, %v500
    %v502 = vrot.slane %v475, %v501
    %v503 = vlaneseq
    %v504 = vshrl.u32 %v503, 7
    %v505 = vsub.s32 0, %v504
    %v506 = vrot.slane %v477, %v505
    %v507 = vlaneseq
    %v508 = vshrl.u32 %v507, 7
    %v509 = vsub.s32 1, %v508
    %v510 = vrot.slane %v477, %v509
    %v511 = vlaneseq
    %v512 = vshrl.u32 %v511, 7
    %v513 = vsub.s32 0, %v512
    %v514 = vrot.slane %v460, %v513
    %v515 = vlaneseq
    %v516 = vshrl.u32 %v515, 7
    %v517 = vsub.s32 1, %v516
    %v518 = vrot.slane %v460, %v517
    %v519 = vlaneseq
    %v520 = vshrl.u32 %v519, 7
    %v521 = vsub.s32 0, %v520
    %v522 = vrot.slane %v474, %v521
    %v523 = vlaneseq
    %v524 = vshrl.u32 %v523, 7
    %v525 = vsub.s32 1, %v524
    %v526 = vrot.slane %v474, %v525
    %v527 = vlaneseq
    %v528 = vshrl.u32 %v527, 7
    %v529 = vsub.s32 0, %v528
    %v530 = vrot.slane %v476, %v529
    %v531 = vlaneseq
    %v532 = vshrl.u32 %v531, 7
    %v533 = vsub.s32 1, %v532
    %v534 = vrot.slane %v476, %v533
    %v535 = vlaneseq
    %v536 = vshrl.u32 %v535, 7
    %v537 = vsub.s32 0, %v536
    %v538 = vrot.slane %v478, %v537
    %v539 = vlaneseq
    %v540 = vshrl.u32 %v539, 7
    %v541 = vsub.s32 1, %v540
    %v542 = vrot.slane %v478, %v541
    %560 = vset.pattern.permute.xlu0 0
    %561 = vperm.xlu0 %560, %v56
    %v562 = vpop.permute.xlu0 %561
    %v564 = vmul.f32 %v482, %v562
    %v565 = vmul.f32 %v486, %v562
    %v566 = vmul.f32 %v490, %v562
    %v567 = vmul.f32 %v494, %v562
    %v568 = vmul.f32 %v498, %v562
    %v569 = vmul.f32 %v502, %v562
    %v570 = vmul.f32 %v506, %v562
    %v571 = vmul.f32 %v510, %v562
    %v572 = vmul.f32 %v514, %v562
    %v573 = vmul.f32 %v518, %v562
    %v574 = vmul.f32 %v522, %v562
    %v575 = vmul.f32 %v526, %v562
    %v576 = vmul.f32 %v530, %v562
    %v577 = vmul.f32 %v534, %v562
    %v578 = vmul.f32 %v538, %v562
    %v579 = vmul.f32 %v542, %v562
    %v580 = vadd.f32 %v411, %v564
    %v581 = vadd.f32 %v412, %v565
    %v582 = vadd.f32 %v413, %v566
    %v583 = vadd.f32 %v414, %v567
    %v584 = vadd.f32 %v415, %v568
    %v585 = vadd.f32 %v416, %v569
    %v586 = vadd.f32 %v417, %v570
    %v587 = vadd.f32 %v418, %v571
    %v588 = vadd.f32 %v419, %v572
    %v589 = vadd.f32 %v420, %v573
    %v590 = vadd.f32 %v421, %v574
    %v591 = vadd.f32 %v422, %v575
    %v592 = vadd.f32 %v423, %v576
    %v593 = vadd.f32 %v424, %v577
    %v594 = vadd.f32 %v425, %v578
    %v595 = vadd.f32 %v426, %v579
    %v598 = vcombine.low %v82, %v83
    %v599 = vcombine.high %v82, %v83
    %v601 = vunpack.c.l.s4 1966171168
    %v602 = vunpack.c.0.s8 %v601
    %v603 = vlaneseq
    %v604 = vshrl.u32 %v603, 7
    %v605 = vsub.s32 %v602, %v604
    %v606 = vrot.slane %v598, %v605
    %v608 = vunpack.c.l.s4 1966171168
    %v609 = vunpack.c.0.s8 %v608
    %v610 = vlaneseq
    %v611 = vshrl.u32 %v610, 7
    %v612 = vsub.s32 %v609, %v611
    %v613 = vrot.slane %v599, %v612
    %v614 = vcombine.high %v606, %v606
    %v615 = vcombine.high %v613, %v613
    %v617 = vunpack.c.l.s4 1966171168
    %v618 = vunpack.c.0.s8 %v617
    %v619 = vlaneseq
    %v620 = vshrl.u32 %v619, 7
    %v621 = vsub.s32 %v618, %v620
    %v622 = vrot.slane %v606, %v621
    %v624 = vunpack.c.l.s4 1966171168
    %v625 = vunpack.c.0.s8 %v624
    %v626 = vlaneseq
    %v627 = vshrl.u32 %v626, 7
    %v628 = vsub.s32 %v625, %v627
    %v629 = vrot.slane %v613, %v628
    %v631 = vunpack.c.l.s4 1966171168
    %v632 = vunpack.c.0.s8 %v631
    %v633 = vlaneseq
    %v634 = vshrl.u32 %v633, 7
    %v635 = vsub.s32 %v632, %v634
    %v636 = vrot.slane %v614, %v635
    %v638 = vunpack.c.l.s4 1966171168
    %v639 = vunpack.c.0.s8 %v638
    %v640 = vlaneseq
    %v641 = vshrl.u32 %v640, 7
    %v642 = vsub.s32 %v639, %v641
    %v643 = vrot.slane %v615, %v642
    %v644 = vcombine.high %v622, %v622
    %v645 = vcombine.high %v629, %v629
    %v646 = vcombine.high %v636, %v636
    %v647 = vcombine.high %v643, %v643
    %v648 = vlaneseq
    %v649 = vshrl.u32 %v648, 7
    %v650 = vsub.s32 0, %v649
    %v651 = vrot.slane %v622, %v650
    %v652 = vlaneseq
    %v653 = vshrl.u32 %v652, 7
    %v654 = vsub.s32 1, %v653
    %v655 = vrot.slane %v622, %v654
    %v656 = vlaneseq
    %v657 = vshrl.u32 %v656, 7
    %v658 = vsub.s32 0, %v657
    %v659 = vrot.slane %v636, %v658
    %v660 = vlaneseq
    %v661 = vshrl.u32 %v660, 7
    %v662 = vsub.s32 1, %v661
    %v663 = vrot.slane %v636, %v662
    %v664 = vlaneseq
    %v665 = vshrl.u32 %v664, 7
    %v666 = vsub.s32 0, %v665
    %v667 = vrot.slane %v644, %v666
    %v668 = vlaneseq
    %v669 = vshrl.u32 %v668, 7
    %v670 = vsub.s32 1, %v669
    %v671 = vrot.slane %v644, %v670
    %v672 = vlaneseq
    %v673 = vshrl.u32 %v672, 7
    %v674 = vsub.s32 0, %v673
    %v675 = vrot.slane %v646, %v674
    %v676 = vlaneseq
    %v677 = vshrl.u32 %v676, 7
    %v678 = vsub.s32 1, %v677
    %v679 = vrot.slane %v646, %v678
    %v680 = vlaneseq
    %v681 = vshrl.u32 %v680, 7
    %v682 = vsub.s32 0, %v681
    %v683 = vrot.slane %v629, %v682
    %v684 = vlaneseq
    %v685 = vshrl.u32 %v684, 7
    %v686 = vsub.s32 1, %v685
    %v687 = vrot.slane %v629, %v686
    %v688 = vlaneseq
    %v689 = vshrl.u32 %v688, 7
    %v690 = vsub.s32 0, %v689
    %v691 = vrot.slane %v643, %v690
    %v692 = vlaneseq
    %v693 = vshrl.u32 %v692, 7
    %v694 = vsub.s32 1, %v693
    %v695 = vrot.slane %v643, %v694
    %v696 = vlaneseq
    %v697 = vshrl.u32 %v696, 7
    %v698 = vsub.s32 0, %v697
    %v699 = vrot.slane %v645, %v698
    %v700 = vlaneseq
    %v701 = vshrl.u32 %v700, 7
    %v702 = vsub.s32 1, %v701
    %v703 = vrot.slane %v645, %v702
    %v704 = vlaneseq
    %v705 = vshrl.u32 %v704, 7
    %v706 = vsub.s32 0, %v705
    %v707 = vrot.slane %v647, %v706
    %v708 = vlaneseq
    %v709 = vshrl.u32 %v708, 7
    %v710 = vsub.s32 1, %v709
    %v711 = vrot.slane %v647, %v710
    %729 = vset.pattern.permute.xlu0 0
    %730 = vperm.xlu0 %729, %v60
    %v731 = vpop.permute.xlu0 %730
    %v733 = vmul.f32 %v651, %v731
    %v734 = vmul.f32 %v655, %v731
    %v735 = vmul.f32 %v659, %v731
    %v736 = vmul.f32 %v663, %v731
    %v737 = vmul.f32 %v667, %v731
    %v738 = vmul.f32 %v671, %v731
    %v739 = vmul.f32 %v675, %v731
    %v740 = vmul.f32 %v679, %v731
    %v741 = vmul.f32 %v683, %v731
    %v742 = vmul.f32 %v687, %v731
    %v743 = vmul.f32 %v691, %v731
    %v744 = vmul.f32 %v695, %v731
    %v745 = vmul.f32 %v699, %v731
    %v746 = vmul.f32 %v703, %v731
    %v747 = vmul.f32 %v707, %v731
    %v748 = vmul.f32 %v711, %v731
    %v749 = vadd.f32 %v580, %v733
    %v750 = vadd.f32 %v581, %v734
    %v751 = vadd.f32 %v582, %v735
    %v752 = vadd.f32 %v583, %v736
    %v753 = vadd.f32 %v584, %v737
    %v754 = vadd.f32 %v585, %v738
    %v755 = vadd.f32 %v586, %v739
    %v756 = vadd.f32 %v587, %v740
    %v757 = vadd.f32 %v588, %v741
    %v758 = vadd.f32 %v589, %v742
    %v759 = vadd.f32 %v590, %v743
    %v760 = vadd.f32 %v591, %v744
    %v761 = vadd.f32 %v592, %v745
    %v762 = vadd.f32 %v593, %v746
    %v763 = vadd.f32 %v594, %v747
    %v764 = vadd.f32 %v595, %v748
    %v765 = vmax.f32 %v749, 0.0
    %v766 = vmax.f32 %v750, 0.0
    %v767 = vmax.f32 %v751, 0.0
    %v768 = vmax.f32 %v752, 0.0
    %v769 = vmax.f32 %v753, 0.0
    %v770 = vmax.f32 %v754, 0.0
    %v771 = vmax.f32 %v755, 0.0
    %v772 = vmax.f32 %v756, 0.0
    %v773 = vmax.f32 %v757, 0.0
    %v774 = vmax.f32 %v758, 0.0
    %v775 = vmax.f32 %v759, 0.0
    %v776 = vmax.f32 %v760, 0.0
    %v777 = vmax.f32 %v761, 0.0
    %v778 = vmax.f32 %v762, 0.0
    %v779 = vmax.f32 %v763, 0.0
    %v780 = vmax.f32 %v764, 0.0
    %v781 = vadd.f32 %v765, %v766
    %782 = vadd.xlane.f32.xlu0 %v781
    %v783 = vpop.xlane.xlu0 %782
    %v784 = vadd.f32 %v767, %v768
    %785 = vadd.xlane.f32.xlu0 %v784
    %v786 = vpop.xlane.xlu0 %785
    %v787 = vadd.f32 %v769, %v770
    %788 = vadd.xlane.f32.xlu0 %v787
    %v789 = vpop.xlane.xlu0 %788
    %v790 = vadd.f32 %v771, %v772
    %791 = vadd.xlane.f32.xlu0 %v790
    %v792 = vpop.xlane.xlu0 %791
    %v793 = vadd.f32 %v773, %v774
    %794 = vadd.xlane.f32.xlu0 %v793
    %v795 = vpop.xlane.xlu0 %794
    %v796 = vadd.f32 %v775, %v776
    %797 = vadd.xlane.f32.xlu0 %v796
    %v798 = vpop.xlane.xlu0 %797
    %v799 = vadd.f32 %v777, %v778
    %800 = vadd.xlane.f32.xlu0 %v799
    %v801 = vpop.xlane.xlu0 %800
    %v802 = vadd.f32 %v779, %v780
    %803 = vadd.xlane.f32.xlu0 %v802
    %v804 = vpop.xlane.xlu0 %803
    %v805 = vrcp.pop 256.0
    %v806 = vmul.f32 %v783, %v805
    %v807 = vmul.f32 %v786, %v805
    %v808 = vmul.f32 %v789, %v805
    %v809 = vmul.f32 %v792, %v805
    %v810 = vmul.f32 %v795, %v805
    %v811 = vmul.f32 %v798, %v805
    %v812 = vmul.f32 %v801, %v805
    %v813 = vmul.f32 %v804, %v805
    %815 = vset.pattern.permute.xlu0 0
    %816 = vperm.xlu0 %815, %v49
    %v817 = vpop.permute.xlu0 %816
    %v819 = vmul.f32 %v139, %v817
    %v820 = vmul.f32 %v143, %v817
    %v821 = vmul.f32 %v147, %v817
    %v822 = vmul.f32 %v151, %v817
    %v823 = vmul.f32 %v155, %v817
    %v824 = vmul.f32 %v159, %v817
    %v825 = vmul.f32 %v163, %v817
    %v826 = vmul.f32 %v167, %v817
    %v827 = vmul.f32 %v171, %v817
    %v828 = vmul.f32 %v175, %v817
    %v829 = vmul.f32 %v179, %v817
    %v830 = vmul.f32 %v183, %v817
    %v831 = vmul.f32 %v187, %v817
    %v832 = vmul.f32 %v191, %v817
    %v833 = vmul.f32 %v195, %v817
    %v834 = vmul.f32 %v199, %v817
    %836 = vset.pattern.permute.xlu0 0
    %837 = vperm.xlu0 %836, %v65
    %v838 = vpop.permute.xlu0 %837
    %v840 = vadd.f32 %v819, %v838
    %v841 = vadd.f32 %v820, %v838
    %v842 = vadd.f32 %v821, %v838
    %v843 = vadd.f32 %v822, %v838
    %v844 = vadd.f32 %v823, %v838
    %v845 = vadd.f32 %v824, %v838
    %v846 = vadd.f32 %v825, %v838
    %v847 = vadd.f32 %v826, %v838
    %v848 = vadd.f32 %v827, %v838
    %v849 = vadd.f32 %v828, %v838
    %v850 = vadd.f32 %v829, %v838
    %v851 = vadd.f32 %v830, %v838
    %v852 = vadd.f32 %v831, %v838
    %v853 = vadd.f32 %v832, %v838
    %v854 = vadd.f32 %v833, %v838
    %v855 = vadd.f32 %v834, %v838
    %857 = vset.pattern.permute.xlu0 0
    %858 = vperm.xlu0 %857, %v53
    %v859 = vpop.permute.xlu0 %858
    %v861 = vmul.f32 %v313, %v859
    %v862 = vmul.f32 %v317, %v859
    %v863 = vmul.f32 %v321, %v859
    %v864 = vmul.f32 %v325, %v859
    %v865 = vmul.f32 %v329, %v859
    %v866 = vmul.f32 %v333, %v859
    %v867 = vmul.f32 %v337, %v859
    %v868 = vmul.f32 %v341, %v859
    %v869 = vmul.f32 %v345, %v859
    %v870 = vmul.f32 %v349, %v859
    %v871 = vmul.f32 %v353, %v859
    %v872 = vmul.f32 %v357, %v859
    %v873 = vmul.f32 %v361, %v859
    %v874 = vmul.f32 %v365, %v859
    %v875 = vmul.f32 %v369, %v859
    %v876 = vmul.f32 %v373, %v859
    %v877 = vadd.f32 %v840, %v861
    %v878 = vadd.f32 %v841, %v862
    %v879 = vadd.f32 %v842, %v863
    %v880 = vadd.f32 %v843, %v864
    %v881 = vadd.f32 %v844, %v865
    %v882 = vadd.f32 %v845, %v866
    %v883 = vadd.f32 %v846, %v867
    %v884 = vadd.f32 %v847, %v868
    %v885 = vadd.f32 %v848, %v869
    %v886 = vadd.f32 %v849, %v870
    %v887 = vadd.f32 %v850, %v871
    %v888 = vadd.f32 %v851, %v872
    %v889 = vadd.f32 %v852, %v873
    %v890 = vadd.f32 %v853, %v874
    %v891 = vadd.f32 %v854, %v875
    %v892 = vadd.f32 %v855, %v876
    %894 = vset.pattern.permute.xlu0 0
    %895 = vperm.xlu0 %894, %v57
    %v896 = vpop.permute.xlu0 %895
    %v898 = vmul.f32 %v482, %v896
    %v899 = vmul.f32 %v486, %v896
    %v900 = vmul.f32 %v490, %v896
    %v901 = vmul.f32 %v494, %v896
    %v902 = vmul.f32 %v498, %v896
    %v903 = vmul.f32 %v502, %v896
    %v904 = vmul.f32 %v506, %v896
    %v905 = vmul.f32 %v510, %v896
    %v906 = vmul.f32 %v514, %v896
    %v907 = vmul.f32 %v518, %v896
    %v908 = vmul.f32 %v522, %v896
    %v909 = vmul.f32 %v526, %v896
    %v910 = vmul.f32 %v530, %v896
    %v911 = vmul.f32 %v534, %v896
    %v912 = vmul.f32 %v538, %v896
    %v913 = vmul.f32 %v542, %v896
    %v914 = vadd.f32 %v877, %v898
    %v915 = vadd.f32 %v878, %v899
    %v916 = vadd.f32 %v879, %v900
    %v917 = vadd.f32 %v880, %v901
    %v918 = vadd.f32 %v881, %v902
    %v919 = vadd.f32 %v882, %v903
    %v920 = vadd.f32 %v883, %v904
    %v921 = vadd.f32 %v884, %v905
    %v922 = vadd.f32 %v885, %v906
    %v923 = vadd.f32 %v886, %v907
    %v924 = vadd.f32 %v887, %v908
    %v925 = vadd.f32 %v888, %v909
    %v926 = vadd.f32 %v889, %v910
    %v927 = vadd.f32 %v890, %v911
    %v928 = vadd.f32 %v891, %v912
    %v929 = vadd.f32 %v892, %v913
    %931 = vset.pattern.permute.xlu0 0
    %932 = vperm.xlu0 %931, %v61
    %v933 = vpop.permute.xlu0 %932
    %v935 = vmul.f32 %v651, %v933
    %v936 = vmul.f32 %v655, %v933
    %v937 = vmul.f32 %v659, %v933
    %v938 = vmul.f32 %v663, %v933
    %v939 = vmul.f32 %v667, %v933
    %v940 = vmul.f32 %v671, %v933
    %v941 = vmul.f32 %v675, %v933
    %v942 = vmul.f32 %v679, %v933
    %v943 = vmul.f32 %v683, %v933
    %v944 = vmul.f32 %v687, %v933
    %v945 = vmul.f32 %v691, %v933
    %v946 = vmul.f32 %v695, %v933
    %v947 = vmul.f32 %v699, %v933
    %v948 = vmul.f32 %v703, %v933
    %v949 = vmul.f32 %v707, %v933
    %v950 = vmul.f32 %v711, %v933
    %v951 = vadd.f32 %v914, %v935
    %v952 = vadd.f32 %v915, %v936
    %v953 = vadd.f32 %v916, %v937
    %v954 = vadd.f32 %v917, %v938
    %v955 = vadd.f32 %v918, %v939
    %v956 = vadd.f32 %v919, %v940
    %v957 = vadd.f32 %v920, %v941
    %v958 = vadd.f32 %v921, %v942
    %v959 = vadd.f32 %v922, %v943
    %v960 = vadd.f32 %v923, %v944
    %v961 = vadd.f32 %v924, %v945
    %v962 = vadd.f32 %v925, %v946
    %v963 = vadd.f32 %v926, %v947
    %v964 = vadd.f32 %v927, %v948
    %v965 = vadd.f32 %v928, %v949
    %v966 = vadd.f32 %v929, %v950
    %v967 = vmax.f32 %v951, 0.0
    %v968 = vmax.f32 %v952, 0.0
    %v969 = vmax.f32 %v953, 0.0
    %v970 = vmax.f32 %v954, 0.0
    %v971 = vmax.f32 %v955, 0.0
    %v972 = vmax.f32 %v956, 0.0
    %v973 = vmax.f32 %v957, 0.0
    %v974 = vmax.f32 %v958, 0.0
    %v975 = vmax.f32 %v959, 0.0
    %v976 = vmax.f32 %v960, 0.0
    %v977 = vmax.f32 %v961, 0.0
    %v978 = vmax.f32 %v962, 0.0
    %v979 = vmax.f32 %v963, 0.0
    %v980 = vmax.f32 %v964, 0.0
    %v981 = vmax.f32 %v965, 0.0
    %v982 = vmax.f32 %v966, 0.0
    %v983 = vadd.f32 %v967, %v968
    %984 = vadd.xlane.f32.xlu0 %v983
    %v985 = vpop.xlane.xlu0 %984
    %v986 = vadd.f32 %v969, %v970
    %987 = vadd.xlane.f32.xlu0 %v986
    %v988 = vpop.xlane.xlu0 %987
    %v989 = vadd.f32 %v971, %v972
    %990 = vadd.xlane.f32.xlu0 %v989
    %v991 = vpop.xlane.xlu0 %990
    %v992 = vadd.f32 %v973, %v974
    %993 = vadd.xlane.f32.xlu0 %v992
    %v994 = vpop.xlane.xlu0 %993
    %v995 = vadd.f32 %v975, %v976
    %996 = vadd.xlane.f32.xlu0 %v995
    %v997 = vpop.xlane.xlu0 %996
    %v998 = vadd.f32 %v977, %v978
    %999 = vadd.xlane.f32.xlu0 %v998
    %v1000 = vpop.xlane.xlu0 %999
    %v1001 = vadd.f32 %v979, %v980
    %1002 = vadd.xlane.f32.xlu0 %v1001
    %v1003 = vpop.xlane.xlu0 %1002
    %v1004 = vadd.f32 %v981, %v982
    %1005 = vadd.xlane.f32.xlu0 %v1004
    %v1006 = vpop.xlane.xlu0 %1005
    %v1007 = vmul.f32 %v985, %v805
    %v1008 = vmul.f32 %v988, %v805
    %v1009 = vmul.f32 %v991, %v805
    %v1010 = vmul.f32 %v994, %v805
    %v1011 = vmul.f32 %v997, %v805
    %v1012 = vmul.f32 %v1000, %v805
    %v1013 = vmul.f32 %v1003, %v805
    %v1014 = vmul.f32 %v1006, %v805
    %v1023 = vlaneseq
    %v1024 = vand.u32 %v1023, 127
    %v1025 = vlaneseq
    %v1026 = vshrl.u32 %v1025, 7
    %v1027 = vsub.s32 %v1024, %v1026
    %v1028 = vrot.slane %v1007, %v1027
    %v1029 = vlaneseq
    %v1030 = vshrl.u32 %v1029, 7
    %v1031 = vsub.s32 %v1024, %v1030
    %v1032 = vrot.slane %v1008, %v1031
    %v1033 = vlaneseq
    %v1034 = vshrl.u32 %v1033, 7
    %v1035 = vsub.s32 %v1024, %v1034
    %v1036 = vrot.slane %v1009, %v1035
    %v1037 = vlaneseq
    %v1038 = vshrl.u32 %v1037, 7
    %v1039 = vsub.s32 %v1024, %v1038
    %v1040 = vrot.slane %v1010, %v1039
    %v1041 = vlaneseq
    %v1042 = vshrl.u32 %v1041, 7
    %v1043 = vsub.s32 %v1024, %v1042
    %v1044 = vrot.slane %v1011, %v1043
    %v1045 = vlaneseq
    %v1046 = vshrl.u32 %v1045, 7
    %v1047 = vsub.s32 %v1024, %v1046
    %v1048 = vrot.slane %v1012, %v1047
    %v1049 = vlaneseq
    %v1050 = vshrl.u32 %v1049, 7
    %v1051 = vsub.s32 %v1024, %v1050
    %v1052 = vrot.slane %v1013, %v1051
    %v1053 = vlaneseq
    %v1054 = vshrl.u32 %v1053, 7
    %v1055 = vsub.s32 %v1024, %v1054
    %v1056 = vrot.slane %v1014, %v1055
    %vm1057 = vcmask 1041409
    %v1058 = vsel %vm1057, %v1032, %v1028
    %vm1059 = vcmask 1042434
    %v1060 = vsel %vm1059, %v1036, %v1058
    %vm1061 = vcmask 1043459
    %v1062 = vsel %vm1061, %v1040, %v1060
    %vm1063 = vcmask 1044484
    %v1064 = vsel %vm1063, %v1044, %v1062
    %vm1065 = vcmask 1045509
    %v1066 = vsel %vm1065, %v1048, %v1064
    %vm1067 = vcmask 1046534
    %v1068 = vsel %vm1067, %v1052, %v1066
    %vm1069 = vcmask 1047559
    %v1070 = vsel %vm1069, %v1056, %v1068
    %vm1071 = vcmask 64512
    %v1072 = vsel %vm1071, %v1070, 0
    %1074 = vmatprep.subr.mxu0 0.0
    %1075 = vmatpush1.msra.mxu0 %v69
    %1076 = vmatprep.subr.mxu0 0.0
    %1077 = vmatpush1.msra.mxu0 0.0
    %1078 = vmatprep.subr.mxu0 0.0
    %1079 = vmatpush1.msra.mxu0 0.0
    %1080 = vmatprep.subr.mxu0 0.0
    %1081 = vmatpush1.msra.mxu0 0.0
    %1082 = vmatprep.subr.mxu0 0.0
    %1083 = vmatpush1.msra.mxu0 0.0
    %1084 = vmatprep.subr.mxu0 0.0
    %1085 = vmatpush1.msra.mxu0 0.0
    %1086 = vmatprep.subr.mxu0 0.0
    %1087 = vmatpush1.msra.mxu0 0.0
    %1088 = vmatprep.subr.mxu0 0.0
    %1089 = vmatpush1.msra.mxu0 0.0
    %1090 = vmatprep.subr.mxu0 0.0
    %1091 = vmatpush1.msra.mxu0 0.0
    %1092 = vmatprep.subr.mxu0 0.0
    %1093 = vmatpush1.msra.mxu0 0.0
    %1094 = vmatprep.subr.mxu0 0.0
    %1095 = vmatpush1.msra.mxu0 0.0
    %1096 = vmatprep.subr.mxu0 0.0
    %1097 = vmatpush1.msra.mxu0 0.0
    %1098 = vmatprep.subr.mxu0 0.0
    %1099 = vmatpush1.msra.mxu0 0.0
    %1100 = vmatprep.subr.mxu0 0.0
    %1101 = vmatpush1.msra.mxu0 0.0
    %1102 = vmatprep.subr.mxu0 0.0
    %1103 = vmatpush1.msra.mxu0 0.0
    %1104 = vmatprep.subr.mxu0 0.0
    %1105 = vmatpush1.msra.mxu0 0.0
    %1106 = vmatprep.subr.mxu0 0.0
    %1107 = vmatpush1.msra.mxu0 0.0
    %1108 = vmatprep.subr.mxu0 0.0
    %1109 = vmatpush1.msra.mxu0 0.0
    %1110 = vmatprep.subr.mxu0 0.0
    %1111 = vmatpush1.msra.mxu0 0.0
    %1112 = vmatprep.subr.mxu0 0.0
    %1113 = vmatpush1.msra.mxu0 0.0
    %1114 = vmatprep.subr.mxu0 0.0
    %1115 = vmatpush1.msra.mxu0 0.0
    %1116 = vmatprep.subr.mxu0 0.0
    %1117 = vmatpush1.msra.mxu0 0.0
    %1118 = vmatprep.subr.mxu0 0.0
    %1119 = vmatpush1.msra.mxu0 0.0
    %1120 = vmatprep.subr.mxu0 0.0
    %1121 = vmatpush1.msra.mxu0 0.0
    %1122 = vmatprep.subr.mxu0 0.0
    %1123 = vmatpush1.msra.mxu0 0.0
    %1124 = vmatprep.subr.mxu0 0.0
    %1125 = vmatpush1.msra.mxu0 0.0
    %1126 = vmatprep.subr.mxu0 0.0
    %1127 = vmatpush1.msra.mxu0 0.0
    %1128 = vmatprep.subr.mxu0 0.0
    %1129 = vmatpush1.msra.mxu0 0.0
    %1130 = vmatprep.subr.mxu0 0.0
    %1131 = vmatpush1.msra.mxu0 0.0
    %1132 = vmatprep.subr.mxu0 0.0
    %1133 = vmatpush1.msra.mxu0 0.0
    %1134 = vmatprep.subr.mxu0 0.0
    %1135 = vmatpush1.msra.mxu0 0.0
    %1136 = vmatprep.subr.mxu0 0.0
    %1137 = vmatpush1.msra.mxu0 0.0
    %1138 = vmatprep.mubr.f32.mxu0 0.0
    %1139 = vmatmul.mubr.f32.gmra.mrb[0].mxu0 %v1072
    %v1140 = vpop.f32.mrb[0].mxu0
    %v1141 = vadd.f32 0.0, %v1140
    %v1142 = vpop.f32.mrb[0].mxu0
    %1143 = vdwg.mxu0
    %v1152 = vlaneseq
    %v1153 = vshrl.u32 %v1152, 7
    %v1154 = vsub.s32 %v1024, %v1153
    %v1155 = vrot.slane %v806, %v1154
    %v1156 = vlaneseq
    %v1157 = vshrl.u32 %v1156, 7
    %v1158 = vsub.s32 %v1024, %v1157
    %v1159 = vrot.slane %v807, %v1158
    %v1160 = vlaneseq
    %v1161 = vshrl.u32 %v1160, 7
    %v1162 = vsub.s32 %v1024, %v1161
    %v1163 = vrot.slane %v808, %v1162
    %v1164 = vlaneseq
    %v1165 = vshrl.u32 %v1164, 7
    %v1166 = vsub.s32 %v1024, %v1165
    %v1167 = vrot.slane %v809, %v1166
    %v1168 = vlaneseq
    %v1169 = vshrl.u32 %v1168, 7
    %v1170 = vsub.s32 %v1024, %v1169
    %v1171 = vrot.slane %v810, %v1170
    %v1172 = vlaneseq
    %v1173 = vshrl.u32 %v1172, 7
    %v1174 = vsub.s32 %v1024, %v1173
    %v1175 = vrot.slane %v811, %v1174
    %v1176 = vlaneseq
    %v1177 = vshrl.u32 %v1176, 7
    %v1178 = vsub.s32 %v1024, %v1177
    %v1179 = vrot.slane %v812, %v1178
    %v1180 = vlaneseq
    %v1181 = vshrl.u32 %v1180, 7
    %v1182 = vsub.s32 %v1024, %v1181
    %v1183 = vrot.slane %v813, %v1182
    %v1184 = vsel %vm1057, %v1159, %v1155
    %v1185 = vsel %vm1059, %v1163, %v1184
    %v1186 = vsel %vm1061, %v1167, %v1185
    %v1187 = vsel %vm1063, %v1171, %v1186
    %v1188 = vsel %vm1065, %v1175, %v1187
    %v1189 = vsel %vm1067, %v1179, %v1188
    %v1190 = vsel %vm1069, %v1183, %v1189
    %v1191 = vsel %vm1071, %v1190, 0
    %1193 = vmatprep.subr.mxu0 0.0
    %1194 = vmatpush1.msra.mxu0 %v68
    %1195 = vmatprep.subr.mxu0 0.0
    %1196 = vmatpush1.msra.mxu0 0.0
    %1197 = vmatprep.subr.mxu0 0.0
    %1198 = vmatpush1.msra.mxu0 0.0
    %1199 = vmatprep.subr.mxu0 0.0
    %1200 = vmatpush1.msra.mxu0 0.0
    %1201 = vmatprep.subr.mxu0 0.0
    %1202 = vmatpush1.msra.mxu0 0.0
    %1203 = vmatprep.subr.mxu0 0.0
    %1204 = vmatpush1.msra.mxu0 0.0
    %1205 = vmatprep.subr.mxu0 0.0
    %1206 = vmatpush1.msra.mxu0 0.0
    %1207 = vmatprep.subr.mxu0 0.0
    %1208 = vmatpush1.msra.mxu0 0.0
    %1209 = vmatprep.subr.mxu0 0.0
    %1210 = vmatpush1.msra.mxu0 0.0
    %1211 = vmatprep.subr.mxu0 0.0
    %1212 = vmatpush1.msra.mxu0 0.0
    %1213 = vmatprep.subr.mxu0 0.0
    %1214 = vmatpush1.msra.mxu0 0.0
    %1215 = vmatprep.subr.mxu0 0.0
    %1216 = vmatpush1.msra.mxu0 0.0
    %1217 = vmatprep.subr.mxu0 0.0
    %1218 = vmatpush1.msra.mxu0 0.0
    %1219 = vmatprep.subr.mxu0 0.0
    %1220 = vmatpush1.msra.mxu0 0.0
    %1221 = vmatprep.subr.mxu0 0.0
    %1222 = vmatpush1.msra.mxu0 0.0
    %1223 = vmatprep.subr.mxu0 0.0
    %1224 = vmatpush1.msra.mxu0 0.0
    %1225 = vmatprep.subr.mxu0 0.0
    %1226 = vmatpush1.msra.mxu0 0.0
    %1227 = vmatprep.subr.mxu0 0.0
    %1228 = vmatpush1.msra.mxu0 0.0
    %1229 = vmatprep.subr.mxu0 0.0
    %1230 = vmatpush1.msra.mxu0 0.0
    %1231 = vmatprep.subr.mxu0 0.0
    %1232 = vmatpush1.msra.mxu0 0.0
    %1233 = vmatprep.subr.mxu0 0.0
    %1234 = vmatpush1.msra.mxu0 0.0
    %1235 = vmatprep.subr.mxu0 0.0
    %1236 = vmatpush1.msra.mxu0 0.0
    %1237 = vmatprep.subr.mxu0 0.0
    %1238 = vmatpush1.msra.mxu0 0.0
    %1239 = vmatprep.subr.mxu0 0.0
    %1240 = vmatpush1.msra.mxu0 0.0
    %1241 = vmatprep.subr.mxu0 0.0
    %1242 = vmatpush1.msra.mxu0 0.0
    %1243 = vmatprep.subr.mxu0 0.0
    %1244 = vmatpush1.msra.mxu0 0.0
    %1245 = vmatprep.subr.mxu0 0.0
    %1246 = vmatpush1.msra.mxu0 0.0
    %1247 = vmatprep.subr.mxu0 0.0
    %1248 = vmatpush1.msra.mxu0 0.0
    %1249 = vmatprep.subr.mxu0 0.0
    %1250 = vmatpush1.msra.mxu0 0.0
    %1251 = vmatprep.subr.mxu0 0.0
    %1252 = vmatpush1.msra.mxu0 0.0
    %1253 = vmatprep.subr.mxu0 0.0
    %1254 = vmatpush1.msra.mxu0 0.0
    %1255 = vmatprep.subr.mxu0 0.0
    %1256 = vmatpush1.msra.mxu0 0.0
    %1257 = vmatprep.mubr.f32.mxu0 0.0
    %1258 = vmatmul.mubr.f32.gmra.mrb[0].mxu0 %v1191
    %v1259 = vpop.f32.mrb[0].mxu0
    %v1260 = vadd.f32 %v1141, %v1259
    %v1261 = vpop.f32.mrb[0].mxu0
    %1262 = vdwg.mxu0
    %1264 = vset.pattern.permute.xlu0 0
    %1265 = vperm.xlu0 %1264, %v50
    %v1266 = vpop.permute.xlu0 %1265
    %v1268 = vmul.f32 %v139, %v1266
    %v1269 = vmul.f32 %v143, %v1266
    %v1270 = vmul.f32 %v147, %v1266
    %v1271 = vmul.f32 %v151, %v1266
    %v1272 = vmul.f32 %v155, %v1266
    %v1273 = vmul.f32 %v159, %v1266
    %v1274 = vmul.f32 %v163, %v1266
    %v1275 = vmul.f32 %v167, %v1266
    %v1276 = vmul.f32 %v171, %v1266
    %v1277 = vmul.f32 %v175, %v1266
    %v1278 = vmul.f32 %v179, %v1266
    %v1279 = vmul.f32 %v183, %v1266
    %v1280 = vmul.f32 %v187, %v1266
    %v1281 = vmul.f32 %v191, %v1266
    %v1282 = vmul.f32 %v195, %v1266
    %v1283 = vmul.f32 %v199, %v1266
    %1285 = vset.pattern.permute.xlu0 0
    %1286 = vperm.xlu0 %1285, %v66
    %v1287 = vpop.permute.xlu0 %1286
    %v1289 = vadd.f32 %v1268, %v1287
    %v1290 = vadd.f32 %v1269, %v1287
    %v1291 = vadd.f32 %v1270, %v1287
    %v1292 = vadd.f32 %v1271, %v1287
    %v1293 = vadd.f32 %v1272, %v1287
    %v1294 = vadd.f32 %v1273, %v1287
    %v1295 = vadd.f32 %v1274, %v1287
    %v1296 = vadd.f32 %v1275, %v1287
    %v1297 = vadd.f32 %v1276, %v1287
    %v1298 = vadd.f32 %v1277, %v1287
    %v1299 = vadd.f32 %v1278, %v1287
    %v1300 = vadd.f32 %v1279, %v1287
    %v1301 = vadd.f32 %v1280, %v1287
    %v1302 = vadd.f32 %v1281, %v1287
    %v1303 = vadd.f32 %v1282, %v1287
    %v1304 = vadd.f32 %v1283, %v1287
    %1306 = vset.pattern.permute.xlu0 0
    %1307 = vperm.xlu0 %1306, %v54
    %v1308 = vpop.permute.xlu0 %1307
    %v1310 = vmul.f32 %v313, %v1308
    %v1311 = vmul.f32 %v317, %v1308
    %v1312 = vmul.f32 %v321, %v1308
    %v1313 = vmul.f32 %v325, %v1308
    %v1314 = vmul.f32 %v329, %v1308
    %v1315 = vmul.f32 %v333, %v1308
    %v1316 = vmul.f32 %v337, %v1308
    %v1317 = vmul.f32 %v341, %v1308
    %v1318 = vmul.f32 %v345, %v1308
    %v1319 = vmul.f32 %v349, %v1308
    %v1320 = vmul.f32 %v353, %v1308
    %v1321 = vmul.f32 %v357, %v1308
    %v1322 = vmul.f32 %v361, %v1308
    %v1323 = vmul.f32 %v365, %v1308
    %v1324 = vmul.f32 %v369, %v1308
    %v1325 = vmul.f32 %v373, %v1308
    %v1326 = vadd.f32 %v1289, %v1310
    %v1327 = vadd.f32 %v1290, %v1311
    %v1328 = vadd.f32 %v1291, %v1312
    %v1329 = vadd.f32 %v1292, %v1313
    %v1330 = vadd.f32 %v1293, %v1314
    %v1331 = vadd.f32 %v1294, %v1315
    %v1332 = vadd.f32 %v1295, %v1316
    %v1333 = vadd.f32 %v1296, %v1317
    %v1334 = vadd.f32 %v1297, %v1318
    %v1335 = vadd.f32 %v1298, %v1319
    %v1336 = vadd.f32 %v1299, %v1320
    %v1337 = vadd.f32 %v1300, %v1321
    %v1338 = vadd.f32 %v1301, %v1322
    %v1339 = vadd.f32 %v1302, %v1323
    %v1340 = vadd.f32 %v1303, %v1324
    %v1341 = vadd.f32 %v1304, %v1325
    %1343 = vset.pattern.permute.xlu0 0
    %1344 = vperm.xlu0 %1343, %v58
    %v1345 = vpop.permute.xlu0 %1344
    %v1347 = vmul.f32 %v482, %v1345
    %v1348 = vmul.f32 %v486, %v1345
    %v1349 = vmul.f32 %v490, %v1345
    %v1350 = vmul.f32 %v494, %v1345
    %v1351 = vmul.f32 %v498, %v1345
    %v1352 = vmul.f32 %v502, %v1345
    %v1353 = vmul.f32 %v506, %v1345
    %v1354 = vmul.f32 %v510, %v1345
    %v1355 = vmul.f32 %v514, %v1345
    %v1356 = vmul.f32 %v518, %v1345
    %v1357 = vmul.f32 %v522, %v1345
    %v1358 = vmul.f32 %v526, %v1345
    %v1359 = vmul.f32 %v530, %v1345
    %v1360 = vmul.f32 %v534, %v1345
    %v1361 = vmul.f32 %v538, %v1345
    %v1362 = vmul.f32 %v542, %v1345
    %v1363 = vadd.f32 %v1326, %v1347
    %v1364 = vadd.f32 %v1327, %v1348
    %v1365 = vadd.f32 %v1328, %v1349
    %v1366 = vadd.f32 %v1329, %v1350
    %v1367 = vadd.f32 %v1330, %v1351
    %v1368 = vadd.f32 %v1331, %v1352
    %v1369 = vadd.f32 %v1332, %v1353
    %v1370 = vadd.f32 %v1333, %v1354
    %v1371 = vadd.f32 %v1334, %v1355
    %v1372 = vadd.f32 %v1335, %v1356
    %v1373 = vadd.f32 %v1336, %v1357
    %v1374 = vadd.f32 %v1337, %v1358
    %v1375 = vadd.f32 %v1338, %v1359
    %v1376 = vadd.f32 %v1339, %v1360
    %v1377 = vadd.f32 %v1340, %v1361
    %v1378 = vadd.f32 %v1341, %v1362
    %1380 = vset.pattern.permute.xlu0 0
    %1381 = vperm.xlu0 %1380, %v62
    %v1382 = vpop.permute.xlu0 %1381
    %v1384 = vmul.f32 %v651, %v1382
    %v1385 = vmul.f32 %v655, %v1382
    %v1386 = vmul.f32 %v659, %v1382
    %v1387 = vmul.f32 %v663, %v1382
    %v1388 = vmul.f32 %v667, %v1382
    %v1389 = vmul.f32 %v671, %v1382
    %v1390 = vmul.f32 %v675, %v1382
    %v1391 = vmul.f32 %v679, %v1382
    %v1392 = vmul.f32 %v683, %v1382
    %v1393 = vmul.f32 %v687, %v1382
    %v1394 = vmul.f32 %v691, %v1382
    %v1395 = vmul.f32 %v695, %v1382
    %v1396 = vmul.f32 %v699, %v1382
    %v1397 = vmul.f32 %v703, %v1382
    %v1398 = vmul.f32 %v707, %v1382
    %v1399 = vmul.f32 %v711, %v1382
    %v1400 = vadd.f32 %v1363, %v1384
    %v1401 = vadd.f32 %v1364, %v1385
    %v1402 = vadd.f32 %v1365, %v1386
    %v1403 = vadd.f32 %v1366, %v1387
    %v1404 = vadd.f32 %v1367, %v1388
    %v1405 = vadd.f32 %v1368, %v1389
    %v1406 = vadd.f32 %v1369, %v1390
    %v1407 = vadd.f32 %v1370, %v1391
    %v1408 = vadd.f32 %v1371, %v1392
    %v1409 = vadd.f32 %v1372, %v1393
    %v1410 = vadd.f32 %v1373, %v1394
    %v1411 = vadd.f32 %v1374, %v1395
    %v1412 = vadd.f32 %v1375, %v1396
    %v1413 = vadd.f32 %v1376, %v1397
    %v1414 = vadd.f32 %v1377, %v1398
    %v1415 = vadd.f32 %v1378, %v1399
    %v1416 = vmax.f32 %v1400, 0.0
    %v1417 = vmax.f32 %v1401, 0.0
    %v1418 = vmax.f32 %v1402, 0.0
    %v1419 = vmax.f32 %v1403, 0.0
    %v1420 = vmax.f32 %v1404, 0.0
    %v1421 = vmax.f32 %v1405, 0.0
    %v1422 = vmax.f32 %v1406, 0.0
    %v1423 = vmax.f32 %v1407, 0.0
    %v1424 = vmax.f32 %v1408, 0.0
    %v1425 = vmax.f32 %v1409, 0.0
    %v1426 = vmax.f32 %v1410, 0.0
    %v1427 = vmax.f32 %v1411, 0.0
    %v1428 = vmax.f32 %v1412, 0.0
    %v1429 = vmax.f32 %v1413, 0.0
    %v1430 = vmax.f32 %v1414, 0.0
    %v1431 = vmax.f32 %v1415, 0.0
    %v1432 = vadd.f32 %v1416, %v1417
    %1433 = vadd.xlane.f32.xlu0 %v1432
    %v1434 = vpop.xlane.xlu0 %1433
    %v1435 = vadd.f32 %v1418, %v1419
    %1436 = vadd.xlane.f32.xlu0 %v1435
    %v1437 = vpop.xlane.xlu0 %1436
    %v1438 = vadd.f32 %v1420, %v1421
    %1439 = vadd.xlane.f32.xlu0 %v1438
    %v1440 = vpop.xlane.xlu0 %1439
    %v1441 = vadd.f32 %v1422, %v1423
    %1442 = vadd.xlane.f32.xlu0 %v1441
    %v1443 = vpop.xlane.xlu0 %1442
    %v1444 = vadd.f32 %v1424, %v1425
    %1445 = vadd.xlane.f32.xlu0 %v1444
    %v1446 = vpop.xlane.xlu0 %1445
    %v1447 = vadd.f32 %v1426, %v1427
    %1448 = vadd.xlane.f32.xlu0 %v1447
    %v1449 = vpop.xlane.xlu0 %1448
    %v1450 = vadd.f32 %v1428, %v1429
    %1451 = vadd.xlane.f32.xlu0 %v1450
    %v1452 = vpop.xlane.xlu0 %1451
    %v1453 = vadd.f32 %v1430, %v1431
    %1454 = vadd.xlane.f32.xlu0 %v1453
    %v1455 = vpop.xlane.xlu0 %1454
    %v1456 = vmul.f32 %v1434, %v805
    %v1457 = vmul.f32 %v1437, %v805
    %v1458 = vmul.f32 %v1440, %v805
    %v1459 = vmul.f32 %v1443, %v805
    %v1460 = vmul.f32 %v1446, %v805
    %v1461 = vmul.f32 %v1449, %v805
    %v1462 = vmul.f32 %v1452, %v805
    %v1463 = vmul.f32 %v1455, %v805
    %v1472 = vlaneseq
    %v1473 = vshrl.u32 %v1472, 7
    %v1474 = vsub.s32 %v1024, %v1473
    %v1475 = vrot.slane %v1456, %v1474
    %v1476 = vlaneseq
    %v1477 = vshrl.u32 %v1476, 7
    %v1478 = vsub.s32 %v1024, %v1477
    %v1479 = vrot.slane %v1457, %v1478
    %v1480 = vlaneseq
    %v1481 = vshrl.u32 %v1480, 7
    %v1482 = vsub.s32 %v1024, %v1481
    %v1483 = vrot.slane %v1458, %v1482
    %v1484 = vlaneseq
    %v1485 = vshrl.u32 %v1484, 7
    %v1486 = vsub.s32 %v1024, %v1485
    %v1487 = vrot.slane %v1459, %v1486
    %v1488 = vlaneseq
    %v1489 = vshrl.u32 %v1488, 7
    %v1490 = vsub.s32 %v1024, %v1489
    %v1491 = vrot.slane %v1460, %v1490
    %v1492 = vlaneseq
    %v1493 = vshrl.u32 %v1492, 7
    %v1494 = vsub.s32 %v1024, %v1493
    %v1495 = vrot.slane %v1461, %v1494
    %v1496 = vlaneseq
    %v1497 = vshrl.u32 %v1496, 7
    %v1498 = vsub.s32 %v1024, %v1497
    %v1499 = vrot.slane %v1462, %v1498
    %v1500 = vlaneseq
    %v1501 = vshrl.u32 %v1500, 7
    %v1502 = vsub.s32 %v1024, %v1501
    %v1503 = vrot.slane %v1463, %v1502
    %v1504 = vsel %vm1057, %v1479, %v1475
    %v1505 = vsel %vm1059, %v1483, %v1504
    %v1506 = vsel %vm1061, %v1487, %v1505
    %v1507 = vsel %vm1063, %v1491, %v1506
    %v1508 = vsel %vm1065, %v1495, %v1507
    %v1509 = vsel %vm1067, %v1499, %v1508
    %v1510 = vsel %vm1069, %v1503, %v1509
    %v1511 = vsel %vm1071, %v1510, 0
    %1513 = vmatprep.subr.mxu0 0.0
    %1514 = vmatpush1.msra.mxu0 %v70
    %1515 = vmatprep.subr.mxu0 0.0
    %1516 = vmatpush1.msra.mxu0 0.0
    %1517 = vmatprep.subr.mxu0 0.0
    %1518 = vmatpush1.msra.mxu0 0.0
    %1519 = vmatprep.subr.mxu0 0.0
    %1520 = vmatpush1.msra.mxu0 0.0
    %1521 = vmatprep.subr.mxu0 0.0
    %1522 = vmatpush1.msra.mxu0 0.0
    %1523 = vmatprep.subr.mxu0 0.0
    %1524 = vmatpush1.msra.mxu0 0.0
    %1525 = vmatprep.subr.mxu0 0.0
    %1526 = vmatpush1.msra.mxu0 0.0
    %1527 = vmatprep.subr.mxu0 0.0
    %1528 = vmatpush1.msra.mxu0 0.0
    %1529 = vmatprep.subr.mxu0 0.0
    %1530 = vmatpush1.msra.mxu0 0.0
    %1531 = vmatprep.subr.mxu0 0.0
    %1532 = vmatpush1.msra.mxu0 0.0
    %1533 = vmatprep.subr.mxu0 0.0
    %1534 = vmatpush1.msra.mxu0 0.0
    %1535 = vmatprep.subr.mxu0 0.0
    %1536 = vmatpush1.msra.mxu0 0.0
    %1537 = vmatprep.subr.mxu0 0.0
    %1538 = vmatpush1.msra.mxu0 0.0
    %1539 = vmatprep.subr.mxu0 0.0
    %1540 = vmatpush1.msra.mxu0 0.0
    %1541 = vmatprep.subr.mxu0 0.0
    %1542 = vmatpush1.msra.mxu0 0.0
    %1543 = vmatprep.subr.mxu0 0.0
    %1544 = vmatpush1.msra.mxu0 0.0
    %1545 = vmatprep.subr.mxu0 0.0
    %1546 = vmatpush1.msra.mxu0 0.0
    %1547 = vmatprep.subr.mxu0 0.0
    %1548 = vmatpush1.msra.mxu0 0.0
    %1549 = vmatprep.subr.mxu0 0.0
    %1550 = vmatpush1.msra.mxu0 0.0
    %1551 = vmatprep.subr.mxu0 0.0
    %1552 = vmatpush1.msra.mxu0 0.0
    %1553 = vmatprep.subr.mxu0 0.0
    %1554 = vmatpush1.msra.mxu0 0.0
    %1555 = vmatprep.subr.mxu0 0.0
    %1556 = vmatpush1.msra.mxu0 0.0
    %1557 = vmatprep.subr.mxu0 0.0
    %1558 = vmatpush1.msra.mxu0 0.0
    %1559 = vmatprep.subr.mxu0 0.0
    %1560 = vmatpush1.msra.mxu0 0.0
    %1561 = vmatprep.subr.mxu0 0.0
    %1562 = vmatpush1.msra.mxu0 0.0
    %1563 = vmatprep.subr.mxu0 0.0
    %1564 = vmatpush1.msra.mxu0 0.0
    %1565 = vmatprep.subr.mxu0 0.0
    %1566 = vmatpush1.msra.mxu0 0.0
    %1567 = vmatprep.subr.mxu0 0.0
    %1568 = vmatpush1.msra.mxu0 0.0
    %1569 = vmatprep.subr.mxu0 0.0
    %1570 = vmatpush1.msra.mxu0 0.0
    %1571 = vmatprep.subr.mxu0 0.0
    %1572 = vmatpush1.msra.mxu0 0.0
    %1573 = vmatprep.subr.mxu0 0.0
    %1574 = vmatpush1.msra.mxu0 0.0
    %1575 = vmatprep.subr.mxu0 0.0
    %1576 = vmatpush1.msra.mxu0 0.0
    %1577 = vmatprep.mubr.f32.mxu0 0.0
    %1578 = vmatmul.mubr.f32.gmra.mrb[0].mxu0 %v1511
    %v1579 = vpop.f32.mrb[0].mxu0
    %v1580 = vadd.f32 0.0, %v1579
    %v1581 = vpop.f32.mrb[0].mxu0
    %1582 = vdwg.mxu0
    %v1583 = vadd.f32 %v1260, %v1580
    %1585 = vset.pattern.permute.xlu0 0
    %1586 = vperm.xlu0 %1585, %v51
    %v1587 = vpop.permute.xlu0 %1586
    %v1589 = vmul.f32 %v139, %v1587
    %v1590 = vmul.f32 %v143, %v1587
    %v1591 = vmul.f32 %v147, %v1587
    %v1592 = vmul.f32 %v151, %v1587
    %v1593 = vmul.f32 %v155, %v1587
    %v1594 = vmul.f32 %v159, %v1587
    %v1595 = vmul.f32 %v163, %v1587
    %v1596 = vmul.f32 %v167, %v1587
    %v1597 = vmul.f32 %v171, %v1587
    %v1598 = vmul.f32 %v175, %v1587
    %v1599 = vmul.f32 %v179, %v1587
    %v1600 = vmul.f32 %v183, %v1587
    %v1601 = vmul.f32 %v187, %v1587
    %v1602 = vmul.f32 %v191, %v1587
    %v1603 = vmul.f32 %v195, %v1587
    %v1604 = vmul.f32 %v199, %v1587
    %1606 = vset.pattern.permute.xlu0 0
    %1607 = vperm.xlu0 %1606, %v67
    %v1608 = vpop.permute.xlu0 %1607
    %v1610 = vadd.f32 %v1589, %v1608
    %v1611 = vadd.f32 %v1590, %v1608
    %v1612 = vadd.f32 %v1591, %v1608
    %v1613 = vadd.f32 %v1592, %v1608
    %v1614 = vadd.f32 %v1593, %v1608
    %v1615 = vadd.f32 %v1594, %v1608
    %v1616 = vadd.f32 %v1595, %v1608
    %v1617 = vadd.f32 %v1596, %v1608
    %v1618 = vadd.f32 %v1597, %v1608
    %v1619 = vadd.f32 %v1598, %v1608
    %v1620 = vadd.f32 %v1599, %v1608
    %v1621 = vadd.f32 %v1600, %v1608
    %v1622 = vadd.f32 %v1601, %v1608
    %v1623 = vadd.f32 %v1602, %v1608
    %v1624 = vadd.f32 %v1603, %v1608
    %v1625 = vadd.f32 %v1604, %v1608
    %1627 = vset.pattern.permute.xlu0 0
    %1628 = vperm.xlu0 %1627, %v55
    %v1629 = vpop.permute.xlu0 %1628
    %v1631 = vmul.f32 %v313, %v1629
    %v1632 = vmul.f32 %v317, %v1629
    %v1633 = vmul.f32 %v321, %v1629
    %v1634 = vmul.f32 %v325, %v1629
    %v1635 = vmul.f32 %v329, %v1629
    %v1636 = vmul.f32 %v333, %v1629
    %v1637 = vmul.f32 %v337, %v1629
    %v1638 = vmul.f32 %v341, %v1629
    %v1639 = vmul.f32 %v345, %v1629
    %v1640 = vmul.f32 %v349, %v1629
    %v1641 = vmul.f32 %v353, %v1629
    %v1642 = vmul.f32 %v357, %v1629
    %v1643 = vmul.f32 %v361, %v1629
    %v1644 = vmul.f32 %v365, %v1629
    %v1645 = vmul.f32 %v369, %v1629
    %v1646 = vmul.f32 %v373, %v1629
    %v1647 = vadd.f32 %v1610, %v1631
    %v1648 = vadd.f32 %v1611, %v1632
    %v1649 = vadd.f32 %v1612, %v1633
    %v1650 = vadd.f32 %v1613, %v1634
    %v1651 = vadd.f32 %v1614, %v1635
    %v1652 = vadd.f32 %v1615, %v1636
    %v1653 = vadd.f32 %v1616, %v1637
    %v1654 = vadd.f32 %v1617, %v1638
    %v1655 = vadd.f32 %v1618, %v1639
    %v1656 = vadd.f32 %v1619, %v1640
    %v1657 = vadd.f32 %v1620, %v1641
    %v1658 = vadd.f32 %v1621, %v1642
    %v1659 = vadd.f32 %v1622, %v1643
    %v1660 = vadd.f32 %v1623, %v1644
    %v1661 = vadd.f32 %v1624, %v1645
    %v1662 = vadd.f32 %v1625, %v1646
    %1664 = vset.pattern.permute.xlu0 0
    %1665 = vperm.xlu0 %1664, %v59
    %v1666 = vpop.permute.xlu0 %1665
    %v1668 = vmul.f32 %v482, %v1666
    %v1669 = vmul.f32 %v486, %v1666
    %v1670 = vmul.f32 %v490, %v1666
    %v1671 = vmul.f32 %v494, %v1666
    %v1672 = vmul.f32 %v498, %v1666
    %v1673 = vmul.f32 %v502, %v1666
    %v1674 = vmul.f32 %v506, %v1666
    %v1675 = vmul.f32 %v510, %v1666
    %v1676 = vmul.f32 %v514, %v1666
    %v1677 = vmul.f32 %v518, %v1666
    %v1678 = vmul.f32 %v522, %v1666
    %v1679 = vmul.f32 %v526, %v1666
    %v1680 = vmul.f32 %v530, %v1666
    %v1681 = vmul.f32 %v534, %v1666
    %v1682 = vmul.f32 %v538, %v1666
    %v1683 = vmul.f32 %v542, %v1666
    %v1684 = vadd.f32 %v1647, %v1668
    %v1685 = vadd.f32 %v1648, %v1669
    %v1686 = vadd.f32 %v1649, %v1670
    %v1687 = vadd.f32 %v1650, %v1671
    %v1688 = vadd.f32 %v1651, %v1672
    %v1689 = vadd.f32 %v1652, %v1673
    %v1690 = vadd.f32 %v1653, %v1674
    %v1691 = vadd.f32 %v1654, %v1675
    %v1692 = vadd.f32 %v1655, %v1676
    %v1693 = vadd.f32 %v1656, %v1677
    %v1694 = vadd.f32 %v1657, %v1678
    %v1695 = vadd.f32 %v1658, %v1679
    %v1696 = vadd.f32 %v1659, %v1680
    %v1697 = vadd.f32 %v1660, %v1681
    %v1698 = vadd.f32 %v1661, %v1682
    %v1699 = vadd.f32 %v1662, %v1683
    %1701 = vset.pattern.permute.xlu0 0
    %1702 = vperm.xlu0 %1701, %v63
    %v1703 = vpop.permute.xlu0 %1702
    %v1705 = vmul.f32 %v651, %v1703
    %v1706 = vmul.f32 %v655, %v1703
    %v1707 = vmul.f32 %v659, %v1703
    %v1708 = vmul.f32 %v663, %v1703
    %v1709 = vmul.f32 %v667, %v1703
    %v1710 = vmul.f32 %v671, %v1703
    %v1711 = vmul.f32 %v675, %v1703
    %v1712 = vmul.f32 %v679, %v1703
    %v1713 = vmul.f32 %v683, %v1703
    %v1714 = vmul.f32 %v687, %v1703
    %v1715 = vmul.f32 %v691, %v1703
    %v1716 = vmul.f32 %v695, %v1703
    %v1717 = vmul.f32 %v699, %v1703
    %v1718 = vmul.f32 %v703, %v1703
    %v1719 = vmul.f32 %v707, %v1703
    %v1720 = vmul.f32 %v711, %v1703
    %v1721 = vadd.f32 %v1684, %v1705
    %v1722 = vadd.f32 %v1685, %v1706
    %v1723 = vadd.f32 %v1686, %v1707
    %v1724 = vadd.f32 %v1687, %v1708
    %v1725 = vadd.f32 %v1688, %v1709
    %v1726 = vadd.f32 %v1689, %v1710
    %v1727 = vadd.f32 %v1690, %v1711
    %v1728 = vadd.f32 %v1691, %v1712
    %v1729 = vadd.f32 %v1692, %v1713
    %v1730 = vadd.f32 %v1693, %v1714
    %v1731 = vadd.f32 %v1694, %v1715
    %v1732 = vadd.f32 %v1695, %v1716
    %v1733 = vadd.f32 %v1696, %v1717
    %v1734 = vadd.f32 %v1697, %v1718
    %v1735 = vadd.f32 %v1698, %v1719
    %v1736 = vadd.f32 %v1699, %v1720
    %v1737 = vmax.f32 %v1721, 0.0
    %v1738 = vmax.f32 %v1722, 0.0
    %v1739 = vmax.f32 %v1723, 0.0
    %v1740 = vmax.f32 %v1724, 0.0
    %v1741 = vmax.f32 %v1725, 0.0
    %v1742 = vmax.f32 %v1726, 0.0
    %v1743 = vmax.f32 %v1727, 0.0
    %v1744 = vmax.f32 %v1728, 0.0
    %v1745 = vmax.f32 %v1729, 0.0
    %v1746 = vmax.f32 %v1730, 0.0
    %v1747 = vmax.f32 %v1731, 0.0
    %v1748 = vmax.f32 %v1732, 0.0
    %v1749 = vmax.f32 %v1733, 0.0
    %v1750 = vmax.f32 %v1734, 0.0
    %v1751 = vmax.f32 %v1735, 0.0
    %v1752 = vmax.f32 %v1736, 0.0
    %v1753 = vadd.f32 %v1737, %v1738
    %1754 = vadd.xlane.f32.xlu0 %v1753
    %v1755 = vpop.xlane.xlu0 %1754
    %v1756 = vadd.f32 %v1739, %v1740
    %1757 = vadd.xlane.f32.xlu0 %v1756
    %v1758 = vpop.xlane.xlu0 %1757
    %v1759 = vadd.f32 %v1741, %v1742
    %1760 = vadd.xlane.f32.xlu0 %v1759
    %v1761 = vpop.xlane.xlu0 %1760
    %v1762 = vadd.f32 %v1743, %v1744
    %1763 = vadd.xlane.f32.xlu0 %v1762
    %v1764 = vpop.xlane.xlu0 %1763
    %v1765 = vadd.f32 %v1745, %v1746
    %1766 = vadd.xlane.f32.xlu0 %v1765
    %v1767 = vpop.xlane.xlu0 %1766
    %v1768 = vadd.f32 %v1747, %v1748
    %1769 = vadd.xlane.f32.xlu0 %v1768
    %v1770 = vpop.xlane.xlu0 %1769
    %v1771 = vadd.f32 %v1749, %v1750
    %1772 = vadd.xlane.f32.xlu0 %v1771
    %v1773 = vpop.xlane.xlu0 %1772
    %v1774 = vadd.f32 %v1751, %v1752
    %1775 = vadd.xlane.f32.xlu0 %v1774
    %v1776 = vpop.xlane.xlu0 %1775
    %v1777 = vmul.f32 %v1755, %v805
    %v1778 = vmul.f32 %v1758, %v805
    %v1779 = vmul.f32 %v1761, %v805
    %v1780 = vmul.f32 %v1764, %v805
    %v1781 = vmul.f32 %v1767, %v805
    %v1782 = vmul.f32 %v1770, %v805
    %v1783 = vmul.f32 %v1773, %v805
    %v1784 = vmul.f32 %v1776, %v805
    %v1793 = vlaneseq
    %v1794 = vshrl.u32 %v1793, 7
    %v1795 = vsub.s32 %v1024, %v1794
    %v1796 = vrot.slane %v1777, %v1795
    %v1797 = vlaneseq
    %v1798 = vshrl.u32 %v1797, 7
    %v1799 = vsub.s32 %v1024, %v1798
    %v1800 = vrot.slane %v1778, %v1799
    %v1801 = vlaneseq
    %v1802 = vshrl.u32 %v1801, 7
    %v1803 = vsub.s32 %v1024, %v1802
    %v1804 = vrot.slane %v1779, %v1803
    %v1805 = vlaneseq
    %v1806 = vshrl.u32 %v1805, 7
    %v1807 = vsub.s32 %v1024, %v1806
    %v1808 = vrot.slane %v1780, %v1807
    %v1809 = vlaneseq
    %v1810 = vshrl.u32 %v1809, 7
    %v1811 = vsub.s32 %v1024, %v1810
    %v1812 = vrot.slane %v1781, %v1811
    %v1813 = vlaneseq
    %v1814 = vshrl.u32 %v1813, 7
    %v1815 = vsub.s32 %v1024, %v1814
    %v1816 = vrot.slane %v1782, %v1815
    %v1817 = vlaneseq
    %v1818 = vshrl.u32 %v1817, 7
    %v1819 = vsub.s32 %v1024, %v1818
    %v1820 = vrot.slane %v1783, %v1819
    %v1821 = vlaneseq
    %v1822 = vshrl.u32 %v1821, 7
    %v1823 = vsub.s32 %v1024, %v1822
    %v1824 = vrot.slane %v1784, %v1823
    %v1825 = vsel %vm1057, %v1800, %v1796
    %v1826 = vsel %vm1059, %v1804, %v1825
    %v1827 = vsel %vm1061, %v1808, %v1826
    %v1828 = vsel %vm1063, %v1812, %v1827
    %v1829 = vsel %vm1065, %v1816, %v1828
    %v1830 = vsel %vm1067, %v1820, %v1829
    %v1831 = vsel %vm1069, %v1824, %v1830
    %v1832 = vsel %vm1071, %v1831, 0
    %1834 = vmatprep.subr.mxu0 0.0
    %1835 = vmatpush1.msra.mxu0 %v71
    %1836 = vmatprep.subr.mxu0 0.0
    %1837 = vmatpush1.msra.mxu0 0.0
    %1838 = vmatprep.subr.mxu0 0.0
    %1839 = vmatpush1.msra.mxu0 0.0
    %1840 = vmatprep.subr.mxu0 0.0
    %1841 = vmatpush1.msra.mxu0 0.0
    %1842 = vmatprep.subr.mxu0 0.0
    %1843 = vmatpush1.msra.mxu0 0.0
    %1844 = vmatprep.subr.mxu0 0.0
    %1845 = vmatpush1.msra.mxu0 0.0
    %1846 = vmatprep.subr.mxu0 0.0
    %1847 = vmatpush1.msra.mxu0 0.0
    %1848 = vmatprep.subr.mxu0 0.0
    %1849 = vmatpush1.msra.mxu0 0.0
    %1850 = vmatprep.subr.mxu0 0.0
    %1851 = vmatpush1.msra.mxu0 0.0
    %1852 = vmatprep.subr.mxu0 0.0
    %1853 = vmatpush1.msra.mxu0 0.0
    %1854 = vmatprep.subr.mxu0 0.0
    %1855 = vmatpush1.msra.mxu0 0.0
    %1856 = vmatprep.subr.mxu0 0.0
    %1857 = vmatpush1.msra.mxu0 0.0
    %1858 = vmatprep.subr.mxu0 0.0
    %1859 = vmatpush1.msra.mxu0 0.0
    %1860 = vmatprep.subr.mxu0 0.0
    %1861 = vmatpush1.msra.mxu0 0.0
    %1862 = vmatprep.subr.mxu0 0.0
    %1863 = vmatpush1.msra.mxu0 0.0
    %1864 = vmatprep.subr.mxu0 0.0
    %1865 = vmatpush1.msra.mxu0 0.0
    %1866 = vmatprep.subr.mxu0 0.0
    %1867 = vmatpush1.msra.mxu0 0.0
    %1868 = vmatprep.subr.mxu0 0.0
    %1869 = vmatpush1.msra.mxu0 0.0
    %1870 = vmatprep.subr.mxu0 0.0
    %1871 = vmatpush1.msra.mxu0 0.0
    %1872 = vmatprep.subr.mxu0 0.0
    %1873 = vmatpush1.msra.mxu0 0.0
    %1874 = vmatprep.subr.mxu0 0.0
    %1875 = vmatpush1.msra.mxu0 0.0
    %1876 = vmatprep.subr.mxu0 0.0
    %1877 = vmatpush1.msra.mxu0 0.0
    %1878 = vmatprep.subr.mxu0 0.0
    %1879 = vmatpush1.msra.mxu0 0.0
    %1880 = vmatprep.subr.mxu0 0.0
    %1881 = vmatpush1.msra.mxu0 0.0
    %1882 = vmatprep.subr.mxu0 0.0
    %1883 = vmatpush1.msra.mxu0 0.0
    %1884 = vmatprep.subr.mxu0 0.0
    %1885 = vmatpush1.msra.mxu0 0.0
    %1886 = vmatprep.subr.mxu0 0.0
    %1887 = vmatpush1.msra.mxu0 0.0
    %1888 = vmatprep.subr.mxu0 0.0
    %1889 = vmatpush1.msra.mxu0 0.0
    %1890 = vmatprep.subr.mxu0 0.0
    %1891 = vmatpush1.msra.mxu0 0.0
    %1892 = vmatprep.subr.mxu0 0.0
    %1893 = vmatpush1.msra.mxu0 0.0
    %1894 = vmatprep.subr.mxu0 0.0
    %1895 = vmatpush1.msra.mxu0 0.0
    %1896 = vmatprep.subr.mxu0 0.0
    %1897 = vmatpush1.msra.mxu0 0.0
    %1898 = vmatprep.mubr.f32.mxu0 0.0
    %1899 = vmatmul.mubr.f32.gmra.mrb[0].mxu0 %v1832
    %v1900 = vpop.f32.mrb[0].mxu0
    %v1901 = vadd.f32 0.0, %v1900
    %v1902 = vpop.f32.mrb[0].mxu0
    %1903 = vdwg.mxu0
    %v1904 = vadd.f32 %v1583, %v1901
    %v1906 = vlaneseq
    %v1907 = vshrl.u32 %v1906, 7
    %v1908 = vsub.s32 0, %v1907
    %v1909 = vrot.slane %v72, %v1908
    %v1911 = vadd.f32 %v1904, %v1909
    %s1912 = scalar_lea.vmem %s0, 64
    %v1913 = vld [vmem:[%s1912] sm:$0xff]
    %v1914 = vld [vmem:[%s1912 + $0x8] sm:$0xff]
    %s1915 = scalar_lea.vmem %s0, 80
    %v1916 = vld [vmem:[%s1915] sm:$0xff]
    %v1917 = vld [vmem:[%s1915 + $0x8] sm:$0xff]
    %s1918 = scalar_lea.vmem %s0, 96
    %v1919 = vld [vmem:[%s1918] sm:$0xff]
    %v1920 = vld [vmem:[%s1918 + $0x8] sm:$0xff]
    %s1921 = scalar_lea.vmem %s0, 112
    %v1922 = vld [vmem:[%s1921] sm:$0xff]
    %v1923 = vld [vmem:[%s1921 + $0x8] sm:$0xff]
    %v1926 = vcombine.low %v1913, %v1914
    %v1927 = vcombine.high %v1913, %v1914
    %v1929 = vunpack.c.l.s4 1966171168
    %v1930 = vunpack.c.0.s8 %v1929
    %v1931 = vlaneseq
    %v1932 = vshrl.u32 %v1931, 7
    %v1933 = vsub.s32 %v1930, %v1932
    %v1934 = vrot.slane %v1926, %v1933
    %v1936 = vunpack.c.l.s4 1966171168
    %v1937 = vunpack.c.0.s8 %v1936
    %v1938 = vlaneseq
    %v1939 = vshrl.u32 %v1938, 7
    %v1940 = vsub.s32 %v1937, %v1939
    %v1941 = vrot.slane %v1927, %v1940
    %v1942 = vcombine.high %v1934, %v1934
    %v1943 = vcombine.high %v1941, %v1941
    %v1945 = vunpack.c.l.s4 1966171168
    %v1946 = vunpack.c.0.s8 %v1945
    %v1947 = vlaneseq
    %v1948 = vshrl.u32 %v1947, 7
    %v1949 = vsub.s32 %v1946, %v1948
    %v1950 = vrot.slane %v1934, %v1949
    %v1952 = vunpack.c.l.s4 1966171168
    %v1953 = vunpack.c.0.s8 %v1952
    %v1954 = vlaneseq
    %v1955 = vshrl.u32 %v1954, 7
    %v1956 = vsub.s32 %v1953, %v1955
    %v1957 = vrot.slane %v1941, %v1956
    %v1959 = vunpack.c.l.s4 1966171168
    %v1960 = vunpack.c.0.s8 %v1959
    %v1961 = vlaneseq
    %v1962 = vshrl.u32 %v1961, 7
    %v1963 = vsub.s32 %v1960, %v1962
    %v1964 = vrot.slane %v1942, %v1963
    %v1966 = vunpack.c.l.s4 1966171168
    %v1967 = vunpack.c.0.s8 %v1966
    %v1968 = vlaneseq
    %v1969 = vshrl.u32 %v1968, 7
    %v1970 = vsub.s32 %v1967, %v1969
    %v1971 = vrot.slane %v1943, %v1970
    %v1972 = vcombine.high %v1950, %v1950
    %v1973 = vcombine.high %v1957, %v1957
    %v1974 = vcombine.high %v1964, %v1964
    %v1975 = vcombine.high %v1971, %v1971
    %v1976 = vlaneseq
    %v1977 = vshrl.u32 %v1976, 7
    %v1978 = vsub.s32 0, %v1977
    %v1979 = vrot.slane %v1950, %v1978
    %v1980 = vlaneseq
    %v1981 = vshrl.u32 %v1980, 7
    %v1982 = vsub.s32 1, %v1981
    %v1983 = vrot.slane %v1950, %v1982
    %v1984 = vlaneseq
    %v1985 = vshrl.u32 %v1984, 7
    %v1986 = vsub.s32 0, %v1985
    %v1987 = vrot.slane %v1964, %v1986
    %v1988 = vlaneseq
    %v1989 = vshrl.u32 %v1988, 7
    %v1990 = vsub.s32 1, %v1989
    %v1991 = vrot.slane %v1964, %v1990
    %v1992 = vlaneseq
    %v1993 = vshrl.u32 %v1992, 7
    %v1994 = vsub.s32 0, %v1993
    %v1995 = vrot.slane %v1972, %v1994
    %v1996 = vlaneseq
    %v1997 = vshrl.u32 %v1996, 7
    %v1998 = vsub.s32 1, %v1997
    %v1999 = vrot.slane %v1972, %v1998
    %v2000 = vlaneseq
    %v2001 = vshrl.u32 %v2000, 7
    %v2002 = vsub.s32 0, %v2001
    %v2003 = vrot.slane %v1974, %v2002
    %v2004 = vlaneseq
    %v2005 = vshrl.u32 %v2004, 7
    %v2006 = vsub.s32 1, %v2005
    %v2007 = vrot.slane %v1974, %v2006
    %v2008 = vlaneseq
    %v2009 = vshrl.u32 %v2008, 7
    %v2010 = vsub.s32 0, %v2009
    %v2011 = vrot.slane %v1957, %v2010
    %v2012 = vlaneseq
    %v2013 = vshrl.u32 %v2012, 7
    %v2014 = vsub.s32 1, %v2013
    %v2015 = vrot.slane %v1957, %v2014
    %v2016 = vlaneseq
    %v2017 = vshrl.u32 %v2016, 7
    %v2018 = vsub.s32 0, %v2017
    %v2019 = vrot.slane %v1971, %v2018
    %v2020 = vlaneseq
    %v2021 = vshrl.u32 %v2020, 7
    %v2022 = vsub.s32 1, %v2021
    %v2023 = vrot.slane %v1971, %v2022
    %v2024 = vlaneseq
    %v2025 = vshrl.u32 %v2024, 7
    %v2026 = vsub.s32 0, %v2025
    %v2027 = vrot.slane %v1973, %v2026
    %v2028 = vlaneseq
    %v2029 = vshrl.u32 %v2028, 7
    %v2030 = vsub.s32 1, %v2029
    %v2031 = vrot.slane %v1973, %v2030
    %v2032 = vlaneseq
    %v2033 = vshrl.u32 %v2032, 7
    %v2034 = vsub.s32 0, %v2033
    %v2035 = vrot.slane %v1975, %v2034
    %v2036 = vlaneseq
    %v2037 = vshrl.u32 %v2036, 7
    %v2038 = vsub.s32 1, %v2037
    %v2039 = vrot.slane %v1975, %v2038
    %v2056 = vmul.f32 %v1979, %v219
    %v2057 = vmul.f32 %v1983, %v219
    %v2058 = vmul.f32 %v1987, %v219
    %v2059 = vmul.f32 %v1991, %v219
    %v2060 = vmul.f32 %v1995, %v219
    %v2061 = vmul.f32 %v1999, %v219
    %v2062 = vmul.f32 %v2003, %v219
    %v2063 = vmul.f32 %v2007, %v219
    %v2064 = vmul.f32 %v2011, %v219
    %v2065 = vmul.f32 %v2015, %v219
    %v2066 = vmul.f32 %v2019, %v219
    %v2067 = vmul.f32 %v2023, %v219
    %v2068 = vmul.f32 %v2027, %v219
    %v2069 = vmul.f32 %v2031, %v219
    %v2070 = vmul.f32 %v2035, %v219
    %v2071 = vmul.f32 %v2039, %v219
    %v2072 = vadd.f32 %v2056, %v240
    %v2073 = vadd.f32 %v2057, %v240
    %v2074 = vadd.f32 %v2058, %v240
    %v2075 = vadd.f32 %v2059, %v240
    %v2076 = vadd.f32 %v2060, %v240
    %v2077 = vadd.f32 %v2061, %v240
    %v2078 = vadd.f32 %v2062, %v240
    %v2079 = vadd.f32 %v2063, %v240
    %v2080 = vadd.f32 %v2064, %v240
    %v2081 = vadd.f32 %v2065, %v240
    %v2082 = vadd.f32 %v2066, %v240
    %v2083 = vadd.f32 %v2067, %v240
    %v2084 = vadd.f32 %v2068, %v240
    %v2085 = vadd.f32 %v2069, %v240
    %v2086 = vadd.f32 %v2070, %v240
    %v2087 = vadd.f32 %v2071, %v240
    %v2090 = vcombine.low %v1916, %v1917
    %v2091 = vcombine.high %v1916, %v1917
    %v2093 = vunpack.c.l.s4 1966171168
    %v2094 = vunpack.c.0.s8 %v2093
    %v2095 = vlaneseq
    %v2096 = vshrl.u32 %v2095, 7
    %v2097 = vsub.s32 %v2094, %v2096
    %v2098 = vrot.slane %v2090, %v2097
    %v2100 = vunpack.c.l.s4 1966171168
    %v2101 = vunpack.c.0.s8 %v2100
    %v2102 = vlaneseq
    %v2103 = vshrl.u32 %v2102, 7
    %v2104 = vsub.s32 %v2101, %v2103
    %v2105 = vrot.slane %v2091, %v2104
    %v2106 = vcombine.high %v2098, %v2098
    %v2107 = vcombine.high %v2105, %v2105
    %v2109 = vunpack.c.l.s4 1966171168
    %v2110 = vunpack.c.0.s8 %v2109
    %v2111 = vlaneseq
    %v2112 = vshrl.u32 %v2111, 7
    %v2113 = vsub.s32 %v2110, %v2112
    %v2114 = vrot.slane %v2098, %v2113
    %v2116 = vunpack.c.l.s4 1966171168
    %v2117 = vunpack.c.0.s8 %v2116
    %v2118 = vlaneseq
    %v2119 = vshrl.u32 %v2118, 7
    %v2120 = vsub.s32 %v2117, %v2119
    %v2121 = vrot.slane %v2105, %v2120
    %v2123 = vunpack.c.l.s4 1966171168
    %v2124 = vunpack.c.0.s8 %v2123
    %v2125 = vlaneseq
    %v2126 = vshrl.u32 %v2125, 7
    %v2127 = vsub.s32 %v2124, %v2126
    %v2128 = vrot.slane %v2106, %v2127
    %v2130 = vunpack.c.l.s4 1966171168
    %v2131 = vunpack.c.0.s8 %v2130
    %v2132 = vlaneseq
    %v2133 = vshrl.u32 %v2132, 7
    %v2134 = vsub.s32 %v2131, %v2133
    %v2135 = vrot.slane %v2107, %v2134
    %v2136 = vcombine.high %v2114, %v2114
    %v2137 = vcombine.high %v2121, %v2121
    %v2138 = vcombine.high %v2128, %v2128
    %v2139 = vcombine.high %v2135, %v2135
    %v2140 = vlaneseq
    %v2141 = vshrl.u32 %v2140, 7
    %v2142 = vsub.s32 0, %v2141
    %v2143 = vrot.slane %v2114, %v2142
    %v2144 = vlaneseq
    %v2145 = vshrl.u32 %v2144, 7
    %v2146 = vsub.s32 1, %v2145
    %v2147 = vrot.slane %v2114, %v2146
    %v2148 = vlaneseq
    %v2149 = vshrl.u32 %v2148, 7
    %v2150 = vsub.s32 0, %v2149
    %v2151 = vrot.slane %v2128, %v2150
    %v2152 = vlaneseq
    %v2153 = vshrl.u32 %v2152, 7
    %v2154 = vsub.s32 1, %v2153
    %v2155 = vrot.slane %v2128, %v2154
    %v2156 = vlaneseq
    %v2157 = vshrl.u32 %v2156, 7
    %v2158 = vsub.s32 0, %v2157
    %v2159 = vrot.slane %v2136, %v2158
    %v2160 = vlaneseq
    %v2161 = vshrl.u32 %v2160, 7
    %v2162 = vsub.s32 1, %v2161
    %v2163 = vrot.slane %v2136, %v2162
    %v2164 = vlaneseq
    %v2165 = vshrl.u32 %v2164, 7
    %v2166 = vsub.s32 0, %v2165
    %v2167 = vrot.slane %v2138, %v2166
    %v2168 = vlaneseq
    %v2169 = vshrl.u32 %v2168, 7
    %v2170 = vsub.s32 1, %v2169
    %v2171 = vrot.slane %v2138, %v2170
    %v2172 = vlaneseq
    %v2173 = vshrl.u32 %v2172, 7
    %v2174 = vsub.s32 0, %v2173
    %v2175 = vrot.slane %v2121, %v2174
    %v2176 = vlaneseq
    %v2177 = vshrl.u32 %v2176, 7
    %v2178 = vsub.s32 1, %v2177
    %v2179 = vrot.slane %v2121, %v2178
    %v2180 = vlaneseq
    %v2181 = vshrl.u32 %v2180, 7
    %v2182 = vsub.s32 0, %v2181
    %v2183 = vrot.slane %v2135, %v2182
    %v2184 = vlaneseq
    %v2185 = vshrl.u32 %v2184, 7
    %v2186 = vsub.s32 1, %v2185
    %v2187 = vrot.slane %v2135, %v2186
    %v2188 = vlaneseq
    %v2189 = vshrl.u32 %v2188, 7
    %v2190 = vsub.s32 0, %v2189
    %v2191 = vrot.slane %v2137, %v2190
    %v2192 = vlaneseq
    %v2193 = vshrl.u32 %v2192, 7
    %v2194 = vsub.s32 1, %v2193
    %v2195 = vrot.slane %v2137, %v2194
    %v2196 = vlaneseq
    %v2197 = vshrl.u32 %v2196, 7
    %v2198 = vsub.s32 0, %v2197
    %v2199 = vrot.slane %v2139, %v2198
    %v2200 = vlaneseq
    %v2201 = vshrl.u32 %v2200, 7
    %v2202 = vsub.s32 1, %v2201
    %v2203 = vrot.slane %v2139, %v2202
    %v2220 = vmul.f32 %v2143, %v393
    %v2221 = vmul.f32 %v2147, %v393
    %v2222 = vmul.f32 %v2151, %v393
    %v2223 = vmul.f32 %v2155, %v393
    %v2224 = vmul.f32 %v2159, %v393
    %v2225 = vmul.f32 %v2163, %v393
    %v2226 = vmul.f32 %v2167, %v393
    %v2227 = vmul.f32 %v2171, %v393
    %v2228 = vmul.f32 %v2175, %v393
    %v2229 = vmul.f32 %v2179, %v393
    %v2230 = vmul.f32 %v2183, %v393
    %v2231 = vmul.f32 %v2187, %v393
    %v2232 = vmul.f32 %v2191, %v393
    %v2233 = vmul.f32 %v2195, %v393
    %v2234 = vmul.f32 %v2199, %v393
    %v2235 = vmul.f32 %v2203, %v393
    %v2236 = vadd.f32 %v2072, %v2220
    %v2237 = vadd.f32 %v2073, %v2221
    %v2238 = vadd.f32 %v2074, %v2222
    %v2239 = vadd.f32 %v2075, %v2223
    %v2240 = vadd.f32 %v2076, %v2224
    %v2241 = vadd.f32 %v2077, %v2225
    %v2242 = vadd.f32 %v2078, %v2226
    %v2243 = vadd.f32 %v2079, %v2227
    %v2244 = vadd.f32 %v2080, %v2228
    %v2245 = vadd.f32 %v2081, %v2229
    %v2246 = vadd.f32 %v2082, %v2230
    %v2247 = vadd.f32 %v2083, %v2231
    %v2248 = vadd.f32 %v2084, %v2232
    %v2249 = vadd.f32 %v2085, %v2233
    %v2250 = vadd.f32 %v2086, %v2234
    %v2251 = vadd.f32 %v2087, %v2235
    %v2254 = vcombine.low %v1919, %v1920
    %v2255 = vcombine.high %v1919, %v1920
    %v2257 = vunpack.c.l.s4 1966171168
    %v2258 = vunpack.c.0.s8 %v2257
    %v2259 = vlaneseq
    %v2260 = vshrl.u32 %v2259, 7
    %v2261 = vsub.s32 %v2258, %v2260
    %v2262 = vrot.slane %v2254, %v2261
    %v2264 = vunpack.c.l.s4 1966171168
    %v2265 = vunpack.c.0.s8 %v2264
    %v2266 = vlaneseq
    %v2267 = vshrl.u32 %v2266, 7
    %v2268 = vsub.s32 %v2265, %v2267
    %v2269 = vrot.slane %v2255, %v2268
    %v2270 = vcombine.high %v2262, %v2262
    %v2271 = vcombine.high %v2269, %v2269
    %v2273 = vunpack.c.l.s4 1966171168
    %v2274 = vunpack.c.0.s8 %v2273
    %v2275 = vlaneseq
    %v2276 = vshrl.u32 %v2275, 7
    %v2277 = vsub.s32 %v2274, %v2276
    %v2278 = vrot.slane %v2262, %v2277
    %v2280 = vunpack.c.l.s4 1966171168
    %v2281 = vunpack.c.0.s8 %v2280
    %v2282 = vlaneseq
    %v2283 = vshrl.u32 %v2282, 7
    %v2284 = vsub.s32 %v2281, %v2283
    %v2285 = vrot.slane %v2269, %v2284
    %v2287 = vunpack.c.l.s4 1966171168
    %v2288 = vunpack.c.0.s8 %v2287
    %v2289 = vlaneseq
    %v2290 = vshrl.u32 %v2289, 7
    %v2291 = vsub.s32 %v2288, %v2290
    %v2292 = vrot.slane %v2270, %v2291
    %v2294 = vunpack.c.l.s4 1966171168
    %v2295 = vunpack.c.0.s8 %v2294
    %v2296 = vlaneseq
    %v2297 = vshrl.u32 %v2296, 7
    %v2298 = vsub.s32 %v2295, %v2297
    %v2299 = vrot.slane %v2271, %v2298
    %v2300 = vcombine.high %v2278, %v2278
    %v2301 = vcombine.high %v2285, %v2285
    %v2302 = vcombine.high %v2292, %v2292
    %v2303 = vcombine.high %v2299, %v2299
    %v2304 = vlaneseq
    %v2305 = vshrl.u32 %v2304, 7
    %v2306 = vsub.s32 0, %v2305
    %v2307 = vrot.slane %v2278, %v2306
    %v2308 = vlaneseq
    %v2309 = vshrl.u32 %v2308, 7
    %v2310 = vsub.s32 1, %v2309
    %v2311 = vrot.slane %v2278, %v2310
    %v2312 = vlaneseq
    %v2313 = vshrl.u32 %v2312, 7
    %v2314 = vsub.s32 0, %v2313
    %v2315 = vrot.slane %v2292, %v2314
    %v2316 = vlaneseq
    %v2317 = vshrl.u32 %v2316, 7
    %v2318 = vsub.s32 1, %v2317
    %v2319 = vrot.slane %v2292, %v2318
    %v2320 = vlaneseq
    %v2321 = vshrl.u32 %v2320, 7
    %v2322 = vsub.s32 0, %v2321
    %v2323 = vrot.slane %v2300, %v2322
    %v2324 = vlaneseq
    %v2325 = vshrl.u32 %v2324, 7
    %v2326 = vsub.s32 1, %v2325
    %v2327 = vrot.slane %v2300, %v2326
    %v2328 = vlaneseq
    %v2329 = vshrl.u32 %v2328, 7
    %v2330 = vsub.s32 0, %v2329
    %v2331 = vrot.slane %v2302, %v2330
    %v2332 = vlaneseq
    %v2333 = vshrl.u32 %v2332, 7
    %v2334 = vsub.s32 1, %v2333
    %v2335 = vrot.slane %v2302, %v2334
    %v2336 = vlaneseq
    %v2337 = vshrl.u32 %v2336, 7
    %v2338 = vsub.s32 0, %v2337
    %v2339 = vrot.slane %v2285, %v2338
    %v2340 = vlaneseq
    %v2341 = vshrl.u32 %v2340, 7
    %v2342 = vsub.s32 1, %v2341
    %v2343 = vrot.slane %v2285, %v2342
    %v2344 = vlaneseq
    %v2345 = vshrl.u32 %v2344, 7
    %v2346 = vsub.s32 0, %v2345
    %v2347 = vrot.slane %v2299, %v2346
    %v2348 = vlaneseq
    %v2349 = vshrl.u32 %v2348, 7
    %v2350 = vsub.s32 1, %v2349
    %v2351 = vrot.slane %v2299, %v2350
    %v2352 = vlaneseq
    %v2353 = vshrl.u32 %v2352, 7
    %v2354 = vsub.s32 0, %v2353
    %v2355 = vrot.slane %v2301, %v2354
    %v2356 = vlaneseq
    %v2357 = vshrl.u32 %v2356, 7
    %v2358 = vsub.s32 1, %v2357
    %v2359 = vrot.slane %v2301, %v2358
    %v2360 = vlaneseq
    %v2361 = vshrl.u32 %v2360, 7
    %v2362 = vsub.s32 0, %v2361
    %v2363 = vrot.slane %v2303, %v2362
    %v2364 = vlaneseq
    %v2365 = vshrl.u32 %v2364, 7
    %v2366 = vsub.s32 1, %v2365
    %v2367 = vrot.slane %v2303, %v2366
    %v2384 = vmul.f32 %v2307, %v562
    %v2385 = vmul.f32 %v2311, %v562
    %v2386 = vmul.f32 %v2315, %v562
    %v2387 = vmul.f32 %v2319, %v562
    %v2388 = vmul.f32 %v2323, %v562
    %v2389 = vmul.f32 %v2327, %v562
    %v2390 = vmul.f32 %v2331, %v562
    %v2391 = vmul.f32 %v2335, %v562
    %v2392 = vmul.f32 %v2339, %v562
    %v2393 = vmul.f32 %v2343, %v562
    %v2394 = vmul.f32 %v2347, %v562
    %v2395 = vmul.f32 %v2351, %v562
    %v2396 = vmul.f32 %v2355, %v562
    %v2397 = vmul.f32 %v2359, %v562
    %v2398 = vmul.f32 %v2363, %v562
    %v2399 = vmul.f32 %v2367, %v562
    %v2400 = vadd.f32 %v2236, %v2384
    %v2401 = vadd.f32 %v2237, %v2385
    %v2402 = vadd.f32 %v2238, %v2386
    %v2403 = vadd.f32 %v2239, %v2387
    %v2404 = vadd.f32 %v2240, %v2388
    %v2405 = vadd.f32 %v2241, %v2389
    %v2406 = vadd.f32 %v2242, %v2390
    %v2407 = vadd.f32 %v2243, %v2391
    %v2408 = vadd.f32 %v2244, %v2392
    %v2409 = vadd.f32 %v2245, %v2393
    %v2410 = vadd.f32 %v2246, %v2394
    %v2411 = vadd.f32 %v2247, %v2395
    %v2412 = vadd.f32 %v2248, %v2396
    %v2413 = vadd.f32 %v2249, %v2397
    %v2414 = vadd.f32 %v2250, %v2398
    %v2415 = vadd.f32 %v2251, %v2399
    %v2418 = vcombine.low %v1922, %v1923
    %v2419 = vcombine.high %v1922, %v1923
    %v2421 = vunpack.c.l.s4 1966171168
    %v2422 = vunpack.c.0.s8 %v2421
    %v2423 = vlaneseq
    %v2424 = vshrl.u32 %v2423, 7
    %v2425 = vsub.s32 %v2422, %v2424
    %v2426 = vrot.slane %v2418, %v2425
    %v2428 = vunpack.c.l.s4 1966171168
    %v2429 = vunpack.c.0.s8 %v2428
    %v2430 = vlaneseq
    %v2431 = vshrl.u32 %v2430, 7
    %v2432 = vsub.s32 %v2429, %v2431
    %v2433 = vrot.slane %v2419, %v2432
    %v2434 = vcombine.high %v2426, %v2426
    %v2435 = vcombine.high %v2433, %v2433
    %v2437 = vunpack.c.l.s4 1966171168
    %v2438 = vunpack.c.0.s8 %v2437
    %v2439 = vlaneseq
    %v2440 = vshrl.u32 %v2439, 7
    %v2441 = vsub.s32 %v2438, %v2440
    %v2442 = vrot.slane %v2426, %v2441
    %v2444 = vunpack.c.l.s4 1966171168
    %v2445 = vunpack.c.0.s8 %v2444
    %v2446 = vlaneseq
    %v2447 = vshrl.u32 %v2446, 7
    %v2448 = vsub.s32 %v2445, %v2447
    %v2449 = vrot.slane %v2433, %v2448
    %v2451 = vunpack.c.l.s4 1966171168
    %v2452 = vunpack.c.0.s8 %v2451
    %v2453 = vlaneseq
    %v2454 = vshrl.u32 %v2453, 7
    %v2455 = vsub.s32 %v2452, %v2454
    %v2456 = vrot.slane %v2434, %v2455
    %v2458 = vunpack.c.l.s4 1966171168
    %v2459 = vunpack.c.0.s8 %v2458
    %v2460 = vlaneseq
    %v2461 = vshrl.u32 %v2460, 7
    %v2462 = vsub.s32 %v2459, %v2461
    %v2463 = vrot.slane %v2435, %v2462
    %v2464 = vcombine.high %v2442, %v2442
    %v2465 = vcombine.high %v2449, %v2449
    %v2466 = vcombine.high %v2456, %v2456
    %v2467 = vcombine.high %v2463, %v2463
    %v2468 = vlaneseq
    %v2469 = vshrl.u32 %v2468, 7
    %v2470 = vsub.s32 0, %v2469
    %v2471 = vrot.slane %v2442, %v2470
    %v2472 = vlaneseq
    %v2473 = vshrl.u32 %v2472, 7
    %v2474 = vsub.s32 1, %v2473
    %v2475 = vrot.slane %v2442, %v2474
    %v2476 = vlaneseq
    %v2477 = vshrl.u32 %v2476, 7
    %v2478 = vsub.s32 0, %v2477
    %v2479 = vrot.slane %v2456, %v2478
    %v2480 = vlaneseq
    %v2481 = vshrl.u32 %v2480, 7
    %v2482 = vsub.s32 1, %v2481
    %v2483 = vrot.slane %v2456, %v2482
    %v2484 = vlaneseq
    %v2485 = vshrl.u32 %v2484, 7
    %v2486 = vsub.s32 0, %v2485
    %v2487 = vrot.slane %v2464, %v2486
    %v2488 = vlaneseq
    %v2489 = vshrl.u32 %v2488, 7
    %v2490 = vsub.s32 1, %v2489
    %v2491 = vrot.slane %v2464, %v2490
    %v2492 = vlaneseq
    %v2493 = vshrl.u32 %v2492, 7
    %v2494 = vsub.s32 0, %v2493
    %v2495 = vrot.slane %v2466, %v2494
    %v2496 = vlaneseq
    %v2497 = vshrl.u32 %v2496, 7
    %v2498 = vsub.s32 1, %v2497
    %v2499 = vrot.slane %v2466, %v2498
    %v2500 = vlaneseq
    %v2501 = vshrl.u32 %v2500, 7
    %v2502 = vsub.s32 0, %v2501
    %v2503 = vrot.slane %v2449, %v2502
    %v2504 = vlaneseq
    %v2505 = vshrl.u32 %v2504, 7
    %v2506 = vsub.s32 1, %v2505
    %v2507 = vrot.slane %v2449, %v2506
    %v2508 = vlaneseq
    %v2509 = vshrl.u32 %v2508, 7
    %v2510 = vsub.s32 0, %v2509
    %v2511 = vrot.slane %v2463, %v2510
    %v2512 = vlaneseq
    %v2513 = vshrl.u32 %v2512, 7
    %v2514 = vsub.s32 1, %v2513
    %v2515 = vrot.slane %v2463, %v2514
    %v2516 = vlaneseq
    %v2517 = vshrl.u32 %v2516, 7
    %v2518 = vsub.s32 0, %v2517
    %v2519 = vrot.slane %v2465, %v2518
    %v2520 = vlaneseq
    %v2521 = vshrl.u32 %v2520, 7
    %v2522 = vsub.s32 1, %v2521
    %v2523 = vrot.slane %v2465, %v2522
    %v2524 = vlaneseq
    %v2525 = vshrl.u32 %v2524, 7
    %v2526 = vsub.s32 0, %v2525
    %v2527 = vrot.slane %v2467, %v2526
    %v2528 = vlaneseq
    %v2529 = vshrl.u32 %v2528, 7
    %v2530 = vsub.s32 1, %v2529
    %v2531 = vrot.slane %v2467, %v2530
    %v2548 = vmul.f32 %v2471, %v731
    %v2549 = vmul.f32 %v2475, %v731
    %v2550 = vmul.f32 %v2479, %v731
    %v2551 = vmul.f32 %v2483, %v731
    %v2552 = vmul.f32 %v2487, %v731
    %v2553 = vmul.f32 %v2491, %v731
    %v2554 = vmul.f32 %v2495, %v731
    %v2555 = vmul.f32 %v2499, %v731
    %v2556 = vmul.f32 %v2503, %v731
    %v2557 = vmul.f32 %v2507, %v731
    %v2558 = vmul.f32 %v2511, %v731
    %v2559 = vmul.f32 %v2515, %v731
    %v2560 = vmul.f32 %v2519, %v731
    %v2561 = vmul.f32 %v2523, %v731
    %v2562 = vmul.f32 %v2527, %v731
    %v2563 = vmul.f32 %v2531, %v731
    %v2564 = vadd.f32 %v2400, %v2548
    %v2565 = vadd.f32 %v2401, %v2549
    %v2566 = vadd.f32 %v2402, %v2550
    %v2567 = vadd.f32 %v2403, %v2551
    %v2568 = vadd.f32 %v2404, %v2552
    %v2569 = vadd.f32 %v2405, %v2553
    %v2570 = vadd.f32 %v2406, %v2554
    %v2571 = vadd.f32 %v2407, %v2555
    %v2572 = vadd.f32 %v2408, %v2556
    %v2573 = vadd.f32 %v2409, %v2557
    %v2574 = vadd.f32 %v2410, %v2558
    %v2575 = vadd.f32 %v2411, %v2559
    %v2576 = vadd.f32 %v2412, %v2560
    %v2577 = vadd.f32 %v2413, %v2561
    %v2578 = vadd.f32 %v2414, %v2562
    %v2579 = vadd.f32 %v2415, %v2563
    %v2580 = vmax.f32 %v2564, 0.0
    %v2581 = vmax.f32 %v2565, 0.0
    %v2582 = vmax.f32 %v2566, 0.0
    %v2583 = vmax.f32 %v2567, 0.0
    %v2584 = vmax.f32 %v2568, 0.0
    %v2585 = vmax.f32 %v2569, 0.0
    %v2586 = vmax.f32 %v2570, 0.0
    %v2587 = vmax.f32 %v2571, 0.0
    %v2588 = vmax.f32 %v2572, 0.0
    %v2589 = vmax.f32 %v2573, 0.0
    %v2590 = vmax.f32 %v2574, 0.0
    %v2591 = vmax.f32 %v2575, 0.0
    %v2592 = vmax.f32 %v2576, 0.0
    %v2593 = vmax.f32 %v2577, 0.0
    %v2594 = vmax.f32 %v2578, 0.0
    %v2595 = vmax.f32 %v2579, 0.0
    %v2596 = vadd.f32 %v2580, %v2581
    %2597 = vadd.xlane.f32.xlu0 %v2596
    %v2598 = vpop.xlane.xlu0 %2597
    %v2599 = vadd.f32 %v2582, %v2583
    %2600 = vadd.xlane.f32.xlu0 %v2599
    %v2601 = vpop.xlane.xlu0 %2600
    %v2602 = vadd.f32 %v2584, %v2585
    %2603 = vadd.xlane.f32.xlu0 %v2602
    %v2604 = vpop.xlane.xlu0 %2603
    %v2605 = vadd.f32 %v2586, %v2587
    %2606 = vadd.xlane.f32.xlu0 %v2605
    %v2607 = vpop.xlane.xlu0 %2606
    %v2608 = vadd.f32 %v2588, %v2589
    %2609 = vadd.xlane.f32.xlu0 %v2608
    %v2610 = vpop.xlane.xlu0 %2609
    %v2611 = vadd.f32 %v2590, %v2591
    %2612 = vadd.xlane.f32.xlu0 %v2611
    %v2613 = vpop.xlane.xlu0 %2612
    %v2614 = vadd.f32 %v2592, %v2593
    %2615 = vadd.xlane.f32.xlu0 %v2614
    %v2616 = vpop.xlane.xlu0 %2615
    %v2617 = vadd.f32 %v2594, %v2595
    %2618 = vadd.xlane.f32.xlu0 %v2617
    %v2619 = vpop.xlane.xlu0 %2618
    %v2620 = vmul.f32 %v2598, %v805
    %v2621 = vmul.f32 %v2601, %v805
    %v2622 = vmul.f32 %v2604, %v805
    %v2623 = vmul.f32 %v2607, %v805
    %v2624 = vmul.f32 %v2610, %v805
    %v2625 = vmul.f32 %v2613, %v805
    %v2626 = vmul.f32 %v2616, %v805
    %v2627 = vmul.f32 %v2619, %v805
    %v2628 = vmul.f32 %v1979, %v817
    %v2629 = vmul.f32 %v1983, %v817
    %v2630 = vmul.f32 %v1987, %v817
    %v2631 = vmul.f32 %v1991, %v817
    %v2632 = vmul.f32 %v1995, %v817
    %v2633 = vmul.f32 %v1999, %v817
    %v2634 = vmul.f32 %v2003, %v817
    %v2635 = vmul.f32 %v2007, %v817
    %v2636 = vmul.f32 %v2011, %v817
    %v2637 = vmul.f32 %v2015, %v817
    %v2638 = vmul.f32 %v2019, %v817
    %v2639 = vmul.f32 %v2023, %v817
    %v2640 = vmul.f32 %v2027, %v817
    %v2641 = vmul.f32 %v2031, %v817
    %v2642 = vmul.f32 %v2035, %v817
    %v2643 = vmul.f32 %v2039, %v817
    %v2644 = vadd.f32 %v2628, %v838
    %v2645 = vadd.f32 %v2629, %v838
    %v2646 = vadd.f32 %v2630, %v838
    %v2647 = vadd.f32 %v2631, %v838
    %v2648 = vadd.f32 %v2632, %v838
    %v2649 = vadd.f32 %v2633, %v838
    %v2650 = vadd.f32 %v2634, %v838
    %v2651 = vadd.f32 %v2635, %v838
    %v2652 = vadd.f32 %v2636, %v838
    %v2653 = vadd.f32 %v2637, %v838
    %v2654 = vadd.f32 %v2638, %v838
    %v2655 = vadd.f32 %v2639, %v838
    %v2656 = vadd.f32 %v2640, %v838
    %v2657 = vadd.f32 %v2641, %v838
    %v2658 = vadd.f32 %v2642, %v838
    %v2659 = vadd.f32 %v2643, %v838
    %v2660 = vmul.f32 %v2143, %v859
    %v2661 = vmul.f32 %v2147, %v859
    %v2662 = vmul.f32 %v2151, %v859
    %v2663 = vmul.f32 %v2155, %v859
    %v2664 = vmul.f32 %v2159, %v859
    %v2665 = vmul.f32 %v2163, %v859
    %v2666 = vmul.f32 %v2167, %v859
    %v2667 = vmul.f32 %v2171, %v859
    %v2668 = vmul.f32 %v2175, %v859
    %v2669 = vmul.f32 %v2179, %v859
    %v2670 = vmul.f32 %v2183, %v859
    %v2671 = vmul.f32 %v2187, %v859
    %v2672 = vmul.f32 %v2191, %v859
    %v2673 = vmul.f32 %v2195, %v859
    %v2674 = vmul.f32 %v2199, %v859
    %v2675 = vmul.f32 %v2203, %v859
    %v2676 = vadd.f32 %v2644, %v2660
    %v2677 = vadd.f32 %v2645, %v2661
    %v2678 = vadd.f32 %v2646, %v2662
    %v2679 = vadd.f32 %v2647, %v2663
    %v2680 = vadd.f32 %v2648, %v2664
    %v2681 = vadd.f32 %v2649, %v2665
    %v2682 = vadd.f32 %v2650, %v2666
    %v2683 = vadd.f32 %v2651, %v2667
    %v2684 = vadd.f32 %v2652, %v2668
    %v2685 = vadd.f32 %v2653, %v2669
    %v2686 = vadd.f32 %v2654, %v2670
    %v2687 = vadd.f32 %v2655, %v2671
    %v2688 = vadd.f32 %v2656, %v2672
    %v2689 = vadd.f32 %v2657, %v2673
    %v2690 = vadd.f32 %v2658, %v2674
    %v2691 = vadd.f32 %v2659, %v2675
    %v2692 = vmul.f32 %v2307, %v896
    %v2693 = vmul.f32 %v2311, %v896
    %v2694 = vmul.f32 %v2315, %v896
    %v2695 = vmul.f32 %v2319, %v896
    %v2696 = vmul.f32 %v2323, %v896
    %v2697 = vmul.f32 %v2327, %v896
    %v2698 = vmul.f32 %v2331, %v896
    %v2699 = vmul.f32 %v2335, %v896
    %v2700 = vmul.f32 %v2339, %v896
    %v2701 = vmul.f32 %v2343, %v896
    %v2702 = vmul.f32 %v2347, %v896
    %v2703 = vmul.f32 %v2351, %v896
    %v2704 = vmul.f32 %v2355, %v896
    %v2705 = vmul.f32 %v2359, %v896
    %v2706 = vmul.f32 %v2363, %v896
    %v2707 = vmul.f32 %v2367, %v896
    %v2708 = vadd.f32 %v2676, %v2692
    %v2709 = vadd.f32 %v2677, %v2693
    %v2710 = vadd.f32 %v2678, %v2694
    %v2711 = vadd.f32 %v2679, %v2695
    %v2712 = vadd.f32 %v2680, %v2696
    %v2713 = vadd.f32 %v2681, %v2697
    %v2714 = vadd.f32 %v2682, %v2698
    %v2715 = vadd.f32 %v2683, %v2699
    %v2716 = vadd.f32 %v2684, %v2700
    %v2717 = vadd.f32 %v2685, %v2701
    %v2718 = vadd.f32 %v2686, %v2702
    %v2719 = vadd.f32 %v2687, %v2703
    %v2720 = vadd.f32 %v2688, %v2704
    %v2721 = vadd.f32 %v2689, %v2705
    %v2722 = vadd.f32 %v2690, %v2706
    %v2723 = vadd.f32 %v2691, %v2707
    %v2724 = vmul.f32 %v2471, %v933
    %v2725 = vmul.f32 %v2475, %v933
    %v2726 = vmul.f32 %v2479, %v933
    %v2727 = vmul.f32 %v2483, %v933
    %v2728 = vmul.f32 %v2487, %v933
    %v2729 = vmul.f32 %v2491, %v933
    %v2730 = vmul.f32 %v2495, %v933
    %v2731 = vmul.f32 %v2499, %v933
    %v2732 = vmul.f32 %v2503, %v933
    %v2733 = vmul.f32 %v2507, %v933
    %v2734 = vmul.f32 %v2511, %v933
    %v2735 = vmul.f32 %v2515, %v933
    %v2736 = vmul.f32 %v2519, %v933
    %v2737 = vmul.f32 %v2523, %v933
    %v2738 = vmul.f32 %v2527, %v933
    %v2739 = vmul.f32 %v2531, %v933
    %v2740 = vadd.f32 %v2708, %v2724
    %v2741 = vadd.f32 %v2709, %v2725
    %v2742 = vadd.f32 %v2710, %v2726
    %v2743 = vadd.f32 %v2711, %v2727
    %v2744 = vadd.f32 %v2712, %v2728
    %v2745 = vadd.f32 %v2713, %v2729
    %v2746 = vadd.f32 %v2714, %v2730
    %v2747 = vadd.f32 %v2715, %v2731
    %v2748 = vadd.f32 %v2716, %v2732
    %v2749 = vadd.f32 %v2717, %v2733
    %v2750 = vadd.f32 %v2718, %v2734
    %v2751 = vadd.f32 %v2719, %v2735
    %v2752 = vadd.f32 %v2720, %v2736
    %v2753 = vadd.f32 %v2721, %v2737
    %v2754 = vadd.f32 %v2722, %v2738
    %v2755 = vadd.f32 %v2723, %v2739
    %v2756 = vmax.f32 %v2740, 0.0
    %v2757 = vmax.f32 %v2741, 0.0
    %v2758 = vmax.f32 %v2742, 0.0
    %v2759 = vmax.f32 %v2743, 0.0
    %v2760 = vmax.f32 %v2744, 0.0
    %v2761 = vmax.f32 %v2745, 0.0
    %v2762 = vmax.f32 %v2746, 0.0
    %v2763 = vmax.f32 %v2747, 0.0
    %v2764 = vmax.f32 %v2748, 0.0
    %v2765 = vmax.f32 %v2749, 0.0
    %v2766 = vmax.f32 %v2750, 0.0
    %v2767 = vmax.f32 %v2751, 0.0
    %v2768 = vmax.f32 %v2752, 0.0
    %v2769 = vmax.f32 %v2753, 0.0
    %v2770 = vmax.f32 %v2754, 0.0
    %v2771 = vmax.f32 %v2755, 0.0
    %v2772 = vadd.f32 %v2756, %v2757
    %2773 = vadd.xlane.f32.xlu0 %v2772
    %v2774 = vpop.xlane.xlu0 %2773
    %v2775 = vadd.f32 %v2758, %v2759
    %2776 = vadd.xlane.f32.xlu0 %v2775
    %v2777 = vpop.xlane.xlu0 %2776
    %v2778 = vadd.f32 %v2760, %v2761
    %2779 = vadd.xlane.f32.xlu0 %v2778
    %v2780 = vpop.xlane.xlu0 %2779
    %v2781 = vadd.f32 %v2762, %v2763
    %2782 = vadd.xlane.f32.xlu0 %v2781
    %v2783 = vpop.xlane.xlu0 %2782
    %v2784 = vadd.f32 %v2764, %v2765
    %2785 = vadd.xlane.f32.xlu0 %v2784
    %v2786 = vpop.xlane.xlu0 %2785
    %v2787 = vadd.f32 %v2766, %v2767
    %2788 = vadd.xlane.f32.xlu0 %v2787
    %v2789 = vpop.xlane.xlu0 %2788
    %v2790 = vadd.f32 %v2768, %v2769
    %2791 = vadd.xlane.f32.xlu0 %v2790
    %v2792 = vpop.xlane.xlu0 %2791
    %v2793 = vadd.f32 %v2770, %v2771
    %2794 = vadd.xlane.f32.xlu0 %v2793
    %v2795 = vpop.xlane.xlu0 %2794
    %v2796 = vmul.f32 %v2774, %v805
    %v2797 = vmul.f32 %v2777, %v805
    %v2798 = vmul.f32 %v2780, %v805
    %v2799 = vmul.f32 %v2783, %v805
    %v2800 = vmul.f32 %v2786, %v805
    %v2801 = vmul.f32 %v2789, %v805
    %v2802 = vmul.f32 %v2792, %v805
    %v2803 = vmul.f32 %v2795, %v805
    %v2812 = vlaneseq
    %v2813 = vshrl.u32 %v2812, 7
    %v2814 = vsub.s32 %v1024, %v2813
    %v2815 = vrot.slane %v2796, %v2814
    %v2816 = vlaneseq
    %v2817 = vshrl.u32 %v2816, 7
    %v2818 = vsub.s32 %v1024, %v2817
    %v2819 = vrot.slane %v2797, %v2818
    %v2820 = vlaneseq
    %v2821 = vshrl.u32 %v2820, 7
    %v2822 = vsub.s32 %v1024, %v2821
    %v2823 = vrot.slane %v2798, %v2822
    %v2824 = vlaneseq
    %v2825 = vshrl.u32 %v2824, 7
    %v2826 = vsub.s32 %v1024, %v2825
    %v2827 = vrot.slane %v2799, %v2826
    %v2828 = vlaneseq
    %v2829 = vshrl.u32 %v2828, 7
    %v2830 = vsub.s32 %v1024, %v2829
    %v2831 = vrot.slane %v2800, %v2830
    %v2832 = vlaneseq
    %v2833 = vshrl.u32 %v2832, 7
    %v2834 = vsub.s32 %v1024, %v2833
    %v2835 = vrot.slane %v2801, %v2834
    %v2836 = vlaneseq
    %v2837 = vshrl.u32 %v2836, 7
    %v2838 = vsub.s32 %v1024, %v2837
    %v2839 = vrot.slane %v2802, %v2838
    %v2840 = vlaneseq
    %v2841 = vshrl.u32 %v2840, 7
    %v2842 = vsub.s32 %v1024, %v2841
    %v2843 = vrot.slane %v2803, %v2842
    %v2844 = vsel %vm1057, %v2819, %v2815
    %v2845 = vsel %vm1059, %v2823, %v2844
    %v2846 = vsel %vm1061, %v2827, %v2845
    %v2847 = vsel %vm1063, %v2831, %v2846
    %v2848 = vsel %vm1065, %v2835, %v2847
    %v2849 = vsel %vm1067, %v2839, %v2848
    %v2850 = vsel %vm1069, %v2843, %v2849
    %v2851 = vsel %vm1071, %v2850, 0
    %2853 = vmatprep.subr.mxu0 0.0
    %2854 = vmatpush1.msra.mxu0 %v69
    %2855 = vmatprep.subr.mxu0 0.0
    %2856 = vmatpush1.msra.mxu0 0.0
    %2857 = vmatprep.subr.mxu0 0.0
    %2858 = vmatpush1.msra.mxu0 0.0
    %2859 = vmatprep.subr.mxu0 0.0
    %2860 = vmatpush1.msra.mxu0 0.0
    %2861 = vmatprep.subr.mxu0 0.0
    %2862 = vmatpush1.msra.mxu0 0.0
    %2863 = vmatprep.subr.mxu0 0.0
    %2864 = vmatpush1.msra.mxu0 0.0
    %2865 = vmatprep.subr.mxu0 0.0
    %2866 = vmatpush1.msra.mxu0 0.0
    %2867 = vmatprep.subr.mxu0 0.0
    %2868 = vmatpush1.msra.mxu0 0.0
    %2869 = vmatprep.subr.mxu0 0.0
    %2870 = vmatpush1.msra.mxu0 0.0
    %2871 = vmatprep.subr.mxu0 0.0
    %2872 = vmatpush1.msra.mxu0 0.0
    %2873 = vmatprep.subr.mxu0 0.0
    %2874 = vmatpush1.msra.mxu0 0.0
    %2875 = vmatprep.subr.mxu0 0.0
    %2876 = vmatpush1.msra.mxu0 0.0
    %2877 = vmatprep.subr.mxu0 0.0
    %2878 = vmatpush1.msra.mxu0 0.0
    %2879 = vmatprep.subr.mxu0 0.0
    %2880 = vmatpush1.msra.mxu0 0.0
    %2881 = vmatprep.subr.mxu0 0.0
    %2882 = vmatpush1.msra.mxu0 0.0
    %2883 = vmatprep.subr.mxu0 0.0
    %2884 = vmatpush1.msra.mxu0 0.0
    %2885 = vmatprep.subr.mxu0 0.0
    %2886 = vmatpush1.msra.mxu0 0.0
    %2887 = vmatprep.subr.mxu0 0.0
    %2888 = vmatpush1.msra.mxu0 0.0
    %2889 = vmatprep.subr.mxu0 0.0
    %2890 = vmatpush1.msra.mxu0 0.0
    %2891 = vmatprep.subr.mxu0 0.0
    %2892 = vmatpush1.msra.mxu0 0.0
    %2893 = vmatprep.subr.mxu0 0.0
    %2894 = vmatpush1.msra.mxu0 0.0
    %2895 = vmatprep.subr.mxu0 0.0
    %2896 = vmatpush1.msra.mxu0 0.0
    %2897 = vmatprep.subr.mxu0 0.0
    %2898 = vmatpush1.msra.mxu0 0.0
    %2899 = vmatprep.subr.mxu0 0.0
    %2900 = vmatpush1.msra.mxu0 0.0
    %2901 = vmatprep.subr.mxu0 0.0
    %2902 = vmatpush1.msra.mxu0 0.0
    %2903 = vmatprep.subr.mxu0 0.0
    %2904 = vmatpush1.msra.mxu0 0.0
    %2905 = vmatprep.subr.mxu0 0.0
    %2906 = vmatpush1.msra.mxu0 0.0
    %2907 = vmatprep.subr.mxu0 0.0
    %2908 = vmatpush1.msra.mxu0 0.0
    %2909 = vmatprep.subr.mxu0 0.0
    %2910 = vmatpush1.msra.mxu0 0.0
    %2911 = vmatprep.subr.mxu0 0.0
    %2912 = vmatpush1.msra.mxu0 0.0
    %2913 = vmatprep.subr.mxu0 0.0
    %2914 = vmatpush1.msra.mxu0 0.0
    %2915 = vmatprep.subr.mxu0 0.0
    %2916 = vmatpush1.msra.mxu0 0.0
    %2917 = vmatprep.mubr.f32.mxu0 0.0
    %2918 = vmatmul.mubr.f32.gmra.mrb[0].mxu0 %v2851
    %v2919 = vpop.f32.mrb[0].mxu0
    %v2920 = vadd.f32 0.0, %v2919
    %v2921 = vpop.f32.mrb[0].mxu0
    %2922 = vdwg.mxu0
    %v2931 = vlaneseq
    %v2932 = vshrl.u32 %v2931, 7
    %v2933 = vsub.s32 %v1024, %v2932
    %v2934 = vrot.slane %v2620, %v2933
    %v2935 = vlaneseq
    %v2936 = vshrl.u32 %v2935, 7
    %v2937 = vsub.s32 %v1024, %v2936
    %v2938 = vrot.slane %v2621, %v2937
    %v2939 = vlaneseq
    %v2940 = vshrl.u32 %v2939, 7
    %v2941 = vsub.s32 %v1024, %v2940
    %v2942 = vrot.slane %v2622, %v2941
    %v2943 = vlaneseq
    %v2944 = vshrl.u32 %v2943, 7
    %v2945 = vsub.s32 %v1024, %v2944
    %v2946 = vrot.slane %v2623, %v2945
    %v2947 = vlaneseq
    %v2948 = vshrl.u32 %v2947, 7
    %v2949 = vsub.s32 %v1024, %v2948
    %v2950 = vrot.slane %v2624, %v2949
    %v2951 = vlaneseq
    %v2952 = vshrl.u32 %v2951, 7
    %v2953 = vsub.s32 %v1024, %v2952
    %v2954 = vrot.slane %v2625, %v2953
    %v2955 = vlaneseq
    %v2956 = vshrl.u32 %v2955, 7
    %v2957 = vsub.s32 %v1024, %v2956
    %v2958 = vrot.slane %v2626, %v2957
    %v2959 = vlaneseq
    %v2960 = vshrl.u32 %v2959, 7
    %v2961 = vsub.s32 %v1024, %v2960
    %v2962 = vrot.slane %v2627, %v2961
    %v2963 = vsel %vm1057, %v2938, %v2934
    %v2964 = vsel %vm1059, %v2942, %v2963
    %v2965 = vsel %vm1061, %v2946, %v2964
    %v2966 = vsel %vm1063, %v2950, %v2965
    %v2967 = vsel %vm1065, %v2954, %v2966
    %v2968 = vsel %vm1067, %v2958, %v2967
    %v2969 = vsel %vm1069, %v2962, %v2968
    %v2970 = vsel %vm1071, %v2969, 0
    %2972 = vmatprep.subr.mxu0 0.0
    %2973 = vmatpush1.msra.mxu0 %v68
    %2974 = vmatprep.subr.mxu0 0.0
    %2975 = vmatpush1.msra.mxu0 0.0
    %2976 = vmatprep.subr.mxu0 0.0
    %2977 = vmatpush1.msra.mxu0 0.0
    %2978 = vmatprep.subr.mxu0 0.0
    %2979 = vmatpush1.msra.mxu0 0.0
    %2980 = vmatprep.subr.mxu0 0.0
    %2981 = vmatpush1.msra.mxu0 0.0
    %2982 = vmatprep.subr.mxu0 0.0
    %2983 = vmatpush1.msra.mxu0 0.0
    %2984 = vmatprep.subr.mxu0 0.0
    %2985 = vmatpush1.msra.mxu0 0.0
    %2986 = vmatprep.subr.mxu0 0.0
    %2987 = vmatpush1.msra.mxu0 0.0
    %2988 = vmatprep.subr.mxu0 0.0
    %2989 = vmatpush1.msra.mxu0 0.0
    %2990 = vmatprep.subr.mxu0 0.0
    %2991 = vmatpush1.msra.mxu0 0.0
    %2992 = vmatprep.subr.mxu0 0.0
    %2993 = vmatpush1.msra.mxu0 0.0
    %2994 = vmatprep.subr.mxu0 0.0
    %2995 = vmatpush1.msra.mxu0 0.0
    %2996 = vmatprep.subr.mxu0 0.0
    %2997 = vmatpush1.msra.mxu0 0.0
    %2998 = vmatprep.subr.mxu0 0.0
    %2999 = vmatpush1.msra.mxu0 0.0
    %3000 = vmatprep.subr.mxu0 0.0
    %3001 = vmatpush1.msra.mxu0 0.0
    %3002 = vmatprep.subr.mxu0 0.0
    %3003 = vmatpush1.msra.mxu0 0.0
    %3004 = vmatprep.subr.mxu0 0.0
    %3005 = vmatpush1.msra.mxu0 0.0
    %3006 = vmatprep.subr.mxu0 0.0
    %3007 = vmatpush1.msra.mxu0 0.0
    %3008 = vmatprep.subr.mxu0 0.0
    %3009 = vmatpush1.msra.mxu0 0.0
    %3010 = vmatprep.subr.mxu0 0.0
    %3011 = vmatpush1.msra.mxu0 0.0
    %3012 = vmatprep.subr.mxu0 0.0
    %3013 = vmatpush1.msra.mxu0 0.0
    %3014 = vmatprep.subr.mxu0 0.0
    %3015 = vmatpush1.msra.mxu0 0.0
    %3016 = vmatprep.subr.mxu0 0.0
    %3017 = vmatpush1.msra.mxu0 0.0
    %3018 = vmatprep.subr.mxu0 0.0
    %3019 = vmatpush1.msra.mxu0 0.0
    %3020 = vmatprep.subr.mxu0 0.0
    %3021 = vmatpush1.msra.mxu0 0.0
    %3022 = vmatprep.subr.mxu0 0.0
    %3023 = vmatpush1.msra.mxu0 0.0
    %3024 = vmatprep.subr.mxu0 0.0
    %3025 = vmatpush1.msra.mxu0 0.0
    %3026 = vmatprep.subr.mxu0 0.0
    %3027 = vmatpush1.msra.mxu0 0.0
    %3028 = vmatprep.subr.mxu0 0.0
    %3029 = vmatpush1.msra.mxu0 0.0
    %3030 = vmatprep.subr.mxu0 0.0
    %3031 = vmatpush1.msra.mxu0 0.0
    %3032 = vmatprep.subr.mxu0 0.0
    %3033 = vmatpush1.msra.mxu0 0.0
    %3034 = vmatprep.subr.mxu0 0.0
    %3035 = vmatpush1.msra.mxu0 0.0
    %3036 = vmatprep.mubr.f32.mxu0 0.0
    %3037 = vmatmul.mubr.f32.gmra.mrb[0].mxu0 %v2970
    %v3038 = vpop.f32.mrb[0].mxu0
    %v3039 = vadd.f32 %v2920, %v3038
    %v3040 = vpop.f32.mrb[0].mxu0
    %3041 = vdwg.mxu0
    %v3042 = vmul.f32 %v1979, %v1266
    %v3043 = vmul.f32 %v1983, %v1266
    %v3044 = vmul.f32 %v1987, %v1266
    %v3045 = vmul.f32 %v1991, %v1266
    %v3046 = vmul.f32 %v1995, %v1266
    %v3047 = vmul.f32 %v1999, %v1266
    %v3048 = vmul.f32 %v2003, %v1266
    %v3049 = vmul.f32 %v2007, %v1266
    %v3050 = vmul.f32 %v2011, %v1266
    %v3051 = vmul.f32 %v2015, %v1266
    %v3052 = vmul.f32 %v2019, %v1266
    %v3053 = vmul.f32 %v2023, %v1266
    %v3054 = vmul.f32 %v2027, %v1266
    %v3055 = vmul.f32 %v2031, %v1266
    %v3056 = vmul.f32 %v2035, %v1266
    %v3057 = vmul.f32 %v2039, %v1266
    %v3058 = vadd.f32 %v3042, %v1287
    %v3059 = vadd.f32 %v3043, %v1287
    %v3060 = vadd.f32 %v3044, %v1287
    %v3061 = vadd.f32 %v3045, %v1287
    %v3062 = vadd.f32 %v3046, %v1287
    %v3063 = vadd.f32 %v3047, %v1287
    %v3064 = vadd.f32 %v3048, %v1287
    %v3065 = vadd.f32 %v3049, %v1287
    %v3066 = vadd.f32 %v3050, %v1287
    %v3067 = vadd.f32 %v3051, %v1287
    %v3068 = vadd.f32 %v3052, %v1287
    %v3069 = vadd.f32 %v3053, %v1287
    %v3070 = vadd.f32 %v3054, %v1287
    %v3071 = vadd.f32 %v3055, %v1287
    %v3072 = vadd.f32 %v3056, %v1287
    %v3073 = vadd.f32 %v3057, %v1287
    %v3074 = vmul.f32 %v2143, %v1308
    %v3075 = vmul.f32 %v2147, %v1308
    %v3076 = vmul.f32 %v2151, %v1308
    %v3077 = vmul.f32 %v2155, %v1308
    %v3078 = vmul.f32 %v2159, %v1308
    %v3079 = vmul.f32 %v2163, %v1308
    %v3080 = vmul.f32 %v2167, %v1308
    %v3081 = vmul.f32 %v2171, %v1308
    %v3082 = vmul.f32 %v2175, %v1308
    %v3083 = vmul.f32 %v2179, %v1308
    %v3084 = vmul.f32 %v2183, %v1308
    %v3085 = vmul.f32 %v2187, %v1308
    %v3086 = vmul.f32 %v2191, %v1308
    %v3087 = vmul.f32 %v2195, %v1308
    %v3088 = vmul.f32 %v2199, %v1308
    %v3089 = vmul.f32 %v2203, %v1308
    %v3090 = vadd.f32 %v3058, %v3074
    %v3091 = vadd.f32 %v3059, %v3075
    %v3092 = vadd.f32 %v3060, %v3076
    %v3093 = vadd.f32 %v3061, %v3077
    %v3094 = vadd.f32 %v3062, %v3078
    %v3095 = vadd.f32 %v3063, %v3079
    %v3096 = vadd.f32 %v3064, %v3080
    %v3097 = vadd.f32 %v3065, %v3081
    %v3098 = vadd.f32 %v3066, %v3082
    %v3099 = vadd.f32 %v3067, %v3083
    %v3100 = vadd.f32 %v3068, %v3084
    %v3101 = vadd.f32 %v3069, %v3085
    %v3102 = vadd.f32 %v3070, %v3086
    %v3103 = vadd.f32 %v3071, %v3087
    %v3104 = vadd.f32 %v3072, %v3088
    %v3105 = vadd.f32 %v3073, %v3089
    %v3106 = vmul.f32 %v2307, %v1345
    %v3107 = vmul.f32 %v2311, %v1345
    %v3108 = vmul.f32 %v2315, %v1345
    %v3109 = vmul.f32 %v2319, %v1345
    %v3110 = vmul.f32 %v2323, %v1345
    %v3111 = vmul.f32 %v2327, %v1345
    %v3112 = vmul.f32 %v2331, %v1345
    %v3113 = vmul.f32 %v2335, %v1345
    %v3114 = vmul.f32 %v2339, %v1345
    %v3115 = vmul.f32 %v2343, %v1345
    %v3116 = vmul.f32 %v2347, %v1345
    %v3117 = vmul.f32 %v2351, %v1345
    %v3118 = vmul.f32 %v2355, %v1345
    %v3119 = vmul.f32 %v2359, %v1345
    %v3120 = vmul.f32 %v2363, %v1345
    %v3121 = vmul.f32 %v2367, %v1345
    %v3122 = vadd.f32 %v3090, %v3106
    %v3123 = vadd.f32 %v3091, %v3107
    %v3124 = vadd.f32 %v3092, %v3108
    %v3125 = vadd.f32 %v3093, %v3109
    %v3126 = vadd.f32 %v3094, %v3110
    %v3127 = vadd.f32 %v3095, %v3111
    %v3128 = vadd.f32 %v3096, %v3112
    %v3129 = vadd.f32 %v3097, %v3113
    %v3130 = vadd.f32 %v3098, %v3114
    %v3131 = vadd.f32 %v3099, %v3115
    %v3132 = vadd.f32 %v3100, %v3116
    %v3133 = vadd.f32 %v3101, %v3117
    %v3134 = vadd.f32 %v3102, %v3118
    %v3135 = vadd.f32 %v3103, %v3119
    %v3136 = vadd.f32 %v3104, %v3120
    %v3137 = vadd.f32 %v3105, %v3121
    %v3138 = vmul.f32 %v2471, %v1382
    %v3139 = vmul.f32 %v2475, %v1382
    %v3140 = vmul.f32 %v2479, %v1382
    %v3141 = vmul.f32 %v2483, %v1382
    %v3142 = vmul.f32 %v2487, %v1382
    %v3143 = vmul.f32 %v2491, %v1382
    %v3144 = vmul.f32 %v2495, %v1382
    %v3145 = vmul.f32 %v2499, %v1382
    %v3146 = vmul.f32 %v2503, %v1382
    %v3147 = vmul.f32 %v2507, %v1382
    %v3148 = vmul.f32 %v2511, %v1382
    %v3149 = vmul.f32 %v2515, %v1382
    %v3150 = vmul.f32 %v2519, %v1382
    %v3151 = vmul.f32 %v2523, %v1382
    %v3152 = vmul.f32 %v2527, %v1382
    %v3153 = vmul.f32 %v2531, %v1382
    %v3154 = vadd.f32 %v3122, %v3138
    %v3155 = vadd.f32 %v3123, %v3139
    %v3156 = vadd.f32 %v3124, %v3140
    %v3157 = vadd.f32 %v3125, %v3141
    %v3158 = vadd.f32 %v3126, %v3142
    %v3159 = vadd.f32 %v3127, %v3143
    %v3160 = vadd.f32 %v3128, %v3144
    %v3161 = vadd.f32 %v3129, %v3145
    %v3162 = vadd.f32 %v3130, %v3146
    %v3163 = vadd.f32 %v3131, %v3147
    %v3164 = vadd.f32 %v3132, %v3148
    %v3165 = vadd.f32 %v3133, %v3149
    %v3166 = vadd.f32 %v3134, %v3150
    %v3167 = vadd.f32 %v3135, %v3151
    %v3168 = vadd.f32 %v3136, %v3152
    %v3169 = vadd.f32 %v3137, %v3153
    %v3170 = vmax.f32 %v3154, 0.0
    %v3171 = vmax.f32 %v3155, 0.0
    %v3172 = vmax.f32 %v3156, 0.0
    %v3173 = vmax.f32 %v3157, 0.0
    %v3174 = vmax.f32 %v3158, 0.0
    %v3175 = vmax.f32 %v3159, 0.0
    %v3176 = vmax.f32 %v3160, 0.0
    %v3177 = vmax.f32 %v3161, 0.0
    %v3178 = vmax.f32 %v3162, 0.0
    %v3179 = vmax.f32 %v3163, 0.0
    %v3180 = vmax.f32 %v3164, 0.0
    %v3181 = vmax.f32 %v3165, 0.0
    %v3182 = vmax.f32 %v3166, 0.0
    %v3183 = vmax.f32 %v3167, 0.0
    %v3184 = vmax.f32 %v3168, 0.0
    %v3185 = vmax.f32 %v3169, 0.0
    %v3186 = vadd.f32 %v3170, %v3171
    %3187 = vadd.xlane.f32.xlu0 %v3186
    %v3188 = vpop.xlane.xlu0 %3187
    %v3189 = vadd.f32 %v3172, %v3173
    %3190 = vadd.xlane.f32.xlu0 %v3189
    %v3191 = vpop.xlane.xlu0 %3190
    %v3192 = vadd.f32 %v3174, %v3175
    %3193 = vadd.xlane.f32.xlu0 %v3192
    %v3194 = vpop.xlane.xlu0 %3193
    %v3195 = vadd.f32 %v3176, %v3177
    %3196 = vadd.xlane.f32.xlu0 %v3195
    %v3197 = vpop.xlane.xlu0 %3196
    %v3198 = vadd.f32 %v3178, %v3179
    %3199 = vadd.xlane.f32.xlu0 %v3198
    %v3200 = vpop.xlane.xlu0 %3199
    %v3201 = vadd.f32 %v3180, %v3181
    %3202 = vadd.xlane.f32.xlu0 %v3201
    %v3203 = vpop.xlane.xlu0 %3202
    %v3204 = vadd.f32 %v3182, %v3183
    %3205 = vadd.xlane.f32.xlu0 %v3204
    %v3206 = vpop.xlane.xlu0 %3205
    %v3207 = vadd.f32 %v3184, %v3185
    %3208 = vadd.xlane.f32.xlu0 %v3207
    %v3209 = vpop.xlane.xlu0 %3208
    %v3210 = vmul.f32 %v3188, %v805
    %v3211 = vmul.f32 %v3191, %v805
    %v3212 = vmul.f32 %v3194, %v805
    %v3213 = vmul.f32 %v3197, %v805
    %v3214 = vmul.f32 %v3200, %v805
    %v3215 = vmul.f32 %v3203, %v805
    %v3216 = vmul.f32 %v3206, %v805
    %v3217 = vmul.f32 %v3209, %v805
    %v3226 = vlaneseq
    %v3227 = vshrl.u32 %v3226, 7
    %v3228 = vsub.s32 %v1024, %v3227
    %v3229 = vrot.slane %v3210, %v3228
    %v3230 = vlaneseq
    %v3231 = vshrl.u32 %v3230, 7
    %v3232 = vsub.s32 %v1024, %v3231
    %v3233 = vrot.slane %v3211, %v3232
    %v3234 = vlaneseq
    %v3235 = vshrl.u32 %v3234, 7
    %v3236 = vsub.s32 %v1024, %v3235
    %v3237 = vrot.slane %v3212, %v3236
    %v3238 = vlaneseq
    %v3239 = vshrl.u32 %v3238, 7
    %v3240 = vsub.s32 %v1024, %v3239
    %v3241 = vrot.slane %v3213, %v3240
    %v3242 = vlaneseq
    %v3243 = vshrl.u32 %v3242, 7
    %v3244 = vsub.s32 %v1024, %v3243
    %v3245 = vrot.slane %v3214, %v3244
    %v3246 = vlaneseq
    %v3247 = vshrl.u32 %v3246, 7
    %v3248 = vsub.s32 %v1024, %v3247
    %v3249 = vrot.slane %v3215, %v3248
    %v3250 = vlaneseq
    %v3251 = vshrl.u32 %v3250, 7
    %v3252 = vsub.s32 %v1024, %v3251
    %v3253 = vrot.slane %v3216, %v3252
    %v3254 = vlaneseq
    %v3255 = vshrl.u32 %v3254, 7
    %v3256 = vsub.s32 %v1024, %v3255
    %v3257 = vrot.slane %v3217, %v3256
    %v3258 = vsel %vm1057, %v3233, %v3229
    %v3259 = vsel %vm1059, %v3237, %v3258
    %v3260 = vsel %vm1061, %v3241, %v3259
    %v3261 = vsel %vm1063, %v3245, %v3260
    %v3262 = vsel %vm1065, %v3249, %v3261
    %v3263 = vsel %vm1067, %v3253, %v3262
    %v3264 = vsel %vm1069, %v3257, %v3263
    %v3265 = vsel %vm1071, %v3264, 0
    %3267 = vmatprep.subr.mxu0 0.0
    %3268 = vmatpush1.msra.mxu0 %v70
    %3269 = vmatprep.subr.mxu0 0.0
    %3270 = vmatpush1.msra.mxu0 0.0
    %3271 = vmatprep.subr.mxu0 0.0
    %3272 = vmatpush1.msra.mxu0 0.0
    %3273 = vmatprep.subr.mxu0 0.0
    %3274 = vmatpush1.msra.mxu0 0.0
    %3275 = vmatprep.subr.mxu0 0.0
    %3276 = vmatpush1.msra.mxu0 0.0
    %3277 = vmatprep.subr.mxu0 0.0
    %3278 = vmatpush1.msra.mxu0 0.0
    %3279 = vmatprep.subr.mxu0 0.0
    %3280 = vmatpush1.msra.mxu0 0.0
    %3281 = vmatprep.subr.mxu0 0.0
    %3282 = vmatpush1.msra.mxu0 0.0
    %3283 = vmatprep.subr.mxu0 0.0
    %3284 = vmatpush1.msra.mxu0 0.0
    %3285 = vmatprep.subr.mxu0 0.0
    %3286 = vmatpush1.msra.mxu0 0.0
    %3287 = vmatprep.subr.mxu0 0.0
    %3288 = vmatpush1.msra.mxu0 0.0
    %3289 = vmatprep.subr.mxu0 0.0
    %3290 = vmatpush1.msra.mxu0 0.0
    %3291 = vmatprep.subr.mxu0 0.0
    %3292 = vmatpush1.msra.mxu0 0.0
    %3293 = vmatprep.subr.mxu0 0.0
    %3294 = vmatpush1.msra.mxu0 0.0
    %3295 = vmatprep.subr.mxu0 0.0
    %3296 = vmatpush1.msra.mxu0 0.0
    %3297 = vmatprep.subr.mxu0 0.0
    %3298 = vmatpush1.msra.mxu0 0.0
    %3299 = vmatprep.subr.mxu0 0.0
    %3300 = vmatpush1.msra.mxu0 0.0
    %3301 = vmatprep.subr.mxu0 0.0
    %3302 = vmatpush1.msra.mxu0 0.0
    %3303 = vmatprep.subr.mxu0 0.0
    %3304 = vmatpush1.msra.mxu0 0.0
    %3305 = vmatprep.subr.mxu0 0.0
    %3306 = vmatpush1.msra.mxu0 0.0
    %3307 = vmatprep.subr.mxu0 0.0
    %3308 = vmatpush1.msra.mxu0 0.0
    %3309 = vmatprep.subr.mxu0 0.0
    %3310 = vmatpush1.msra.mxu0 0.0
    %3311 = vmatprep.subr.mxu0 0.0
    %3312 = vmatpush1.msra.mxu0 0.0
    %3313 = vmatprep.subr.mxu0 0.0
    %3314 = vmatpush1.msra.mxu0 0.0
    %3315 = vmatprep.subr.mxu0 0.0
    %3316 = vmatpush1.msra.mxu0 0.0
    %3317 = vmatprep.subr.mxu0 0.0
    %3318 = vmatpush1.msra.mxu0 0.0
    %3319 = vmatprep.subr.mxu0 0.0
    %3320 = vmatpush1.msra.mxu0 0.0
    %3321 = vmatprep.subr.mxu0 0.0
    %3322 = vmatpush1.msra.mxu0 0.0
    %3323 = vmatprep.subr.mxu0 0.0
    %3324 = vmatpush1.msra.mxu0 0.0
    %3325 = vmatprep.subr.mxu0 0.0
    %3326 = vmatpush1.msra.mxu0 0.0
    %3327 = vmatprep.subr.mxu0 0.0
    %3328 = vmatpush1.msra.mxu0 0.0
    %3329 = vmatprep.subr.mxu0 0.0
    %3330 = vmatpush1.msra.mxu0 0.0
    %3331 = vmatprep.mubr.f32.mxu0 0.0
    %3332 = vmatmul.mubr.f32.gmra.mrb[0].mxu0 %v3265
    %v3333 = vpop.f32.mrb[0].mxu0
    %v3334 = vadd.f32 0.0, %v3333
    %v3335 = vpop.f32.mrb[0].mxu0
    %3336 = vdwg.mxu0
    %v3337 = vadd.f32 %v3039, %v3334
    %v3338 = vmul.f32 %v1979, %v1587
    %v3339 = vmul.f32 %v1983, %v1587
    %v3340 = vmul.f32 %v1987, %v1587
    %v3341 = vmul.f32 %v1991, %v1587
    %v3342 = vmul.f32 %v1995, %v1587
    %v3343 = vmul.f32 %v1999, %v1587
    %v3344 = vmul.f32 %v2003, %v1587
    %v3345 = vmul.f32 %v2007, %v1587
    %v3346 = vmul.f32 %v2011, %v1587
    %v3347 = vmul.f32 %v2015, %v1587
    %v3348 = vmul.f32 %v2019, %v1587
    %v3349 = vmul.f32 %v2023, %v1587
    %v3350 = vmul.f32 %v2027, %v1587
    %v3351 = vmul.f32 %v2031, %v1587
    %v3352 = vmul.f32 %v2035, %v1587
    %v3353 = vmul.f32 %v2039, %v1587
    %v3354 = vadd.f32 %v3338, %v1608
    %v3355 = vadd.f32 %v3339, %v1608
    %v3356 = vadd.f32 %v3340, %v1608
    %v3357 = vadd.f32 %v3341, %v1608
    %v3358 = vadd.f32 %v3342, %v1608
    %v3359 = vadd.f32 %v3343, %v1608
    %v3360 = vadd.f32 %v3344, %v1608
    %v3361 = vadd.f32 %v3345, %v1608
    %v3362 = vadd.f32 %v3346, %v1608
    %v3363 = vadd.f32 %v3347, %v1608
    %v3364 = vadd.f32 %v3348, %v1608
    %v3365 = vadd.f32 %v3349, %v1608
    %v3366 = vadd.f32 %v3350, %v1608
    %v3367 = vadd.f32 %v3351, %v1608
    %v3368 = vadd.f32 %v3352, %v1608
    %v3369 = vadd.f32 %v3353, %v1608
    %v3370 = vmul.f32 %v2143, %v1629
    %v3371 = vmul.f32 %v2147, %v1629
    %v3372 = vmul.f32 %v2151, %v1629
    %v3373 = vmul.f32 %v2155, %v1629
    %v3374 = vmul.f32 %v2159, %v1629
    %v3375 = vmul.f32 %v2163, %v1629
    %v3376 = vmul.f32 %v2167, %v1629
    %v3377 = vmul.f32 %v2171, %v1629
    %v3378 = vmul.f32 %v2175, %v1629
    %v3379 = vmul.f32 %v2179, %v1629
    %v3380 = vmul.f32 %v2183, %v1629
    %v3381 = vmul.f32 %v2187, %v1629
    %v3382 = vmul.f32 %v2191, %v1629
    %v3383 = vmul.f32 %v2195, %v1629
    %v3384 = vmul.f32 %v2199, %v1629
    %v3385 = vmul.f32 %v2203, %v1629
    %v3386 = vadd.f32 %v3354, %v3370
    %v3387 = vadd.f32 %v3355, %v3371
    %v3388 = vadd.f32 %v3356, %v3372
    %v3389 = vadd.f32 %v3357, %v3373
    %v3390 = vadd.f32 %v3358, %v3374
    %v3391 = vadd.f32 %v3359, %v3375
    %v3392 = vadd.f32 %v3360, %v3376
    %v3393 = vadd.f32 %v3361, %v3377
    %v3394 = vadd.f32 %v3362, %v3378
    %v3395 = vadd.f32 %v3363, %v3379
    %v3396 = vadd.f32 %v3364, %v3380
    %v3397 = vadd.f32 %v3365, %v3381
    %v3398 = vadd.f32 %v3366, %v3382
    %v3399 = vadd.f32 %v3367, %v3383
    %v3400 = vadd.f32 %v3368, %v3384
    %v3401 = vadd.f32 %v3369, %v3385
    %v3402 = vmul.f32 %v2307, %v1666
    %v3403 = vmul.f32 %v2311, %v1666
    %v3404 = vmul.f32 %v2315, %v1666
    %v3405 = vmul.f32 %v2319, %v1666
    %v3406 = vmul.f32 %v2323, %v1666
    %v3407 = vmul.f32 %v2327, %v1666
    %v3408 = vmul.f32 %v2331, %v1666
    %v3409 = vmul.f32 %v2335, %v1666
    %v3410 = vmul.f32 %v2339, %v1666
    %v3411 = vmul.f32 %v2343, %v1666
    %v3412 = vmul.f32 %v2347, %v1666
    %v3413 = vmul.f32 %v2351, %v1666
    %v3414 = vmul.f32 %v2355, %v1666
    %v3415 = vmul.f32 %v2359, %v1666
    %v3416 = vmul.f32 %v2363, %v1666
    %v3417 = vmul.f32 %v2367, %v1666
    %v3418 = vadd.f32 %v3386, %v3402
    %v3419 = vadd.f32 %v3387, %v3403
    %v3420 = vadd.f32 %v3388, %v3404
    %v3421 = vadd.f32 %v3389, %v3405
    %v3422 = vadd.f32 %v3390, %v3406
    %v3423 = vadd.f32 %v3391, %v3407
    %v3424 = vadd.f32 %v3392, %v3408
    %v3425 = vadd.f32 %v3393, %v3409
    %v3426 = vadd.f32 %v3394, %v3410
    %v3427 = vadd.f32 %v3395, %v3411
    %v3428 = vadd.f32 %v3396, %v3412
    %v3429 = vadd.f32 %v3397, %v3413
    %v3430 = vadd.f32 %v3398, %v3414
    %v3431 = vadd.f32 %v3399, %v3415
    %v3432 = vadd.f32 %v3400, %v3416
    %v3433 = vadd.f32 %v3401, %v3417
    %v3434 = vmul.f32 %v2471, %v1703
    %v3435 = vmul.f32 %v2475, %v1703
    %v3436 = vmul.f32 %v2479, %v1703
    %v3437 = vmul.f32 %v2483, %v1703
    %v3438 = vmul.f32 %v2487, %v1703
    %v3439 = vmul.f32 %v2491, %v1703
    %v3440 = vmul.f32 %v2495, %v1703
    %v3441 = vmul.f32 %v2499, %v1703
    %v3442 = vmul.f32 %v2503, %v1703
    %v3443 = vmul.f32 %v2507, %v1703
    %v3444 = vmul.f32 %v2511, %v1703
    %v3445 = vmul.f32 %v2515, %v1703
    %v3446 = vmul.f32 %v2519, %v1703
    %v3447 = vmul.f32 %v2523, %v1703
    %v3448 = vmul.f32 %v2527, %v1703
    %v3449 = vmul.f32 %v2531, %v1703
    %v3450 = vadd.f32 %v3418, %v3434
    %v3451 = vadd.f32 %v3419, %v3435
    %v3452 = vadd.f32 %v3420, %v3436
    %v3453 = vadd.f32 %v3421, %v3437
    %v3454 = vadd.f32 %v3422, %v3438
    %v3455 = vadd.f32 %v3423, %v3439
    %v3456 = vadd.f32 %v3424, %v3440
    %v3457 = vadd.f32 %v3425, %v3441
    %v3458 = vadd.f32 %v3426, %v3442
    %v3459 = vadd.f32 %v3427, %v3443
    %v3460 = vadd.f32 %v3428, %v3444
    %v3461 = vadd.f32 %v3429, %v3445
    %v3462 = vadd.f32 %v3430, %v3446
    %v3463 = vadd.f32 %v3431, %v3447
    %v3464 = vadd.f32 %v3432, %v3448
    %v3465 = vadd.f32 %v3433, %v3449
    %v3466 = vmax.f32 %v3450, 0.0
    %v3467 = vmax.f32 %v3451, 0.0
    %v3468 = vmax.f32 %v3452, 0.0
    %v3469 = vmax.f32 %v3453, 0.0
    %v3470 = vmax.f32 %v3454, 0.0
    %v3471 = vmax.f32 %v3455, 0.0
    %v3472 = vmax.f32 %v3456, 0.0
    %v3473 = vmax.f32 %v3457, 0.0
    %v3474 = vmax.f32 %v3458, 0.0
    %v3475 = vmax.f32 %v3459, 0.0
    %v3476 = vmax.f32 %v3460, 0.0
    %v3477 = vmax.f32 %v3461, 0.0
    %v3478 = vmax.f32 %v3462, 0.0
    %v3479 = vmax.f32 %v3463, 0.0
    %v3480 = vmax.f32 %v3464, 0.0
    %v3481 = vmax.f32 %v3465, 0.0
    %v3482 = vadd.f32 %v3466, %v3467
    %3483 = vadd.xlane.f32.xlu0 %v3482
    %v3484 = vpop.xlane.xlu0 %3483
    %v3485 = vadd.f32 %v3468, %v3469
    %3486 = vadd.xlane.f32.xlu0 %v3485
    %v3487 = vpop.xlane.xlu0 %3486
    %v3488 = vadd.f32 %v3470, %v3471
    %3489 = vadd.xlane.f32.xlu0 %v3488
    %v3490 = vpop.xlane.xlu0 %3489
    %v3491 = vadd.f32 %v3472, %v3473
    %3492 = vadd.xlane.f32.xlu0 %v3491
    %v3493 = vpop.xlane.xlu0 %3492
    %v3494 = vadd.f32 %v3474, %v3475
    %3495 = vadd.xlane.f32.xlu0 %v3494
    %v3496 = vpop.xlane.xlu0 %3495
    %v3497 = vadd.f32 %v3476, %v3477
    %3498 = vadd.xlane.f32.xlu0 %v3497
    %v3499 = vpop.xlane.xlu0 %3498
    %v3500 = vadd.f32 %v3478, %v3479
    %3501 = vadd.xlane.f32.xlu0 %v3500
    %v3502 = vpop.xlane.xlu0 %3501
    %v3503 = vadd.f32 %v3480, %v3481
    %3504 = vadd.xlane.f32.xlu0 %v3503
    %v3505 = vpop.xlane.xlu0 %3504
    %v3506 = vmul.f32 %v3484, %v805
    %v3507 = vmul.f32 %v3487, %v805
    %v3508 = vmul.f32 %v3490, %v805
    %v3509 = vmul.f32 %v3493, %v805
    %v3510 = vmul.f32 %v3496, %v805
    %v3511 = vmul.f32 %v3499, %v805
    %v3512 = vmul.f32 %v3502, %v805
    %v3513 = vmul.f32 %v3505, %v805
    %v3522 = vlaneseq
    %v3523 = vshrl.u32 %v3522, 7
    %v3524 = vsub.s32 %v1024, %v3523
    %v3525 = vrot.slane %v3506, %v3524
    %v3526 = vlaneseq
    %v3527 = vshrl.u32 %v3526, 7
    %v3528 = vsub.s32 %v1024, %v3527
    %v3529 = vrot.slane %v3507, %v3528
    %v3530 = vlaneseq
    %v3531 = vshrl.u32 %v3530, 7
    %v3532 = vsub.s32 %v1024, %v3531
    %v3533 = vrot.slane %v3508, %v3532
    %v3534 = vlaneseq
    %v3535 = vshrl.u32 %v3534, 7
    %v3536 = vsub.s32 %v1024, %v3535
    %v3537 = vrot.slane %v3509, %v3536
    %v3538 = vlaneseq
    %v3539 = vshrl.u32 %v3538, 7
    %v3540 = vsub.s32 %v1024, %v3539
    %v3541 = vrot.slane %v3510, %v3540
    %v3542 = vlaneseq
    %v3543 = vshrl.u32 %v3542, 7
    %v3544 = vsub.s32 %v1024, %v3543
    %v3545 = vrot.slane %v3511, %v3544
    %v3546 = vlaneseq
    %v3547 = vshrl.u32 %v3546, 7
    %v3548 = vsub.s32 %v1024, %v3547
    %v3549 = vrot.slane %v3512, %v3548
    %v3550 = vlaneseq
    %v3551 = vshrl.u32 %v3550, 7
    %v3552 = vsub.s32 %v1024, %v3551
    %v3553 = vrot.slane %v3513, %v3552
    %v3554 = vsel %vm1057, %v3529, %v3525
    %v3555 = vsel %vm1059, %v3533, %v3554
    %v3556 = vsel %vm1061, %v3537, %v3555
    %v3557 = vsel %vm1063, %v3541, %v3556
    %v3558 = vsel %vm1065, %v3545, %v3557
    %v3559 = vsel %vm1067, %v3549, %v3558
    %v3560 = vsel %vm1069, %v3553, %v3559
    %v3561 = vsel %vm1071, %v3560, 0
    %3563 = vmatprep.subr.mxu0 0.0
    %3564 = vmatpush1.msra.mxu0 %v71
    %3565 = vmatprep.subr.mxu0 0.0
    %3566 = vmatpush1.msra.mxu0 0.0
    %3567 = vmatprep.subr.mxu0 0.0
    %3568 = vmatpush1.msra.mxu0 0.0
    %3569 = vmatprep.subr.mxu0 0.0
    %3570 = vmatpush1.msra.mxu0 0.0
    %3571 = vmatprep.subr.mxu0 0.0
    %3572 = vmatpush1.msra.mxu0 0.0
    %3573 = vmatprep.subr.mxu0 0.0
    %3574 = vmatpush1.msra.mxu0 0.0
    %3575 = vmatprep.subr.mxu0 0.0
    %3576 = vmatpush1.msra.mxu0 0.0
    %3577 = vmatprep.subr.mxu0 0.0
    %3578 = vmatpush1.msra.mxu0 0.0
    %3579 = vmatprep.subr.mxu0 0.0
    %3580 = vmatpush1.msra.mxu0 0.0
    %3581 = vmatprep.subr.mxu0 0.0
    %3582 = vmatpush1.msra.mxu0 0.0
    %3583 = vmatprep.subr.mxu0 0.0
    %3584 = vmatpush1.msra.mxu0 0.0
    %3585 = vmatprep.subr.mxu0 0.0
    %3586 = vmatpush1.msra.mxu0 0.0
    %3587 = vmatprep.subr.mxu0 0.0
    %3588 = vmatpush1.msra.mxu0 0.0
    %3589 = vmatprep.subr.mxu0 0.0
    %3590 = vmatpush1.msra.mxu0 0.0
    %3591 = vmatprep.subr.mxu0 0.0
    %3592 = vmatpush1.msra.mxu0 0.0
    %3593 = vmatprep.subr.mxu0 0.0
    %3594 = vmatpush1.msra.mxu0 0.0
    %3595 = vmatprep.subr.mxu0 0.0
    %3596 = vmatpush1.msra.mxu0 0.0
    %3597 = vmatprep.subr.mxu0 0.0
    %3598 = vmatpush1.msra.mxu0 0.0
    %3599 = vmatprep.subr.mxu0 0.0
    %3600 = vmatpush1.msra.mxu0 0.0
    %3601 = vmatprep.subr.mxu0 0.0
    %3602 = vmatpush1.msra.mxu0 0.0
    %3603 = vmatprep.subr.mxu0 0.0
    %3604 = vmatpush1.msra.mxu0 0.0
    %3605 = vmatprep.subr.mxu0 0.0
    %3606 = vmatpush1.msra.mxu0 0.0
    %3607 = vmatprep.subr.mxu0 0.0
    %3608 = vmatpush1.msra.mxu0 0.0
    %3609 = vmatprep.subr.mxu0 0.0
    %3610 = vmatpush1.msra.mxu0 0.0
    %3611 = vmatprep.subr.mxu0 0.0
    %3612 = vmatpush1.msra.mxu0 0.0
    %3613 = vmatprep.subr.mxu0 0.0
    %3614 = vmatpush1.msra.mxu0 0.0
    %3615 = vmatprep.subr.mxu0 0.0
    %3616 = vmatpush1.msra.mxu0 0.0
    %3617 = vmatprep.subr.mxu0 0.0
    %3618 = vmatpush1.msra.mxu0 0.0
    %3619 = vmatprep.subr.mxu0 0.0
    %3620 = vmatpush1.msra.mxu0 0.0
    %3621 = vmatprep.subr.mxu0 0.0
    %3622 = vmatpush1.msra.mxu0 0.0
    %3623 = vmatprep.subr.mxu0 0.0
    %3624 = vmatpush1.msra.mxu0 0.0
    %3625 = vmatprep.subr.mxu0 0.0
    %3626 = vmatpush1.msra.mxu0 0.0
    %3627 = vmatprep.mubr.f32.mxu0 0.0
    %3628 = vmatmul.mubr.f32.gmra.mrb[0].mxu0 %v3561
    %v3629 = vpop.f32.mrb[0].mxu0
    %v3630 = vadd.f32 0.0, %v3629
    %v3631 = vpop.f32.mrb[0].mxu0
    %3632 = vdwg.mxu0
    %v3633 = vadd.f32 %v3337, %v3630
    %v3634 = vadd.f32 %v3633, %v1909
    %v3635 = vlaneseq
    %v3636 = vshrl.u32 %v3635, 7
    %vm3637 = vcmp.eq.s32.totalorder %v3636, 0
    %v3639 = vcombine.high %v1911, %v1911
    %v3641 = vunpack.c.l.s4 1966171168
    %v3642 = vunpack.c.0.s8 %v3641
    %v3643 = vlaneseq
    %v3644 = vshrl.u32 %v3643, 7
    %v3645 = vsub.s32 %v3642, %v3644
    %v3646 = vrot.slane %v1911, %v3645
    %v3648 = vunpack.c.l.s4 1966171168
    %v3649 = vunpack.c.0.s8 %v3648
    %v3650 = vlaneseq
    %v3651 = vshrl.u32 %v3650, 7
    %v3652 = vsub.s32 %v3649, %v3651
    %v3653 = vrot.slane %v3639, %v3652
    %v3654 = vcombine.high %v3646, %v3646
    %v3655 = vcombine.high %v3653, %v3653
    %v3657 = vunpack.c.l.s4 1966171168
    %v3658 = vunpack.c.0.s8 %v3657
    %v3659 = vlaneseq
    %v3660 = vshrl.u32 %v3659, 7
    %v3661 = vsub.s32 %v3658, %v3660
    %v3662 = vrot.slane %v3646, %v3661
    %v3664 = vunpack.c.l.s4 1966171168
    %v3665 = vunpack.c.0.s8 %v3664
    %v3666 = vlaneseq
    %v3667 = vshrl.u32 %v3666, 7
    %v3668 = vsub.s32 %v3665, %v3667
    %v3669 = vrot.slane %v3653, %v3668
    %v3671 = vunpack.c.l.s4 1966171168
    %v3672 = vunpack.c.0.s8 %v3671
    %v3673 = vlaneseq
    %v3674 = vshrl.u32 %v3673, 7
    %v3675 = vsub.s32 %v3672, %v3674
    %v3676 = vrot.slane %v3654, %v3675
    %v3678 = vunpack.c.l.s4 1966171168
    %v3679 = vunpack.c.0.s8 %v3678
    %v3680 = vlaneseq
    %v3681 = vshrl.u32 %v3680, 7
    %v3682 = vsub.s32 %v3679, %v3681
    %v3683 = vrot.slane %v3655, %v3682
    %v3684 = vcombine.high %v3662, %v3662
    %v3685 = vcombine.high %v3669, %v3669
    %v3686 = vcombine.high %v3676, %v3676
    %v3687 = vcombine.high %v3683, %v3683
    %v3688 = vlaneseq
    %v3689 = vshrl.u32 %v3688, 7
    %v3690 = vsub.s32 0, %v3689
    %v3691 = vrot.slane %v3662, %v3690
    %v3692 = vlaneseq
    %v3693 = vshrl.u32 %v3692, 7
    %v3694 = vsub.s32 0, %v3693
    %v3695 = vrot.slane %v3676, %v3694
    %v3696 = vlaneseq
    %v3697 = vshrl.u32 %v3696, 7
    %v3698 = vsub.s32 0, %v3697
    %v3699 = vrot.slane %v3684, %v3698
    %v3700 = vlaneseq
    %v3701 = vshrl.u32 %v3700, 7
    %v3702 = vsub.s32 0, %v3701
    %v3703 = vrot.slane %v3686, %v3702
    %v3704 = vlaneseq
    %v3705 = vshrl.u32 %v3704, 7
    %v3706 = vsub.s32 0, %v3705
    %v3707 = vrot.slane %v3669, %v3706
    %v3708 = vlaneseq
    %v3709 = vshrl.u32 %v3708, 7
    %v3710 = vsub.s32 0, %v3709
    %v3711 = vrot.slane %v3683, %v3710
    %v3712 = vlaneseq
    %v3713 = vshrl.u32 %v3712, 7
    %v3714 = vsub.s32 0, %v3713
    %v3715 = vrot.slane %v3685, %v3714
    %v3716 = vlaneseq
    %v3717 = vshrl.u32 %v3716, 7
    %v3718 = vsub.s32 0, %v3717
    %v3719 = vrot.slane %v3687, %v3718
    %v3728 = vsel %vm3637, %v3691, 0.0
    %v3729 = vsel %vm3637, %v3695, 0.0
    %v3730 = vsel %vm3637, %v3699, 0.0
    %v3731 = vsel %vm3637, %v3703, 0.0
    %v3732 = vsel %vm3637, %v3707, 0.0
    %v3733 = vsel %vm3637, %v3711, 0.0
    %v3734 = vsel %vm3637, %v3715, 0.0
    %v3735 = vsel %vm3637, %v3719, 0.0
    %vm3736 = vcmp.eq.s32.totalorder %v3636, 1
    %v3738 = vcombine.high %v3634, %v3634
    %v3740 = vunpack.c.l.s4 1966171168
    %v3741 = vunpack.c.0.s8 %v3740
    %v3742 = vlaneseq
    %v3743 = vshrl.u32 %v3742, 7
    %v3744 = vsub.s32 %v3741, %v3743
    %v3745 = vrot.slane %v3634, %v3744
    %v3747 = vunpack.c.l.s4 1966171168
    %v3748 = vunpack.c.0.s8 %v3747
    %v3749 = vlaneseq
    %v3750 = vshrl.u32 %v3749, 7
    %v3751 = vsub.s32 %v3748, %v3750
    %v3752 = vrot.slane %v3738, %v3751
    %v3753 = vcombine.high %v3745, %v3745
    %v3754 = vcombine.high %v3752, %v3752
    %v3756 = vunpack.c.l.s4 1966171168
    %v3757 = vunpack.c.0.s8 %v3756
    %v3758 = vlaneseq
    %v3759 = vshrl.u32 %v3758, 7
    %v3760 = vsub.s32 %v3757, %v3759
    %v3761 = vrot.slane %v3745, %v3760
    %v3763 = vunpack.c.l.s4 1966171168
    %v3764 = vunpack.c.0.s8 %v3763
    %v3765 = vlaneseq
    %v3766 = vshrl.u32 %v3765, 7
    %v3767 = vsub.s32 %v3764, %v3766
    %v3768 = vrot.slane %v3752, %v3767
    %v3770 = vunpack.c.l.s4 1966171168
    %v3771 = vunpack.c.0.s8 %v3770
    %v3772 = vlaneseq
    %v3773 = vshrl.u32 %v3772, 7
    %v3774 = vsub.s32 %v3771, %v3773
    %v3775 = vrot.slane %v3753, %v3774
    %v3777 = vunpack.c.l.s4 1966171168
    %v3778 = vunpack.c.0.s8 %v3777
    %v3779 = vlaneseq
    %v3780 = vshrl.u32 %v3779, 7
    %v3781 = vsub.s32 %v3778, %v3780
    %v3782 = vrot.slane %v3754, %v3781
    %v3783 = vcombine.high %v3761, %v3761
    %v3784 = vcombine.high %v3768, %v3768
    %v3785 = vcombine.high %v3775, %v3775
    %v3786 = vcombine.high %v3782, %v3782
    %v3787 = vlaneseq
    %v3788 = vshrl.u32 %v3787, 7
    %v3789 = vsub.s32 0, %v3788
    %v3790 = vrot.slane %v3761, %v3789
    %v3791 = vlaneseq
    %v3792 = vshrl.u32 %v3791, 7
    %v3793 = vsub.s32 0, %v3792
    %v3794 = vrot.slane %v3775, %v3793
    %v3795 = vlaneseq
    %v3796 = vshrl.u32 %v3795, 7
    %v3797 = vsub.s32 0, %v3796
    %v3798 = vrot.slane %v3783, %v3797
    %v3799 = vlaneseq
    %v3800 = vshrl.u32 %v3799, 7
    %v3801 = vsub.s32 0, %v3800
    %v3802 = vrot.slane %v3785, %v3801
    %v3803 = vlaneseq
    %v3804 = vshrl.u32 %v3803, 7
    %v3805 = vsub.s32 0, %v3804
    %v3806 = vrot.slane %v3768, %v3805
    %v3807 = vlaneseq
    %v3808 = vshrl.u32 %v3807, 7
    %v3809 = vsub.s32 0, %v3808
    %v3810 = vrot.slane %v3782, %v3809
    %v3811 = vlaneseq
    %v3812 = vshrl.u32 %v3811, 7
    %v3813 = vsub.s32 0, %v3812
    %v3814 = vrot.slane %v3784, %v3813
    %v3815 = vlaneseq
    %v3816 = vshrl.u32 %v3815, 7
    %v3817 = vsub.s32 0, %v3816
    %v3818 = vrot.slane %v3786, %v3817
    %v3827 = vsel %vm3736, %v3790, %v3728
    %v3828 = vsel %vm3736, %v3794, %v3729
    %v3829 = vsel %vm3736, %v3798, %v3730
    %v3830 = vsel %vm3736, %v3802, %v3731
    %v3831 = vsel %vm3736, %v3806, %v3732
    %v3832 = vsel %vm3736, %v3810, %v3733
    %v3833 = vsel %vm3736, %v3814, %v3734
    %v3834 = vsel %vm3736, %v3818, %v3735
    %v3835 = vld [vmem:[%s5] sm:$0xff]
    %v3836 = vld [vmem:[%s5 + $0x8] sm:$0xff]
    %v3837 = vld [vmem:[%s5 + $0x10] sm:$0xff]
    %v3838 = vld [vmem:[%s5 + $0x18] sm:$0xff]
    %v3839 = vld [vmem:[%s6] sm:$0x1]
    %v3841 = vlaneseq
    %v3842 = vshrl.u32 %v3841, 7
    %v3843 = vsub.s32 0, %v3842
    %v3844 = vrot.slane %v3839, %v3843
    %vm3846 = vcmask 261120
    %v3848 = vsel %vm3846, 0.0, 0
    %3850 = vmatprep.subr.mxu0 0.0
    %3851 = vmatpush1.msra.mxu0 %v3835
    %3852 = vmatprep.subr.mxu0 0.0
    %3853 = vmatpush1.msra.mxu0 %v3836
    %3854 = vmatprep.subr.mxu0 0.0
    %3855 = vmatpush1.msra.mxu0 %v3837
    %3856 = vmatprep.subr.mxu0 0.0
    %3857 = vmatpush1.msra.mxu0 %v3838
    %3858 = vmatprep.subr.mxu0 0.0
    %3859 = vmatpush1.msra.mxu0 0.0
    %3860 = vmatprep.subr.mxu0 0.0
    %3861 = vmatpush1.msra.mxu0 0.0
    %3862 = vmatprep.subr.mxu0 0.0
    %3863 = vmatpush1.msra.mxu0 0.0
    %3864 = vmatprep.subr.mxu0 0.0
    %3865 = vmatpush1.msra.mxu0 0.0
    %3866 = vmatprep.subr.mxu0 0.0
    %3867 = vmatpush1.msra.mxu0 0.0
    %3868 = vmatprep.subr.mxu0 0.0
    %3869 = vmatpush1.msra.mxu0 0.0
    %3870 = vmatprep.subr.mxu0 0.0
    %3871 = vmatpush1.msra.mxu0 0.0
    %3872 = vmatprep.subr.mxu0 0.0
    %3873 = vmatpush1.msra.mxu0 0.0
    %3874 = vmatprep.subr.mxu0 0.0
    %3875 = vmatpush1.msra.mxu0 0.0
    %3876 = vmatprep.subr.mxu0 0.0
    %3877 = vmatpush1.msra.mxu0 0.0
    %3878 = vmatprep.subr.mxu0 0.0
    %3879 = vmatpush1.msra.mxu0 0.0
    %3880 = vmatprep.subr.mxu0 0.0
    %3881 = vmatpush1.msra.mxu0 0.0
    %3882 = vmatprep.subr.mxu0 0.0
    %3883 = vmatpush1.msra.mxu0 0.0
    %3884 = vmatprep.subr.mxu0 0.0
    %3885 = vmatpush1.msra.mxu0 0.0
    %3886 = vmatprep.subr.mxu0 0.0
    %3887 = vmatpush1.msra.mxu0 0.0
    %3888 = vmatprep.subr.mxu0 0.0
    %3889 = vmatpush1.msra.mxu0 0.0
    %3890 = vmatprep.subr.mxu0 0.0
    %3891 = vmatpush1.msra.mxu0 0.0
    %3892 = vmatprep.subr.mxu0 0.0
    %3893 = vmatpush1.msra.mxu0 0.0
    %3894 = vmatprep.subr.mxu0 0.0
    %3895 = vmatpush1.msra.mxu0 0.0
    %3896 = vmatprep.subr.mxu0 0.0
    %3897 = vmatpush1.msra.mxu0 0.0
    %3898 = vmatprep.subr.mxu0 0.0
    %3899 = vmatpush1.msra.mxu0 0.0
    %3900 = vmatprep.subr.mxu0 0.0
    %3901 = vmatpush1.msra.mxu0 0.0
    %3902 = vmatprep.subr.mxu0 0.0
    %3903 = vmatpush1.msra.mxu0 0.0
    %3904 = vmatprep.subr.mxu0 0.0
    %3905 = vmatpush1.msra.mxu0 0.0
    %3906 = vmatprep.subr.mxu0 0.0
    %3907 = vmatpush1.msra.mxu0 0.0
    %3908 = vmatprep.subr.mxu0 0.0
    %3909 = vmatpush1.msra.mxu0 0.0
    %3910 = vmatprep.subr.mxu0 0.0
    %3911 = vmatpush1.msra.mxu0 0.0
    %3912 = vmatprep.subr.mxu0 0.0
    %3913 = vmatpush1.msra.mxu0 0.0
    %3914 = vmatprep.mubr.f32.mxu0 0.0
    %3915 = vmatmul.mubr.f32.gmra.mrb[0].mxu0 %v3848
    %v3916 = vpop.f32.mrb[0].mxu0
    %v3917 = vadd.f32 %v3844, %v3916
    %v3918 = vpop.f32.mrb[0].mxu0
    %3919 = vdwg.mxu0
    %v3920 = vadd.f32 %v3827, %v3917
    %v3921 = vxor.u32 %v3920, 2147483648
    %v3922 = vmul.f32 %v3921, 1.442695
    %v3923 = vpow.pop %v3922
    %v3924 = vadd.f32 %v3923, 1.0
    %v3925 = vrcp.pop %v3924
    %v3926 = vmul.f32 1.0, %v3925
    %3928 = vrot.lane.b32.xlu0 %v3917, 64
    %v3929 = vpop.permute.xlu0 %3928
    %v3931 = vmul.f32 %v3926, %v3929
    %3933 = vrot.lane.b32.xlu0 %v3931, 64
    %v3934 = vpop.permute.xlu0 %3933
    %v3936 = vadd.f32 %v3827, %v3934
    %v3937 = vtanh.pop %v3936
    %v3938 = vsub.f32 1.0, %v3926
    %3940 = vrot.lane.b32.xlu0 %v3937, 96
    %v3941 = vpop.permute.xlu0 %3940
    %v3943 = vmul.f32 %v3938, %v3941
    %v3944 = vmul.f32 %v3926, 0.0
    %v3945 = vadd.f32 %v3943, %v3944
    %s3946 = sld [smem:[#allocation2]]
    %v3947 = vstv %s3946
    %v3948 = vmul.f32 %v3947, %v3945
    %v3949 = vadd.f32 %v3948, 0.0
    %3951 = vrot.lane.b32.xlu0 %v3945, 96
    %v3952 = vpop.permute.xlu0 %3951
    %v3953 = vsel %vm3846, %v3952, 0
    %3955 = vmatprep.subr.mxu0 0.0
    %3956 = vmatpush1.msra.mxu0 %v3835
    %3957 = vmatprep.subr.mxu0 0.0
    %3958 = vmatpush1.msra.mxu0 %v3836
    %3959 = vmatprep.subr.mxu0 0.0
    %3960 = vmatpush1.msra.mxu0 %v3837
    %3961 = vmatprep.subr.mxu0 0.0
    %3962 = vmatpush1.msra.mxu0 %v3838
    %3963 = vmatprep.subr.mxu0 0.0
    %3964 = vmatpush1.msra.mxu0 0.0
    %3965 = vmatprep.subr.mxu0 0.0
    %3966 = vmatpush1.msra.mxu0 0.0
    %3967 = vmatprep.subr.mxu0 0.0
    %3968 = vmatpush1.msra.mxu0 0.0
    %3969 = vmatprep.subr.mxu0 0.0
    %3970 = vmatpush1.msra.mxu0 0.0
    %3971 = vmatprep.subr.mxu0 0.0
    %3972 = vmatpush1.msra.mxu0 0.0
    %3973 = vmatprep.subr.mxu0 0.0
    %3974 = vmatpush1.msra.mxu0 0.0
    %3975 = vmatprep.subr.mxu0 0.0
    %3976 = vmatpush1.msra.mxu0 0.0
    %3977 = vmatprep.subr.mxu0 0.0
    %3978 = vmatpush1.msra.mxu0 0.0
    %3979 = vmatprep.subr.mxu0 0.0
    %3980 = vmatpush1.msra.mxu0 0.0
    %3981 = vmatprep.subr.mxu0 0.0
    %3982 = vmatpush1.msra.mxu0 0.0
    %3983 = vmatprep.subr.mxu0 0.0
    %3984 = vmatpush1.msra.mxu0 0.0
    %3985 = vmatprep.subr.mxu0 0.0
    %3986 = vmatpush1.msra.mxu0 0.0
    %3987 = vmatprep.subr.mxu0 0.0
    %3988 = vmatpush1.msra.mxu0 0.0
    %3989 = vmatprep.subr.mxu0 0.0
    %3990 = vmatpush1.msra.mxu0 0.0
    %3991 = vmatprep.subr.mxu0 0.0
    %3992 = vmatpush1.msra.mxu0 0.0
    %3993 = vmatprep.subr.mxu0 0.0
    %3994 = vmatpush1.msra.mxu0 0.0
    %3995 = vmatprep.subr.mxu0 0.0
    %3996 = vmatpush1.msra.mxu0 0.0
    %3997 = vmatprep.subr.mxu0 0.0
    %3998 = vmatpush1.msra.mxu0 0.0
    %3999 = vmatprep.subr.mxu0 0.0
    %4000 = vmatpush1.msra.mxu0 0.0
    %4001 = vmatprep.subr.mxu0 0.0
    %4002 = vmatpush1.msra.mxu0 0.0
    %4003 = vmatprep.subr.mxu0 0.0
    %4004 = vmatpush1.msra.mxu0 0.0
    %4005 = vmatprep.subr.mxu0 0.0
    %4006 = vmatpush1.msra.mxu0 0.0
    %4007 = vmatprep.subr.mxu0 0.0
    %4008 = vmatpush1.msra.mxu0 0.0
    %4009 = vmatprep.subr.mxu0 0.0
    %4010 = vmatpush1.msra.mxu0 0.0
    %4011 = vmatprep.subr.mxu0 0.0
    %4012 = vmatpush1.msra.mxu0 0.0
    %4013 = vmatprep.subr.mxu0 0.0
    %4014 = vmatpush1.msra.mxu0 0.0
    %4015 = vmatprep.subr.mxu0 0.0
    %4016 = vmatpush1.msra.mxu0 0.0
    %4017 = vmatprep.subr.mxu0 0.0
    %4018 = vmatpush1.msra.mxu0 0.0
    %4019 = vmatprep.mubr.f32.mxu0 0.0
    %4020 = vmatmul.mubr.f32.gmra.mrb[0].mxu0 %v3953
    %v4021 = vpop.f32.mrb[0].mxu0
    %v4022 = vadd.f32 %v3844, %v4021
    %v4023 = vpop.f32.mrb[0].mxu0
    %4024 = vdwg.mxu0
    %v4025 = vadd.f32 %v3828, %v4022
    %v4026 = vxor.u32 %v4025, 2147483648
    %v4027 = vmul.f32 %v4026, 1.442695
    %v4028 = vpow.pop %v4027
    %v4029 = vadd.f32 %v4028, 1.0
    %v4030 = vrcp.pop %v4029
    %v4031 = vmul.f32 1.0, %v4030
    %4033 = vrot.lane.b32.xlu0 %v4022, 64
    %v4034 = vpop.permute.xlu0 %4033
    %v4036 = vmul.f32 %v4031, %v4034
    %4038 = vrot.lane.b32.xlu0 %v4036, 64
    %v4039 = vpop.permute.xlu0 %4038
    %v4041 = vadd.f32 %v3828, %v4039
    %v4042 = vtanh.pop %v4041
    %v4043 = vsub.f32 1.0, %v4031
    %4045 = vrot.lane.b32.xlu0 %v4042, 96
    %v4046 = vpop.permute.xlu0 %4045
    %v4048 = vmul.f32 %v4043, %v4046
    %v4049 = vmul.f32 %v4031, %v3945
    %v4050 = vadd.f32 %v4048, %v4049
    %s4051 = sld [smem:[#allocation2 + $0x1]]
    %v4052 = vstv %s4051
    %v4053 = vmul.f32 %v4052, %v4050
    %v4054 = vadd.f32 %v3949, %v4053
    %4056 = vrot.lane.b32.xlu0 %v4050, 96
    %v4057 = vpop.permute.xlu0 %4056
    %v4058 = vsel %vm3846, %v4057, 0
    %4060 = vmatprep.subr.mxu0 0.0
    %4061 = vmatpush1.msra.mxu0 %v3835
    %4062 = vmatprep.subr.mxu0 0.0
    %4063 = vmatpush1.msra.mxu0 %v3836
    %4064 = vmatprep.subr.mxu0 0.0
    %4065 = vmatpush1.msra.mxu0 %v3837
    %4066 = vmatprep.subr.mxu0 0.0
    %4067 = vmatpush1.msra.mxu0 %v3838
    %4068 = vmatprep.subr.mxu0 0.0
    %4069 = vmatpush1.msra.mxu0 0.0
    %4070 = vmatprep.subr.mxu0 0.0
    %4071 = vmatpush1.msra.mxu0 0.0
    %4072 = vmatprep.subr.mxu0 0.0
    %4073 = vmatpush1.msra.mxu0 0.0
    %4074 = vmatprep.subr.mxu0 0.0
    %4075 = vmatpush1.msra.mxu0 0.0
    %4076 = vmatprep.subr.mxu0 0.0
    %4077 = vmatpush1.msra.mxu0 0.0
    %4078 = vmatprep.subr.mxu0 0.0
    %4079 = vmatpush1.msra.mxu0 0.0
    %4080 = vmatprep.subr.mxu0 0.0
    %4081 = vmatpush1.msra.mxu0 0.0
    %4082 = vmatprep.subr.mxu0 0.0
    %4083 = vmatpush1.msra.mxu0 0.0
    %4084 = vmatprep.subr.mxu0 0.0
    %4085 = vmatpush1.msra.mxu0 0.0
    %4086 = vmatprep.subr.mxu0 0.0
    %4087 = vmatpush1.msra.mxu0 0.0
    %4088 = vmatprep.subr.mxu0 0.0
    %4089 = vmatpush1.msra.mxu0 0.0
    %4090 = vmatprep.subr.mxu0 0.0
    %4091 = vmatpush1.msra.mxu0 0.0
    %4092 = vmatprep.subr.mxu0 0.0
    %4093 = vmatpush1.msra.mxu0 0.0
    %4094 = vmatprep.subr.mxu0 0.0
    %4095 = vmatpush1.msra.mxu0 0.0
    %4096 = vmatprep.subr.mxu0 0.0
    %4097 = vmatpush1.msra.mxu0 0.0
    %4098 = vmatprep.subr.mxu0 0.0
    %4099 = vmatpush1.msra.mxu0 0.0
    %4100 = vmatprep.subr.mxu0 0.0
    %4101 = vmatpush1.msra.mxu0 0.0
    %4102 = vmatprep.subr.mxu0 0.0
    %4103 = vmatpush1.msra.mxu0 0.0
    %4104 = vmatprep.subr.mxu0 0.0
    %4105 = vmatpush1.msra.mxu0 0.0
    %4106 = vmatprep.subr.mxu0 0.0
    %4107 = vmatpush1.msra.mxu0 0.0
    %4108 = vmatprep.subr.mxu0 0.0
    %4109 = vmatpush1.msra.mxu0 0.0
    %4110 = vmatprep.subr.mxu0 0.0
    %4111 = vmatpush1.msra.mxu0 0.0
    %4112 = vmatprep.subr.mxu0 0.0
    %4113 = vmatpush1.msra.mxu0 0.0
    %4114 = vmatprep.subr.mxu0 0.0
    %4115 = vmatpush1.msra.mxu0 0.0
    %4116 = vmatprep.subr.mxu0 0.0
    %4117 = vmatpush1.msra.mxu0 0.0
    %4118 = vmatprep.subr.mxu0 0.0
    %4119 = vmatpush1.msra.mxu0 0.0
    %4120 = vmatprep.subr.mxu0 0.0
    %4121 = vmatpush1.msra.mxu0 0.0
    %4122 = vmatprep.subr.mxu0 0.0
    %4123 = vmatpush1.msra.mxu0 0.0
    %4124 = vmatprep.mubr.f32.mxu0 0.0
    %4125 = vmatmul.mubr.f32.gmra.mrb[0].mxu0 %v4058
    %v4126 = vpop.f32.mrb[0].mxu0
    %v4127 = vadd.f32 %v3844, %v4126
    %v4128 = vpop.f32.mrb[0].mxu0
    %4129 = vdwg.mxu0
    %v4130 = vadd.f32 %v3829, %v4127
    %v4131 = vxor.u32 %v4130, 2147483648
    %v4132 = vmul.f32 %v4131, 1.442695
    %v4133 = vpow.pop %v4132
    %v4134 = vadd.f32 %v4133, 1.0
    %v4135 = vrcp.pop %v4134
    %v4136 = vmul.f32 1.0, %v4135
    %4138 = vrot.lane.b32.xlu0 %v4127, 64
    %v4139 = vpop.permute.xlu0 %4138
    %v4141 = vmul.f32 %v4136, %v4139
    %4143 = vrot.lane.b32.xlu0 %v4141, 64
    %v4144 = vpop.permute.xlu0 %4143
    %v4146 = vadd.f32 %v3829, %v4144
    %v4147 = vtanh.pop %v4146
    %v4148 = vsub.f32 1.0, %v4136
    %4150 = vrot.lane.b32.xlu0 %v4147, 96
    %v4151 = vpop.permute.xlu0 %4150
    %v4153 = vmul.f32 %v4148, %v4151
    %v4154 = vmul.f32 %v4136, %v4050
    %v4155 = vadd.f32 %v4153, %v4154
    %s4156 = sld [smem:[#allocation2 + $0x2]]
    %v4157 = vstv %s4156
    %v4158 = vmul.f32 %v4157, %v4155
    %v4159 = vadd.f32 %v4054, %v4158
    %4161 = vrot.lane.b32.xlu0 %v4155, 96
    %v4162 = vpop.permute.xlu0 %4161
    %v4163 = vsel %vm3846, %v4162, 0
    %4165 = vmatprep.subr.mxu0 0.0
    %4166 = vmatpush1.msra.mxu0 %v3835
    %4167 = vmatprep.subr.mxu0 0.0
    %4168 = vmatpush1.msra.mxu0 %v3836
    %4169 = vmatprep.subr.mxu0 0.0
    %4170 = vmatpush1.msra.mxu0 %v3837
    %4171 = vmatprep.subr.mxu0 0.0
    %4172 = vmatpush1.msra.mxu0 %v3838
    %4173 = vmatprep.subr.mxu0 0.0
    %4174 = vmatpush1.msra.mxu0 0.0
    %4175 = vmatprep.subr.mxu0 0.0
    %4176 = vmatpush1.msra.mxu0 0.0
    %4177 = vmatprep.subr.mxu0 0.0
    %4178 = vmatpush1.msra.mxu0 0.0
    %4179 = vmatprep.subr.mxu0 0.0
    %4180 = vmatpush1.msra.mxu0 0.0
    %4181 = vmatprep.subr.mxu0 0.0
    %4182 = vmatpush1.msra.mxu0 0.0
    %4183 = vmatprep.subr.mxu0 0.0
    %4184 = vmatpush1.msra.mxu0 0.0
    %4185 = vmatprep.subr.mxu0 0.0
    %4186 = vmatpush1.msra.mxu0 0.0
    %4187 = vmatprep.subr.mxu0 0.0
    %4188 = vmatpush1.msra.mxu0 0.0
    %4189 = vmatprep.subr.mxu0 0.0
    %4190 = vmatpush1.msra.mxu0 0.0
    %4191 = vmatprep.subr.mxu0 0.0
    %4192 = vmatpush1.msra.mxu0 0.0
    %4193 = vmatprep.subr.mxu0 0.0
    %4194 = vmatpush1.msra.mxu0 0.0
    %4195 = vmatprep.subr.mxu0 0.0
    %4196 = vmatpush1.msra.mxu0 0.0
    %4197 = vmatprep.subr.mxu0 0.0
    %4198 = vmatpush1.msra.mxu0 0.0
    %4199 = vmatprep.subr.mxu0 0.0
    %4200 = vmatpush1.msra.mxu0 0.0
    %4201 = vmatprep.subr.mxu0 0.0
    %4202 = vmatpush1.msra.mxu0 0.0
    %4203 = vmatprep.subr.mxu0 0.0
    %4204 = vmatpush1.msra.mxu0 0.0
    %4205 = vmatprep.subr.mxu0 0.0
    %4206 = vmatpush1.msra.mxu0 0.0
    %4207 = vmatprep.subr.mxu0 0.0
    %4208 = vmatpush1.msra.mxu0 0.0
    %4209 = vmatprep.subr.mxu0 0.0
    %4210 = vmatpush1.msra.mxu0 0.0
    %4211 = vmatprep.subr.mxu0 0.0
    %4212 = vmatpush1.msra.mxu0 0.0
    %4213 = vmatprep.subr.mxu0 0.0
    %4214 = vmatpush1.msra.mxu0 0.0
    %4215 = vmatprep.subr.mxu0 0.0
    %4216 = vmatpush1.msra.mxu0 0.0
    %4217 = vmatprep.subr.mxu0 0.0
    %4218 = vmatpush1.msra.mxu0 0.0
    %4219 = vmatprep.subr.mxu0 0.0
    %4220 = vmatpush1.msra.mxu0 0.0
    %4221 = vmatprep.subr.mxu0 0.0
    %4222 = vmatpush1.msra.mxu0 0.0
    %4223 = vmatprep.subr.mxu0 0.0
    %4224 = vmatpush1.msra.mxu0 0.0
    %4225 = vmatprep.subr.mxu0 0.0
    %4226 = vmatpush1.msra.mxu0 0.0
    %4227 = vmatprep.subr.mxu0 0.0
    %4228 = vmatpush1.msra.mxu0 0.0
    %4229 = vmatprep.mubr.f32.mxu0 0.0
    %4230 = vmatmul.mubr.f32.gmra.mrb[0].mxu0 %v4163
    %v4231 = vpop.f32.mrb[0].mxu0
    %v4232 = vadd.f32 %v3844, %v4231
    %v4233 = vpop.f32.mrb[0].mxu0
    %4234 = vdwg.mxu0
    %v4235 = vadd.f32 %v3830, %v4232
    %v4236 = vxor.u32 %v4235, 2147483648
    %v4237 = vmul.f32 %v4236, 1.442695
    %v4238 = vpow.pop %v4237
    %v4239 = vadd.f32 %v4238, 1.0
    %v4240 = vrcp.pop %v4239
    %v4241 = vmul.f32 1.0, %v4240
    %4243 = vrot.lane.b32.xlu0 %v4232, 64
    %v4244 = vpop.permute.xlu0 %4243
    %v4246 = vmul.f32 %v4241, %v4244
    %4248 = vrot.lane.b32.xlu0 %v4246, 64
    %v4249 = vpop.permute.xlu0 %4248
    %v4251 = vadd.f32 %v3830, %v4249
    %v4252 = vtanh.pop %v4251
    %v4253 = vsub.f32 1.0, %v4241
    %4255 = vrot.lane.b32.xlu0 %v4252, 96
    %v4256 = vpop.permute.xlu0 %4255
    %v4258 = vmul.f32 %v4253, %v4256
    %v4259 = vmul.f32 %v4241, %v4155
    %v4260 = vadd.f32 %v4258, %v4259
    %s4261 = sld [smem:[#allocation2 + $0x3]]
    %v4262 = vstv %s4261
    %v4263 = vmul.f32 %v4262, %v4260
    %v4264 = vadd.f32 %v4159, %v4263
    %4266 = vrot.lane.b32.xlu0 %v4260, 96
    %v4267 = vpop.permute.xlu0 %4266
    %v4268 = vsel %vm3846, %v4267, 0
    %4270 = vmatprep.subr.mxu0 0.0
    %4271 = vmatpush1.msra.mxu0 %v3835
    %4272 = vmatprep.subr.mxu0 0.0
    %4273 = vmatpush1.msra.mxu0 %v3836
    %4274 = vmatprep.subr.mxu0 0.0
    %4275 = vmatpush1.msra.mxu0 %v3837
    %4276 = vmatprep.subr.mxu0 0.0
    %4277 = vmatpush1.msra.mxu0 %v3838
    %4278 = vmatprep.subr.mxu0 0.0
    %4279 = vmatpush1.msra.mxu0 0.0
    %4280 = vmatprep.subr.mxu0 0.0
    %4281 = vmatpush1.msra.mxu0 0.0
    %4282 = vmatprep.subr.mxu0 0.0
    %4283 = vmatpush1.msra.mxu0 0.0
    %4284 = vmatprep.subr.mxu0 0.0
    %4285 = vmatpush1.msra.mxu0 0.0
    %4286 = vmatprep.subr.mxu0 0.0
    %4287 = vmatpush1.msra.mxu0 0.0
    %4288 = vmatprep.subr.mxu0 0.0
    %4289 = vmatpush1.msra.mxu0 0.0
    %4290 = vmatprep.subr.mxu0 0.0
    %4291 = vmatpush1.msra.mxu0 0.0
    %4292 = vmatprep.subr.mxu0 0.0
    %4293 = vmatpush1.msra.mxu0 0.0
    %4294 = vmatprep.subr.mxu0 0.0
    %4295 = vmatpush1.msra.mxu0 0.0
    %4296 = vmatprep.subr.mxu0 0.0
    %4297 = vmatpush1.msra.mxu0 0.0
    %4298 = vmatprep.subr.mxu0 0.0
    %4299 = vmatpush1.msra.mxu0 0.0
    %4300 = vmatprep.subr.mxu0 0.0
    %4301 = vmatpush1.msra.mxu0 0.0
    %4302 = vmatprep.subr.mxu0 0.0
    %4303 = vmatpush1.msra.mxu0 0.0
    %4304 = vmatprep.subr.mxu0 0.0
    %4305 = vmatpush1.msra.mxu0 0.0
    %4306 = vmatprep.subr.mxu0 0.0
    %4307 = vmatpush1.msra.mxu0 0.0
    %4308 = vmatprep.subr.mxu0 0.0
    %4309 = vmatpush1.msra.mxu0 0.0
    %4310 = vmatprep.subr.mxu0 0.0
    %4311 = vmatpush1.msra.mxu0 0.0
    %4312 = vmatprep.subr.mxu0 0.0
    %4313 = vmatpush1.msra.mxu0 0.0
    %4314 = vmatprep.subr.mxu0 0.0
    %4315 = vmatpush1.msra.mxu0 0.0
    %4316 = vmatprep.subr.mxu0 0.0
    %4317 = vmatpush1.msra.mxu0 0.0
    %4318 = vmatprep.subr.mxu0 0.0
    %4319 = vmatpush1.msra.mxu0 0.0
    %4320 = vmatprep.subr.mxu0 0.0
    %4321 = vmatpush1.msra.mxu0 0.0
    %4322 = vmatprep.subr.mxu0 0.0
    %4323 = vmatpush1.msra.mxu0 0.0
    %4324 = vmatprep.subr.mxu0 0.0
    %4325 = vmatpush1.msra.mxu0 0.0
    %4326 = vmatprep.subr.mxu0 0.0
    %4327 = vmatpush1.msra.mxu0 0.0
    %4328 = vmatprep.subr.mxu0 0.0
    %4329 = vmatpush1.msra.mxu0 0.0
    %4330 = vmatprep.subr.mxu0 0.0
    %4331 = vmatpush1.msra.mxu0 0.0
    %4332 = vmatprep.subr.mxu0 0.0
    %4333 = vmatpush1.msra.mxu0 0.0
    %4334 = vmatprep.mubr.f32.mxu0 0.0
    %4335 = vmatmul.mubr.f32.gmra.mrb[0].mxu0 %v4268
    %v4336 = vpop.f32.mrb[0].mxu0
    %v4337 = vadd.f32 %v3844, %v4336
    %v4338 = vpop.f32.mrb[0].mxu0
    %4339 = vdwg.mxu0
    %v4340 = vadd.f32 %v3831, %v4337
    %v4341 = vxor.u32 %v4340, 2147483648
    %v4342 = vmul.f32 %v4341, 1.442695
    %v4343 = vpow.pop %v4342
    %v4344 = vadd.f32 %v4343, 1.0
    %v4345 = vrcp.pop %v4344
    %v4346 = vmul.f32 1.0, %v4345
    %4348 = vrot.lane.b32.xlu0 %v4337, 64
    %v4349 = vpop.permute.xlu0 %4348
    %v4351 = vmul.f32 %v4346, %v4349
    %4353 = vrot.lane.b32.xlu0 %v4351, 64
    %v4354 = vpop.permute.xlu0 %4353
    %v4356 = vadd.f32 %v3831, %v4354
    %v4357 = vtanh.pop %v4356
    %v4358 = vsub.f32 1.0, %v4346
    %4360 = vrot.lane.b32.xlu0 %v4357, 96
    %v4361 = vpop.permute.xlu0 %4360
    %v4363 = vmul.f32 %v4358, %v4361
    %v4364 = vmul.f32 %v4346, %v4260
    %v4365 = vadd.f32 %v4363, %v4364
    %s4366 = sld [smem:[#allocation2 + $0x4]]
    %v4367 = vstv %s4366
    %v4368 = vmul.f32 %v4367, %v4365
    %v4369 = vadd.f32 %v4264, %v4368
    %4371 = vrot.lane.b32.xlu0 %v4365, 96
    %v4372 = vpop.permute.xlu0 %4371
    %v4373 = vsel %vm3846, %v4372, 0
    %4375 = vmatprep.subr.mxu0 0.0
    %4376 = vmatpush1.msra.mxu0 %v3835
    %4377 = vmatprep.subr.mxu0 0.0
    %4378 = vmatpush1.msra.mxu0 %v3836
    %4379 = vmatprep.subr.mxu0 0.0
    %4380 = vmatpush1.msra.mxu0 %v3837
    %4381 = vmatprep.subr.mxu0 0.0
    %4382 = vmatpush1.msra.mxu0 %v3838
    %4383 = vmatprep.subr.mxu0 0.0
    %4384 = vmatpush1.msra.mxu0 0.0
    %4385 = vmatprep.subr.mxu0 0.0
    %4386 = vmatpush1.msra.mxu0 0.0
    %4387 = vmatprep.subr.mxu0 0.0
    %4388 = vmatpush1.msra.mxu0 0.0
    %4389 = vmatprep.subr.mxu0 0.0
    %4390 = vmatpush1.msra.mxu0 0.0
    %4391 = vmatprep.subr.mxu0 0.0
    %4392 = vmatpush1.msra.mxu0 0.0
    %4393 = vmatprep.subr.mxu0 0.0
    %4394 = vmatpush1.msra.mxu0 0.0
    %4395 = vmatprep.subr.mxu0 0.0
    %4396 = vmatpush1.msra.mxu0 0.0
    %4397 = vmatprep.subr.mxu0 0.0
    %4398 = vmatpush1.msra.mxu0 0.0
    %4399 = vmatprep.subr.mxu0 0.0
    %4400 = vmatpush1.msra.mxu0 0.0
    %4401 = vmatprep.subr.mxu0 0.0
    %4402 = vmatpush1.msra.mxu0 0.0
    %4403 = vmatprep.subr.mxu0 0.0
    %4404 = vmatpush1.msra.mxu0 0.0
    %4405 = vmatprep.subr.mxu0 0.0
    %4406 = vmatpush1.msra.mxu0 0.0
    %4407 = vmatprep.subr.mxu0 0.0
    %4408 = vmatpush1.msra.mxu0 0.0
    %4409 = vmatprep.subr.mxu0 0.0
    %4410 = vmatpush1.msra.mxu0 0.0
    %4411 = vmatprep.subr.mxu0 0.0
    %4412 = vmatpush1.msra.mxu0 0.0
    %4413 = vmatprep.subr.mxu0 0.0
    %4414 = vmatpush1.msra.mxu0 0.0
    %4415 = vmatprep.subr.mxu0 0.0
    %4416 = vmatpush1.msra.mxu0 0.0
    %4417 = vmatprep.subr.mxu0 0.0
    %4418 = vmatpush1.msra.mxu0 0.0
    %4419 = vmatprep.subr.mxu0 0.0
    %4420 = vmatpush1.msra.mxu0 0.0
    %4421 = vmatprep.subr.mxu0 0.0
    %4422 = vmatpush1.msra.mxu0 0.0
    %4423 = vmatprep.subr.mxu0 0.0
    %4424 = vmatpush1.msra.mxu0 0.0
    %4425 = vmatprep.subr.mxu0 0.0
    %4426 = vmatpush1.msra.mxu0 0.0
    %4427 = vmatprep.subr.mxu0 0.0
    %4428 = vmatpush1.msra.mxu0 0.0
    %4429 = vmatprep.subr.mxu0 0.0
    %4430 = vmatpush1.msra.mxu0 0.0
    %4431 = vmatprep.subr.mxu0 0.0
    %4432 = vmatpush1.msra.mxu0 0.0
    %4433 = vmatprep.subr.mxu0 0.0
    %4434 = vmatpush1.msra.mxu0 0.0
    %4435 = vmatprep.subr.mxu0 0.0
    %4436 = vmatpush1.msra.mxu0 0.0
    %4437 = vmatprep.subr.mxu0 0.0
    %4438 = vmatpush1.msra.mxu0 0.0
    %4439 = vmatprep.mubr.f32.mxu0 0.0
    %4440 = vmatmul.mubr.f32.gmra.mrb[0].mxu0 %v4373
    %v4441 = vpop.f32.mrb[0].mxu0
    %v4442 = vadd.f32 %v3844, %v4441
    %v4443 = vpop.f32.mrb[0].mxu0
    %4444 = vdwg.mxu0
    %v4445 = vadd.f32 %v3832, %v4442
    %v4446 = vxor.u32 %v4445, 2147483648
    %v4447 = vmul.f32 %v4446, 1.442695
    %v4448 = vpow.pop %v4447
    %v4449 = vadd.f32 %v4448, 1.0
    %v4450 = vrcp.pop %v4449
    %v4451 = vmul.f32 1.0, %v4450
    %4453 = vrot.lane.b32.xlu0 %v4442, 64
    %v4454 = vpop.permute.xlu0 %4453
    %v4456 = vmul.f32 %v4451, %v4454
    %4458 = vrot.lane.b32.xlu0 %v4456, 64
    %v4459 = vpop.permute.xlu0 %4458
    %v4461 = vadd.f32 %v3832, %v4459
    %v4462 = vtanh.pop %v4461
    %v4463 = vsub.f32 1.0, %v4451
    %4465 = vrot.lane.b32.xlu0 %v4462, 96
    %v4466 = vpop.permute.xlu0 %4465
    %v4468 = vmul.f32 %v4463, %v4466
    %v4469 = vmul.f32 %v4451, %v4365
    %v4470 = vadd.f32 %v4468, %v4469
    %s4471 = sld [smem:[#allocation2 + $0x5]]
    %v4472 = vstv %s4471
    %v4473 = vmul.f32 %v4472, %v4470
    %v4474 = vadd.f32 %v4369, %v4473
    %4476 = vrot.lane.b32.xlu0 %v4470, 96
    %v4477 = vpop.permute.xlu0 %4476
    %v4478 = vsel %vm3846, %v4477, 0
    %4480 = vmatprep.subr.mxu0 0.0
    %4481 = vmatpush1.msra.mxu0 %v3835
    %4482 = vmatprep.subr.mxu0 0.0
    %4483 = vmatpush1.msra.mxu0 %v3836
    %4484 = vmatprep.subr.mxu0 0.0
    %4485 = vmatpush1.msra.mxu0 %v3837
    %4486 = vmatprep.subr.mxu0 0.0
    %4487 = vmatpush1.msra.mxu0 %v3838
    %4488 = vmatprep.subr.mxu0 0.0
    %4489 = vmatpush1.msra.mxu0 0.0
    %4490 = vmatprep.subr.mxu0 0.0
    %4491 = vmatpush1.msra.mxu0 0.0
    %4492 = vmatprep.subr.mxu0 0.0
    %4493 = vmatpush1.msra.mxu0 0.0
    %4494 = vmatprep.subr.mxu0 0.0
    %4495 = vmatpush1.msra.mxu0 0.0
    %4496 = vmatprep.subr.mxu0 0.0
    %4497 = vmatpush1.msra.mxu0 0.0
    %4498 = vmatprep.subr.mxu0 0.0
    %4499 = vmatpush1.msra.mxu0 0.0
    %4500 = vmatprep.subr.mxu0 0.0
    %4501 = vmatpush1.msra.mxu0 0.0
    %4502 = vmatprep.subr.mxu0 0.0
    %4503 = vmatpush1.msra.mxu0 0.0
    %4504 = vmatprep.subr.mxu0 0.0
    %4505 = vmatpush1.msra.mxu0 0.0
    %4506 = vmatprep.subr.mxu0 0.0
    %4507 = vmatpush1.msra.mxu0 0.0
    %4508 = vmatprep.subr.mxu0 0.0
    %4509 = vmatpush1.msra.mxu0 0.0
    %4510 = vmatprep.subr.mxu0 0.0
    %4511 = vmatpush1.msra.mxu0 0.0
    %4512 = vmatprep.subr.mxu0 0.0
    %4513 = vmatpush1.msra.mxu0 0.0
    %4514 = vmatprep.subr.mxu0 0.0
    %4515 = vmatpush1.msra.mxu0 0.0
    %4516 = vmatprep.subr.mxu0 0.0
    %4517 = vmatpush1.msra.mxu0 0.0
    %4518 = vmatprep.subr.mxu0 0.0
    %4519 = vmatpush1.msra.mxu0 0.0
    %4520 = vmatprep.subr.mxu0 0.0
    %4521 = vmatpush1.msra.mxu0 0.0
    %4522 = vmatprep.subr.mxu0 0.0
    %4523 = vmatpush1.msra.mxu0 0.0
    %4524 = vmatprep.subr.mxu0 0.0
    %4525 = vmatpush1.msra.mxu0 0.0
    %4526 = vmatprep.subr.mxu0 0.0
    %4527 = vmatpush1.msra.mxu0 0.0
    %4528 = vmatprep.subr.mxu0 0.0
    %4529 = vmatpush1.msra.mxu0 0.0
    %4530 = vmatprep.subr.mxu0 0.0
    %4531 = vmatpush1.msra.mxu0 0.0
    %4532 = vmatprep.subr.mxu0 0.0
    %4533 = vmatpush1.msra.mxu0 0.0
    %4534 = vmatprep.subr.mxu0 0.0
    %4535 = vmatpush1.msra.mxu0 0.0
    %4536 = vmatprep.subr.mxu0 0.0
    %4537 = vmatpush1.msra.mxu0 0.0
    %4538 = vmatprep.subr.mxu0 0.0
    %4539 = vmatpush1.msra.mxu0 0.0
    %4540 = vmatprep.subr.mxu0 0.0
    %4541 = vmatpush1.msra.mxu0 0.0
    %4542 = vmatprep.subr.mxu0 0.0
    %4543 = vmatpush1.msra.mxu0 0.0
    %4544 = vmatprep.mubr.f32.mxu0 0.0
    %4545 = vmatmul.mubr.f32.gmra.mrb[0].mxu0 %v4478
    %v4546 = vpop.f32.mrb[0].mxu0
    %v4547 = vadd.f32 %v3844, %v4546
    %v4548 = vpop.f32.mrb[0].mxu0
    %4549 = vdwg.mxu0
    %v4550 = vadd.f32 %v3833, %v4547
    %v4551 = vxor.u32 %v4550, 2147483648
    %v4552 = vmul.f32 %v4551, 1.442695
    %v4553 = vpow.pop %v4552
    %v4554 = vadd.f32 %v4553, 1.0
    %v4555 = vrcp.pop %v4554
    %v4556 = vmul.f32 1.0, %v4555
    %4558 = vrot.lane.b32.xlu0 %v4547, 64
    %v4559 = vpop.permute.xlu0 %4558
    %v4561 = vmul.f32 %v4556, %v4559
    %4563 = vrot.lane.b32.xlu0 %v4561, 64
    %v4564 = vpop.permute.xlu0 %4563
    %v4566 = vadd.f32 %v3833, %v4564
    %v4567 = vtanh.pop %v4566
    %v4568 = vsub.f32 1.0, %v4556
    %4570 = vrot.lane.b32.xlu0 %v4567, 96
    %v4571 = vpop.permute.xlu0 %4570
    %v4573 = vmul.f32 %v4568, %v4571
    %v4574 = vmul.f32 %v4556, %v4470
    %v4575 = vadd.f32 %v4573, %v4574
    %s4576 = sld [smem:[#allocation2 + $0x6]]
    %v4577 = vstv %s4576
    %v4578 = vmul.f32 %v4577, %v4575
    %v4579 = vadd.f32 %v4474, %v4578
    %4581 = vrot.lane.b32.xlu0 %v4575, 96
    %v4582 = vpop.permute.xlu0 %4581
    %v4583 = vsel %vm3846, %v4582, 0
    %4585 = vmatprep.subr.mxu0 0.0
    %4586 = vmatpush1.msra.mxu0 %v3835
    %4587 = vmatprep.subr.mxu0 0.0
    %4588 = vmatpush1.msra.mxu0 %v3836
    %4589 = vmatprep.subr.mxu0 0.0
    %4590 = vmatpush1.msra.mxu0 %v3837
    %4591 = vmatprep.subr.mxu0 0.0
    %4592 = vmatpush1.msra.mxu0 %v3838
    %4593 = vmatprep.subr.mxu0 0.0
    %4594 = vmatpush1.msra.mxu0 0.0
    %4595 = vmatprep.subr.mxu0 0.0
    %4596 = vmatpush1.msra.mxu0 0.0
    %4597 = vmatprep.subr.mxu0 0.0
    %4598 = vmatpush1.msra.mxu0 0.0
    %4599 = vmatprep.subr.mxu0 0.0
    %4600 = vmatpush1.msra.mxu0 0.0
    %4601 = vmatprep.subr.mxu0 0.0
    %4602 = vmatpush1.msra.mxu0 0.0
    %4603 = vmatprep.subr.mxu0 0.0
    %4604 = vmatpush1.msra.mxu0 0.0
    %4605 = vmatprep.subr.mxu0 0.0
    %4606 = vmatpush1.msra.mxu0 0.0
    %4607 = vmatprep.subr.mxu0 0.0
    %4608 = vmatpush1.msra.mxu0 0.0
    %4609 = vmatprep.subr.mxu0 0.0
    %4610 = vmatpush1.msra.mxu0 0.0
    %4611 = vmatprep.subr.mxu0 0.0
    %4612 = vmatpush1.msra.mxu0 0.0
    %4613 = vmatprep.subr.mxu0 0.0
    %4614 = vmatpush1.msra.mxu0 0.0
    %4615 = vmatprep.subr.mxu0 0.0
    %4616 = vmatpush1.msra.mxu0 0.0
    %4617 = vmatprep.subr.mxu0 0.0
    %4618 = vmatpush1.msra.mxu0 0.0
    %4619 = vmatprep.subr.mxu0 0.0
    %4620 = vmatpush1.msra.mxu0 0.0
    %4621 = vmatprep.subr.mxu0 0.0
    %4622 = vmatpush1.msra.mxu0 0.0
    %4623 = vmatprep.subr.mxu0 0.0
    %4624 = vmatpush1.msra.mxu0 0.0
    %4625 = vmatprep.subr.mxu0 0.0
    %4626 = vmatpush1.msra.mxu0 0.0
    %4627 = vmatprep.subr.mxu0 0.0
    %4628 = vmatpush1.msra.mxu0 0.0
    %4629 = vmatprep.subr.mxu0 0.0
    %4630 = vmatpush1.msra.mxu0 0.0
    %4631 = vmatprep.subr.mxu0 0.0
    %4632 = vmatpush1.msra.mxu0 0.0
    %4633 = vmatprep.subr.mxu0 0.0
    %4634 = vmatpush1.msra.mxu0 0.0
    %4635 = vmatprep.subr.mxu0 0.0
    %4636 = vmatpush1.msra.mxu0 0.0
    %4637 = vmatprep.subr.mxu0 0.0
    %4638 = vmatpush1.msra.mxu0 0.0
    %4639 = vmatprep.subr.mxu0 0.0
    %4640 = vmatpush1.msra.mxu0 0.0
    %4641 = vmatprep.subr.mxu0 0.0
    %4642 = vmatpush1.msra.mxu0 0.0
    %4643 = vmatprep.subr.mxu0 0.0
    %4644 = vmatpush1.msra.mxu0 0.0
    %4645 = vmatprep.subr.mxu0 0.0
    %4646 = vmatpush1.msra.mxu0 0.0
    %4647 = vmatprep.subr.mxu0 0.0
    %4648 = vmatpush1.msra.mxu0 0.0
    %4649 = vmatprep.mubr.f32.mxu0 0.0
    %4650 = vmatmul.mubr.f32.gmra.mrb[0].mxu0 %v4583
    %v4651 = vpop.f32.mrb[0].mxu0
    %v4652 = vadd.f32 %v3844, %v4651
    %v4653 = vpop.f32.mrb[0].mxu0
    %4654 = vdwg.mxu0
    %v4655 = vadd.f32 %v3834, %v4652
    %v4656 = vxor.u32 %v4655, 2147483648
    %v4657 = vmul.f32 %v4656, 1.442695
    %v4658 = vpow.pop %v4657
    %v4659 = vadd.f32 %v4658, 1.0
    %v4660 = vrcp.pop %v4659
    %v4661 = vmul.f32 1.0, %v4660
    %4663 = vrot.lane.b32.xlu0 %v4652, 64
    %v4664 = vpop.permute.xlu0 %4663
    %v4666 = vmul.f32 %v4661, %v4664
    %4668 = vrot.lane.b32.xlu0 %v4666, 64
    %v4669 = vpop.permute.xlu0 %4668
    %v4671 = vadd.f32 %v3834, %v4669
    %v4672 = vtanh.pop %v4671
    %v4673 = vsub.f32 1.0, %v4661
    %4675 = vrot.lane.b32.xlu0 %v4672, 96
    %v4676 = vpop.permute.xlu0 %4675
    %v4678 = vmul.f32 %v4673, %v4676
    %v4679 = vmul.f32 %v4661, %v4575
    %v4680 = vadd.f32 %v4678, %v4679
    %s4681 = sld [smem:[#allocation2 + $0x7]]
    %v4682 = vstv %s4681
    %v4683 = vmul.f32 %v4682, %v4680
    %v4684 = vadd.f32 %v4579, %v4683
    %v4685 = vld [vmem:[%s7] sm:$0xff]
    %v4686 = vld [vmem:[%s7 + $0x8] sm:$0xff]
    %v4687 = vld [vmem:[%s7 + $0x10] sm:$0xff]
    %v4688 = vld [vmem:[%s7 + $0x18] sm:$0xff]
    %v4689 = vld [vmem:[%s8] sm:$0x1]
    %v4691 = vlaneseq
    %v4692 = vshrl.u32 %v4691, 7
    %v4693 = vsub.s32 0, %v4692
    %v4694 = vrot.slane %v4689, %v4693
    %4697 = vrot.lane.b32.xlu0 %v4684, 96
    %v4698 = vpop.permute.xlu0 %4697
    %v4699 = vsel %vm3846, %v4698, 0
    %4701 = vmatprep.subr.mxu0 0.0
    %4702 = vmatpush1.msra.mxu0 %v4685
    %4703 = vmatprep.subr.mxu0 0.0
    %4704 = vmatpush1.msra.mxu0 %v4686
    %4705 = vmatprep.subr.mxu0 0.0
    %4706 = vmatpush1.msra.mxu0 %v4687
    %4707 = vmatprep.subr.mxu0 0.0
    %4708 = vmatpush1.msra.mxu0 %v4688
    %4709 = vmatprep.subr.mxu0 0.0
    %4710 = vmatpush1.msra.mxu0 0.0
    %4711 = vmatprep.subr.mxu0 0.0
    %4712 = vmatpush1.msra.mxu0 0.0
    %4713 = vmatprep.subr.mxu0 0.0
    %4714 = vmatpush1.msra.mxu0 0.0
    %4715 = vmatprep.subr.mxu0 0.0
    %4716 = vmatpush1.msra.mxu0 0.0
    %4717 = vmatprep.subr.mxu0 0.0
    %4718 = vmatpush1.msra.mxu0 0.0
    %4719 = vmatprep.subr.mxu0 0.0
    %4720 = vmatpush1.msra.mxu0 0.0
    %4721 = vmatprep.subr.mxu0 0.0
    %4722 = vmatpush1.msra.mxu0 0.0
    %4723 = vmatprep.subr.mxu0 0.0
    %4724 = vmatpush1.msra.mxu0 0.0
    %4725 = vmatprep.subr.mxu0 0.0
    %4726 = vmatpush1.msra.mxu0 0.0
    %4727 = vmatprep.subr.mxu0 0.0
    %4728 = vmatpush1.msra.mxu0 0.0
    %4729 = vmatprep.subr.mxu0 0.0
    %4730 = vmatpush1.msra.mxu0 0.0
    %4731 = vmatprep.subr.mxu0 0.0
    %4732 = vmatpush1.msra.mxu0 0.0
    %4733 = vmatprep.subr.mxu0 0.0
    %4734 = vmatpush1.msra.mxu0 0.0
    %4735 = vmatprep.subr.mxu0 0.0
    %4736 = vmatpush1.msra.mxu0 0.0
    %4737 = vmatprep.subr.mxu0 0.0
    %4738 = vmatpush1.msra.mxu0 0.0
    %4739 = vmatprep.subr.mxu0 0.0
    %4740 = vmatpush1.msra.mxu0 0.0
    %4741 = vmatprep.subr.mxu0 0.0
    %4742 = vmatpush1.msra.mxu0 0.0
    %4743 = vmatprep.subr.mxu0 0.0
    %4744 = vmatpush1.msra.mxu0 0.0
    %4745 = vmatprep.subr.mxu0 0.0
    %4746 = vmatpush1.msra.mxu0 0.0
    %4747 = vmatprep.subr.mxu0 0.0
    %4748 = vmatpush1.msra.mxu0 0.0
    %4749 = vmatprep.subr.mxu0 0.0
    %4750 = vmatpush1.msra.mxu0 0.0
    %4751 = vmatprep.subr.mxu0 0.0
    %4752 = vmatpush1.msra.mxu0 0.0
    %4753 = vmatprep.subr.mxu0 0.0
    %4754 = vmatpush1.msra.mxu0 0.0
    %4755 = vmatprep.subr.mxu0 0.0
    %4756 = vmatpush1.msra.mxu0 0.0
    %4757 = vmatprep.subr.mxu0 0.0
    %4758 = vmatpush1.msra.mxu0 0.0
    %4759 = vmatprep.subr.mxu0 0.0
    %4760 = vmatpush1.msra.mxu0 0.0
    %4761 = vmatprep.subr.mxu0 0.0
    %4762 = vmatpush1.msra.mxu0 0.0
    %4763 = vmatprep.subr.mxu0 0.0
    %4764 = vmatpush1.msra.mxu0 0.0
    %4765 = vmatprep.mubr.f32.mxu0 0.0
    %4766 = vmatmul.mubr.f32.gmra.mrb[0].mxu0 %v4699
    %v4767 = vpop.f32.mrb[0].mxu0
    %v4768 = vadd.f32 %v4694, %v4767
    %v4769 = vpop.f32.mrb[0].mxu0
    %4770 = vdwg.mxu0
    %4771 = vst [vmem:[%s10] sm:$0xff] %v4768
    // Predicated region
    $region46: #{net_special_rnn_forward.1} parent=1 // pred_check
      _
    $region47: #{net_special_rnn_forward.1} parent=1 // pred_check_branch
      %4773 = sbr.rel (0) target = $region49
    $region48: #{net_special_rnn_forward.1} parent=1 // pred_region
      _
    $region49: #{net_special_rnn_forward.1} parent=1 // pred_fallthru
      _
    // Predicated region
    $region50: #{net_special_rnn_forward.1} parent=1 // pred_check
      _
    $region51: #{net_special_rnn_forward.1} parent=1 // pred_check_branch
      %4775 = sbr.rel (0) target = $region53
    $region52: #{net_special_rnn_forward.1} parent=1 // pred_region
      _
    $region53: #{net_special_rnn_forward.1} parent=1 // pred_fallthru
      _
    %4776 = vsyncpa [#allocation3], 1

</llo_original>
